<compile_context>
chip_gen: v7x
topology: tpu7x:2x2x1
jax: 0.10.0
libtpu: 0.0.40
codegen_flags: <defaults>
</compile_context>

<pallas_src>
import functools
import math

import jax
import jax.numpy as jnp
from jax.experimental import pallas as pl
from jax.experimental.pallas import tpu as pltpu


# ------------------------------- kernel ------------------------------------ #

def _decoder_layer_kernel(
    trg_ref, enc_ref, tmask_ref, smask_ref,
    # self-attention: fused QKV projection + output projection
    s_wqkv_ref, s_bqkv_ref, s_wo_ref, s_bo_ref,
    # cross(encoder)-attention: Q projection, fused KV projection, output proj
    c_wq_ref, c_bq_ref, c_wkv_ref, c_bkv_ref, c_wo_ref, c_bo_ref,
    # layernorm params
    g1_ref, be1_ref, g2_ref, be2_ref, g3_ref, be3_ref,
    # positionwise FFN weights
    w1_ref, fb1_ref, w2_ref, fb2_ref,
    # outputs
    out_ref, attn_ref,
    *, num_heads, head_dim, inv_scale, eps):
    """One grid step == one batch element. Whole decoder layer in VMEM."""
    H = num_heads * head_dim

    def heads_view(x, L):
        # (L, H) -> (heads, L, head_dim)
        return x.reshape(L, num_heads, head_dim).transpose(1, 0, 2)

    def attention(Q, K, V, mask, wo_ref, bo_ref):
        Lq, Lk = Q.shape[0], K.shape[0]
        Qh, Kh, Vh = heads_view(Q, Lq), heads_view(K, Lk), heads_view(V, Lk)
        energy = jnp.einsum('hqd,hkd->hqk', Qh, Kh,
                            preferred_element_type=jnp.float32)      # (h,Lq,Lk)
        # mask broadcasts: (Lq,Lk) for self-attn, (1,Lk) for cross-attn.
        energy = jnp.where(mask == 0, -1e10, energy)
        # Fully-masked rows degenerate to a uniform distribution over -1e10
        # logits (same as torch.masked_fill + softmax), not NaN.
        m = jnp.max(energy, axis=-1, keepdims=True)
        p = jnp.exp(energy - m)
        attn = p * pl.reciprocal(jnp.sum(p, axis=-1, keepdims=True), approx=True)
        # dropout(attention) is identity in eval mode.
        ctx = jnp.einsum('hqk,hkd->hqd', attn, Vh,
                         preferred_element_type=jnp.float32)         # (h,Lq,d)
        ctx = ctx.transpose(1, 0, 2).reshape(Lq, H)
        out = jnp.dot(ctx, wo_ref[...],
                      preferred_element_type=jnp.float32) + bo_ref[...]
        return out, attn

    def add_ln(x, y, g_ref, b_ref):
        z = x + y
        mean = jnp.mean(z, axis=-1, keepdims=True)
        var = jnp.mean((z - mean) ** 2, axis=-1, keepdims=True)
        return (z - mean) * jax.lax.rsqrt(var + eps) * g_ref[...] + b_ref[...]

    trg = trg_ref[0].astype(jnp.float32)     # (Lt, H)
    enc = enc_ref[0].astype(jnp.float32)     # (Ls, H)
    tmask = tmask_ref[0]                     # (Lt, Lt) int32
    smask = smask_ref[0]                     # (1, Ls) int32

    # 1) masked self-attention: one fused QKV matmul over trg.
    qkv = jnp.dot(trg, s_wqkv_ref[...],
                  preferred_element_type=jnp.float32) + s_bqkv_ref[...]   # (Lt,3H)
    sa_out, _ = attention(qkv[:, :H] * inv_scale, qkv[:, H:2 * H], qkv[:, 2 * H:],
                          tmask, s_wo_ref, s_bo_ref)
    x1 = add_ln(trg, sa_out, g1_ref, be1_ref)

    # 2) cross-attention: Q from x1, fused K/V matmul over enc_src.
    q = (jnp.dot(x1, c_wq_ref[...],
                 preferred_element_type=jnp.float32) + c_bq_ref[...]) * inv_scale
    kv = jnp.dot(enc, c_wkv_ref[...],
                 preferred_element_type=jnp.float32) + c_bkv_ref[...]     # (Ls,2H)
    ca_out, attn = attention(q, kv[:, :H], kv[:, H:], smask, c_wo_ref, c_bo_ref)
    attn_ref[0] = attn.astype(attn_ref.dtype)   # (heads, Lt, Ls)
    x2 = add_ln(x1, ca_out, g2_ref, be2_ref)

    # 3) positionwise feedforward + final add & LN.
    h = jnp.maximum(
        jnp.dot(x2, w1_ref[...], preferred_element_type=jnp.float32) + fb1_ref[...],
        0.0)
    ff = jnp.dot(h, w2_ref[...], preferred_element_type=jnp.float32) + fb2_ref[...]
    out_ref[0] = add_ln(x2, ff, g3_ref, be3_ref).astype(out_ref.dtype)


# ------------------------------- wrapper ------------------------------------ #

def decoder_layer(trg, enc_src, trg_mask, src_mask, params, num_heads, eps=1e-5):
    """Matches DecoderLayer.forward (dropout == identity in eval mode).

    trg:      (B, Lt, H)      enc_src:  (B, Ls, H)
    trg_mask: (B, 1, Lt, Lt)  src_mask: (B, 1, 1, Ls)
    returns (trg_out (B, Lt, H), cross_attention (B, heads, Lt, Ls))
    """
    B, Lt, H = trg.shape
    Ls = enc_src.shape[1]
    hd = H // num_heads
    inv_scale = 1.0 / math.sqrt(hd)

    # Compact integer masks (no broadcast f32 mask DMA).
    tmask = trg_mask[:, 0].astype(jnp.int32)     # (B, Lt, Lt)
    smask = src_mask[:, 0].astype(jnp.int32)     # (B, 1, Ls)

    sa, ea, ffn = params["self_attn"], params["enc_attn"], params["ffn"]
    PF = ffn["w1"].shape[1]

    # Weight-side fusion (constant-folded under jit): one matmul per shared
    # operand instead of three / two small ones.
    s_wqkv = jnp.concatenate([sa["wq"], sa["wk"], sa["wv"]], axis=1)   # (H, 3H)
    s_bqkv = jnp.concatenate([sa["bq"], sa["bk"], sa["bv"]], axis=1)   # (1, 3H)
    c_wkv = jnp.concatenate([ea["wk"], ea["wv"]], axis=1)              # (H, 2H)
    c_bkv = jnp.concatenate([ea["bk"], ea["bv"]], axis=1)              # (1, 2H)

    kern = functools.partial(_decoder_layer_kernel, num_heads=num_heads,
                             head_dim=hd, inv_scale=inv_scale, eps=eps)

    full2 = lambda b: (0, 0)
    wspec = pl.BlockSpec((H, H), full2)
    bspec = pl.BlockSpec((1, H), full2)

    out, attn = pl.pallas_call(
        kern,
        out_shape=(jax.ShapeDtypeStruct((B, Lt, H), trg.dtype),
                   jax.ShapeDtypeStruct((B, num_heads, Lt, Ls), jnp.float32)),
        grid=(B,),
        in_specs=[
            pl.BlockSpec((1, Lt, H), lambda b: (b, 0, 0)),      # trg
            pl.BlockSpec((1, Ls, H), lambda b: (b, 0, 0)),      # enc_src
            pl.BlockSpec((1, Lt, Lt), lambda b: (b, 0, 0)),     # trg_mask (int)
            pl.BlockSpec((1, 1, Ls), lambda b: (b, 0, 0)),      # src_mask (int)
            # self-attn fused Wqkv, bqkv, Wo, bo
            pl.BlockSpec((H, 3 * H), full2), pl.BlockSpec((1, 3 * H), full2),
            wspec, bspec,
            # cross-attn Wq, bq, fused Wkv, bkv, Wo, bo
            wspec, bspec,
            pl.BlockSpec((H, 2 * H), full2), pl.BlockSpec((1, 2 * H), full2),
            wspec, bspec,
            # LayerNorm gamma/beta x3
            bspec, bspec, bspec, bspec, bspec, bspec,
            # FFN W1, b1, W2, b2
            pl.BlockSpec((H, PF), full2), pl.BlockSpec((1, PF), full2),
            pl.BlockSpec((PF, H), full2), pl.BlockSpec((1, H), full2),
        ],
        out_specs=(
            pl.BlockSpec((1, Lt, H), lambda b: (b, 0, 0)),
            # NOTE: at realistic Lk this output should be made lane-dense
            # (>=128-wide last axis) or dropped when unused; at toy Ls=8 it is tiny.
            pl.BlockSpec((1, num_heads, Lt, Ls), lambda b: (b, 0, 0, 0)),
        ),
        compiler_params=pltpu.CompilerParams(
            dimension_semantics=("parallel",)),
    )(trg, enc_src, tmask, smask,
      s_wqkv, s_bqkv, sa["wo"], sa["bo"],
      ea["wq"], ea["bq"], c_wkv, c_bkv, ea["wo"], ea["bo"],
      params["ln1_g"], params["ln1_b"], params["ln2_g"], params["ln2_b"],
      params["ln3_g"], params["ln3_b"],
      ffn["w1"], ffn["b1"], ffn["w2"], ffn["b2"])
    return out, attn


# ------------------------- parameter construction -------------------------- #

def _attn_params(key, H):
    ks = jax.random.split(key, 8)
    s = 1.0 / math.sqrt(H)
    return {
        "wq": jax.random.uniform(ks[0], (H, H), jnp.float32, -s, s),
        "bq": jax.random.uniform(ks[1], (1, H), jnp.float32, -s, s),
        "wk": jax.random.uniform(ks[2], (H, H), jnp.float32, -s, s),
        "bk": jax.random.uniform(ks[3], (1, H), jnp.float32, -s, s),
        "wv": jax.random.uniform(ks[4], (H, H), jnp.float32, -s, s),
        "bv": jax.random.uniform(ks[5], (1, H), jnp.float32, -s, s),
        "wo": jax.random.uniform(ks[6], (H, H), jnp.float32, -s, s),
        "bo": jax.random.uniform(ks[7], (1, H), jnp.float32, -s, s),
    }


def make_params(key, H, PF):
    k_sa, k_ea, k_f1, k_f2, k_b1, k_b2 = jax.random.split(key, 6)
    s1 = 1.0 / math.sqrt(H)
    s2 = 1.0 / math.sqrt(PF)
    return {
        "self_attn": _attn_params(k_sa, H),
        "enc_attn": _attn_params(k_ea, H),
        "ffn": {
            "w1": jax.random.uniform(k_f1, (H, PF), jnp.float32, -s1, s1),
            "b1": jax.random.uniform(k_b1, (1, PF), jnp.float32, -s1, s1),
            "w2": jax.random.uniform(k_f2, (PF, H), jnp.float32, -s2, s2),
            "b2": jax.random.uniform(k_b2, (1, H), jnp.float32, -s2, s2),
        },
        "ln1_g": jnp.ones((1, H), jnp.float32), "ln1_b": jnp.zeros((1, H), jnp.float32),
        "ln2_g": jnp.ones((1, H), jnp.float32), "ln2_b": jnp.zeros((1, H), jnp.float32),
        "ln3_g": jnp.ones((1, H), jnp.float32), "ln3_b": jnp.zeros((1, H), jnp.float32),
    }


# --------------------------------- main ------------------------------------ #

if __name__ == "__main__":
    B, TRG_LEN, SRC_LEN, H, NUM_HEADS, PF = 2, 8, 8, 32, 4, 64

    key = jax.random.PRNGKey(0)
    k_trg, k_src, k_par = jax.random.split(key, 3)

    trg = jax.random.normal(k_trg, (B, TRG_LEN, H), jnp.float32)
    enc_src = jax.random.normal(k_src, (B, SRC_LEN, H), jnp.float32)

    # causal target mask (B, 1, trg_len, trg_len); source padding mask (B, 1, 1, src_len)
    trg_mask = jnp.broadcast_to(
        jnp.tril(jnp.ones((TRG_LEN, TRG_LEN), jnp.float32))[None, None],
        (B, 1, TRG_LEN, TRG_LEN))
    src_mask = jnp.ones((B, 1, 1, SRC_LEN), jnp.float32)
    src_mask = src_mask.at[1, 0, 0, SRC_LEN - 1].set(0.0)  # pad last src token of batch 1

    params = make_params(k_par, H, PF)

    out, attention = decoder_layer(trg, enc_src, trg_mask, src_mask, params, NUM_HEADS)
    jax.block_until_ready((out, attention))

    assert out.shape == (B, TRG_LEN, H)
    assert attention.shape == (B, NUM_HEADS, TRG_LEN, SRC_LEN)
    print("KERNEL_OK")
</pallas_src>

<mosaic_0001>
module attributes {stable_mosaic.version = 11 : i64} {
  func.func @_decoder_layer_kernel(%arg0: i32, %arg1: memref<1x8x32xf32, #tpu.memory_space<vmem>>, %arg2: memref<1x8x32xf32, #tpu.memory_space<vmem>>, %arg3: memref<1x8x8xi32, #tpu.memory_space<vmem>>, %arg4: memref<1x1x8xi32, #tpu.memory_space<vmem>>, %arg5: memref<32x96xf32, #tpu.memory_space<vmem>>, %arg6: memref<1x96xf32, #tpu.memory_space<vmem>>, %arg7: memref<32x32xf32, #tpu.memory_space<vmem>>, %arg8: memref<1x32xf32, #tpu.memory_space<vmem>>, %arg9: memref<32x32xf32, #tpu.memory_space<vmem>>, %arg10: memref<1x32xf32, #tpu.memory_space<vmem>>, %arg11: memref<32x64xf32, #tpu.memory_space<vmem>>, %arg12: memref<1x64xf32, #tpu.memory_space<vmem>>, %arg13: memref<32x32xf32, #tpu.memory_space<vmem>>, %arg14: memref<1x32xf32, #tpu.memory_space<vmem>>, %arg15: memref<1x32xf32, #tpu.memory_space<vmem>>, %arg16: memref<1x32xf32, #tpu.memory_space<vmem>>, %arg17: memref<1x32xf32, #tpu.memory_space<vmem>>, %arg18: memref<1x32xf32, #tpu.memory_space<vmem>>, %arg19: memref<1x32xf32, #tpu.memory_space<vmem>>, %arg20: memref<1x32xf32, #tpu.memory_space<vmem>>, %arg21: memref<32x64xf32, #tpu.memory_space<vmem>>, %arg22: memref<1x64xf32, #tpu.memory_space<vmem>>, %arg23: memref<64x32xf32, #tpu.memory_space<vmem>>, %arg24: memref<1x32xf32, #tpu.memory_space<vmem>>, %arg25: memref<1x8x32xf32, #tpu.memory_space<vmem>>, %arg26: memref<1x4x8x8xf32, #tpu.memory_space<vmem>>) attributes {dimension_semantics = [#tpu.dimension_semantics<parallel>], iteration_bounds = array<i64: 2>, scalar_prefetch = 0 : i64, scratch_operands = 0 : i64, tpu.core_type = #tpu.core_type<tc>, window_params = [{transform_indices = @transform_0, window_bounds = array<i64: 1, 8, 32>}, {transform_indices = @transform_1, window_bounds = array<i64: 1, 8, 32>}, {transform_indices = @transform_2, window_bounds = array<i64: 1, 8, 8>}, {transform_indices = @transform_3, window_bounds = array<i64: 1, 1, 8>}, {pipeline_mode = #tpu.pipeline_mode<synchronous>, transform_indices = @transform_4, window_bounds = array<i64: 32, 96>}, {pipeline_mode = #tpu.pipeline_mode<synchronous>, transform_indices = @transform_5, window_bounds = array<i64: 1, 96>}, {pipeline_mode = #tpu.pipeline_mode<synchronous>, transform_indices = @transform_6, window_bounds = array<i64: 32, 32>}, {pipeline_mode = #tpu.pipeline_mode<synchronous>, transform_indices = @transform_7, window_bounds = array<i64: 1, 32>}, {pipeline_mode = #tpu.pipeline_mode<synchronous>, transform_indices = @transform_8, window_bounds = array<i64: 32, 32>}, {pipeline_mode = #tpu.pipeline_mode<synchronous>, transform_indices = @transform_9, window_bounds = array<i64: 1, 32>}, {pipeline_mode = #tpu.pipeline_mode<synchronous>, transform_indices = @transform_10, window_bounds = array<i64: 32, 64>}, {pipeline_mode = #tpu.pipeline_mode<synchronous>, transform_indices = @transform_11, window_bounds = array<i64: 1, 64>}, {pipeline_mode = #tpu.pipeline_mode<synchronous>, transform_indices = @transform_12, window_bounds = array<i64: 32, 32>}, {pipeline_mode = #tpu.pipeline_mode<synchronous>, transform_indices = @transform_13, window_bounds = array<i64: 1, 32>}, {pipeline_mode = #tpu.pipeline_mode<synchronous>, transform_indices = @transform_14, window_bounds = array<i64: 1, 32>}, {pipeline_mode = #tpu.pipeline_mode<synchronous>, transform_indices = @transform_15, window_bounds = array<i64: 1, 32>}, {pipeline_mode = #tpu.pipeline_mode<synchronous>, transform_indices = @transform_16, window_bounds = array<i64: 1, 32>}, {pipeline_mode = #tpu.pipeline_mode<synchronous>, transform_indices = @transform_17, window_bounds = array<i64: 1, 32>}, {pipeline_mode = #tpu.pipeline_mode<synchronous>, transform_indices = @transform_18, window_bounds = array<i64: 1, 32>}, {pipeline_mode = #tpu.pipeline_mode<synchronous>, transform_indices = @transform_19, window_bounds = array<i64: 1, 32>}, {pipeline_mode = #tpu.pipeline_mode<synchronous>, transform_indices = @transform_20, window_bounds = array<i64: 32, 64>}, {pipeline_mode = #tpu.pipeline_mode<synchronous>, transform_indices = @transform_21, window_bounds = array<i64: 1, 64>}, {pipeline_mode = #tpu.pipeline_mode<synchronous>, transform_indices = @transform_22, window_bounds = array<i64: 64, 32>}, {pipeline_mode = #tpu.pipeline_mode<synchronous>, transform_indices = @transform_23, window_bounds = array<i64: 1, 32>}, {transform_indices = @transform_24, window_bounds = array<i64: 1, 8, 32>}, {transform_indices = @transform_25, window_bounds = array<i64: 1, 4, 8, 8>}]} {
    %c0 = arith.constant 0 : index
    %c0_0 = arith.constant 0 : index
    %c0_1 = arith.constant 0 : index
    %0 = vector.load %arg1[%c0, %c0_0, %c0_1] : memref<1x8x32xf32, #tpu.memory_space<vmem>>, vector<1x8x32xf32>
    %1 = vector.shape_cast %0 : vector<1x8x32xf32> to vector<8x32xf32>
    %c0_2 = arith.constant 0 : index
    %c0_3 = arith.constant 0 : index
    %c0_4 = arith.constant 0 : index
    %2 = vector.load %arg2[%c0_2, %c0_3, %c0_4] : memref<1x8x32xf32, #tpu.memory_space<vmem>>, vector<1x8x32xf32>
    %3 = vector.shape_cast %2 : vector<1x8x32xf32> to vector<8x32xf32>
    %c0_5 = arith.constant 0 : index
    %c0_6 = arith.constant 0 : index
    %c0_7 = arith.constant 0 : index
    %4 = vector.load %arg3[%c0_5, %c0_6, %c0_7] : memref<1x8x8xi32, #tpu.memory_space<vmem>>, vector<1x8x8xi32>
    %5 = vector.shape_cast %4 : vector<1x8x8xi32> to vector<8x8xi32>
    %c0_8 = arith.constant 0 : index
    %c0_9 = arith.constant 0 : index
    %c0_10 = arith.constant 0 : index
    %6 = vector.load %arg4[%c0_8, %c0_9, %c0_10] : memref<1x1x8xi32, #tpu.memory_space<vmem>>, vector<1x1x8xi32>
    %7 = vector.shape_cast %6 : vector<1x1x8xi32> to vector<1x8xi32>
    %c0_11 = arith.constant 0 : index
    %c0_12 = arith.constant 0 : index
    %8 = vector.load %arg5[%c0_11, %c0_12] : memref<32x96xf32, #tpu.memory_space<vmem>>, vector<32x96xf32>
    %cst = arith.constant dense<0.000000e+00> : vector<8x96xf32>
    %9 = tpu.matmul %1, %8, %cst {dimension_numbers = #tpu.dot_dimension_numbers<[1], [0], [0], [1], [0, 0, 1, 1], [], []>} : vector<8x32xf32>, vector<32x96xf32>, vector<8x96xf32> -> vector<8x96xf32>
    %c0_13 = arith.constant 0 : index
    %c0_14 = arith.constant 0 : index
    %10 = vector.load %arg6[%c0_13, %c0_14] : memref<1x96xf32, #tpu.memory_space<vmem>>, vector<1x96xf32>
    %11 = vector.broadcast %10 : vector<1x96xf32> to vector<8x96xf32>
    %12 = arith.addf %9, %11 : vector<8x96xf32>
    %13 = vector.extract_strided_slice %12 {offsets = [0, 0], sizes = [8, 32], strides = [1, 1]} : vector<8x96xf32> to vector<8x32xf32>
    %cst_15 = arith.constant 0.353553385 : f32
    %14 = vector.broadcast %cst_15 : f32 to vector<8x32xf32>
    %15 = arith.mulf %13, %14 : vector<8x32xf32>
    %16 = vector.extract_strided_slice %12 {offsets = [0, 32], sizes = [8, 32], strides = [1, 1]} : vector<8x96xf32> to vector<8x32xf32>
    %17 = vector.extract_strided_slice %12 {offsets = [0, 64], sizes = [8, 32], strides = [1, 1]} : vector<8x96xf32> to vector<8x32xf32>
    %18 = vector.shape_cast %15 : vector<8x32xf32> to vector<8x4x8xf32>
    %19 = tpu.transpose %18, [1, 0, 2] : vector<8x4x8xf32> -> vector<4x8x8xf32>
    %20 = vector.shape_cast %16 : vector<8x32xf32> to vector<8x4x8xf32>
    %21 = tpu.transpose %20, [1, 0, 2] : vector<8x4x8xf32> -> vector<4x8x8xf32>
    %22 = vector.shape_cast %17 : vector<8x32xf32> to vector<8x4x8xf32>
    %23 = tpu.transpose %22, [1, 0, 2] : vector<8x4x8xf32> -> vector<4x8x8xf32>
    "tpu.trace_start"() <{level = 10 : i32, message = "hqd,hkd->hqk"}> : () -> ()
    %cst_16 = arith.constant dense<0.000000e+00> : vector<4x8x8xf32>
    %24 = tpu.matmul %19, %21, %cst_16 {dimension_numbers = #tpu.dot_dimension_numbers<[2], [2], [1], [1], [0, 0, 0, 1, 1, 1], [0], [0]>} : vector<4x8x8xf32>, vector<4x8x8xf32>, vector<4x8x8xf32> -> vector<4x8x8xf32>
    %c0_i32 = arith.constant 0 : i32
    "tpu.trace_stop"() : () -> ()
    %25 = vector.broadcast %c0_i32 : i32 to vector<8x8xi32>
    %26 = arith.cmpi eq, %5, %25 : vector<8x8xi32>
    %cst_17 = arith.constant -1.000000e+10 : f32
    %27 = vector.shape_cast %26 : vector<8x8xi1> to vector<1x8x8xi1>
    %28 = vector.broadcast %27 : vector<1x8x8xi1> to vector<4x8x8xi1>
    %29 = vector.broadcast %cst_17 : f32 to vector<4x8x8xf32>
    %30 = arith.select %28, %29, %24 : vector<4x8x8xi1>, vector<4x8x8xf32>
    %cst_18 = arith.constant dense<0xFF800000> : vector<4x8xf32>
    %31 = vector.multi_reduction <maximumf>, %30, %cst_18 [2] : vector<4x8x8xf32> to vector<4x8xf32>
    %32 = vector.shape_cast %31 : vector<4x8xf32> to vector<4x8x1xf32>
    %33 = vector.broadcast %32 : vector<4x8x1xf32> to vector<4x8x8xf32>
    %34 = arith.subf %30, %33 : vector<4x8x8xf32>
    %35 = math.exp %34 : vector<4x8x8xf32>
    %cst_19 = arith.constant dense<0.000000e+00> : vector<4x8xf32>
    %36 = vector.multi_reduction <add>, %35, %cst_19 [2] : vector<4x8x8xf32> to vector<4x8xf32>
    %37 = vector.shape_cast %36 : vector<4x8xf32> to vector<4x8x1xf32>
    %38 = tpu.reciprocal %37 {approx = true} : vector<4x8x1xf32> -> vector<4x8x1xf32>
    %39 = vector.broadcast %38 : vector<4x8x1xf32> to vector<4x8x8xf32>
    %40 = arith.mulf %35, %39 : vector<4x8x8xf32>
    "tpu.trace_start"() <{level = 10 : i32, message = "hqk,hkd->hqd"}> : () -> ()
    %cst_20 = arith.constant dense<0.000000e+00> : vector<4x8x8xf32>
    %41 = tpu.matmul %40, %23, %cst_20 {dimension_numbers = #tpu.dot_dimension_numbers<[2], [1], [1], [2], [0, 0, 0, 1, 1, 2], [0], [0]>} : vector<4x8x8xf32>, vector<4x8x8xf32>, vector<4x8x8xf32> -> vector<4x8x8xf32>
    "tpu.trace_stop"() : () -> ()
    %42 = tpu.transpose %41, [1, 0, 2] : vector<4x8x8xf32> -> vector<8x4x8xf32>
    %43 = vector.shape_cast %42 : vector<8x4x8xf32> to vector<8x32xf32>
    %c0_21 = arith.constant 0 : index
    %c0_22 = arith.constant 0 : index
    %44 = vector.load %arg7[%c0_21, %c0_22] : memref<32x32xf32, #tpu.memory_space<vmem>>, vector<32x32xf32>
    %cst_23 = arith.constant dense<0.000000e+00> : vector<8x32xf32>
    %45 = tpu.matmul %43, %44, %cst_23 {dimension_numbers = #tpu.dot_dimension_numbers<[1], [0], [0], [1], [0, 0, 1, 1], [], []>} : vector<8x32xf32>, vector<32x32xf32>, vector<8x32xf32> -> vector<8x32xf32>
    %c0_24 = arith.constant 0 : index
    %c0_25 = arith.constant 0 : index
    %46 = vector.load %arg8[%c0_24, %c0_25] : memref<1x32xf32, #tpu.memory_space<vmem>>, vector<1x32xf32>
    %47 = vector.broadcast %46 : vector<1x32xf32> to vector<8x32xf32>
    %48 = arith.addf %45, %47 : vector<8x32xf32>
    %49 = arith.addf %1, %48 : vector<8x32xf32>
    %cst_26 = arith.constant dense<0.000000e+00> : vector<8xf32>
    %50 = vector.multi_reduction <add>, %49, %cst_26 [1] : vector<8x32xf32> to vector<8xf32>
    %51 = vector.shape_cast %50 : vector<8xf32> to vector<8x1xf32>
    %cst_27 = arith.constant 3.200000e+01 : f32
    %52 = vector.broadcast %cst_27 : f32 to vector<8x1xf32>
    %53 = arith.divf %51, %52 : vector<8x1xf32>
    %54 = vector.broadcast %53 : vector<8x1xf32> to vector<8x32xf32>
    %55 = arith.subf %49, %54 : vector<8x32xf32>
    %56 = arith.mulf %55, %55 : vector<8x32xf32>
    %cst_28 = arith.constant dense<0.000000e+00> : vector<8xf32>
    %57 = vector.multi_reduction <add>, %56, %cst_28 [1] : vector<8x32xf32> to vector<8xf32>
    %58 = vector.shape_cast %57 : vector<8xf32> to vector<8x1xf32>
    %cst_29 = arith.constant 3.200000e+01 : f32
    %59 = vector.broadcast %cst_29 : f32 to vector<8x1xf32>
    %60 = arith.divf %58, %59 : vector<8x1xf32>
    %61 = vector.broadcast %53 : vector<8x1xf32> to vector<8x32xf32>
    %62 = arith.subf %49, %61 : vector<8x32xf32>
    %cst_30 = arith.constant 9.99999974E-6 : f32
    %63 = vector.broadcast %cst_30 : f32 to vector<8x1xf32>
    %64 = arith.addf %60, %63 : vector<8x1xf32>
    %65 = math.rsqrt %64 : vector<8x1xf32>
    %66 = vector.broadcast %65 : vector<8x1xf32> to vector<8x32xf32>
    %67 = arith.mulf %62, %66 : vector<8x32xf32>
    %c0_31 = arith.constant 0 : index
    %c0_32 = arith.constant 0 : index
    %68 = vector.load %arg15[%c0_31, %c0_32] : memref<1x32xf32, #tpu.memory_space<vmem>>, vector<1x32xf32>
    %69 = vector.broadcast %68 : vector<1x32xf32> to vector<8x32xf32>
    %70 = arith.mulf %67, %69 : vector<8x32xf32>
    %c0_33 = arith.constant 0 : index
    %c0_34 = arith.constant 0 : index
    %71 = vector.load %arg16[%c0_33, %c0_34] : memref<1x32xf32, #tpu.memory_space<vmem>>, vector<1x32xf32>
    %72 = vector.broadcast %71 : vector<1x32xf32> to vector<8x32xf32>
    %73 = arith.addf %70, %72 : vector<8x32xf32>
    %c0_35 = arith.constant 0 : index
    %c0_36 = arith.constant 0 : index
    %74 = vector.load %arg9[%c0_35, %c0_36] : memref<32x32xf32, #tpu.memory_space<vmem>>, vector<32x32xf32>
    %cst_37 = arith.constant dense<0.000000e+00> : vector<8x32xf32>
    %75 = tpu.matmul %73, %74, %cst_37 {dimension_numbers = #tpu.dot_dimension_numbers<[1], [0], [0], [1], [0, 0, 1, 1], [], []>} : vector<8x32xf32>, vector<32x32xf32>, vector<8x32xf32> -> vector<8x32xf32>
    %c0_38 = arith.constant 0 : index
    %c0_39 = arith.constant 0 : index
    %76 = vector.load %arg10[%c0_38, %c0_39] : memref<1x32xf32, #tpu.memory_space<vmem>>, vector<1x32xf32>
    %77 = vector.broadcast %76 : vector<1x32xf32> to vector<8x32xf32>
    %78 = arith.addf %75, %77 : vector<8x32xf32>
    %cst_40 = arith.constant 0.353553385 : f32
    %79 = vector.broadcast %cst_40 : f32 to vector<8x32xf32>
    %80 = arith.mulf %78, %79 : vector<8x32xf32>
    %c0_41 = arith.constant 0 : index
    %c0_42 = arith.constant 0 : index
    %81 = vector.load %arg11[%c0_41, %c0_42] : memref<32x64xf32, #tpu.memory_space<vmem>>, vector<32x64xf32>
    %cst_43 = arith.constant dense<0.000000e+00> : vector<8x64xf32>
    %82 = tpu.matmul %3, %81, %cst_43 {dimension_numbers = #tpu.dot_dimension_numbers<[1], [0], [0], [1], [0, 0, 1, 1], [], []>} : vector<8x32xf32>, vector<32x64xf32>, vector<8x64xf32> -> vector<8x64xf32>
    %c0_44 = arith.constant 0 : index
    %c0_45 = arith.constant 0 : index
    %83 = vector.load %arg12[%c0_44, %c0_45] : memref<1x64xf32, #tpu.memory_space<vmem>>, vector<1x64xf32>
    %84 = vector.broadcast %83 : vector<1x64xf32> to vector<8x64xf32>
    %85 = arith.addf %82, %84 : vector<8x64xf32>
    %86 = vector.extract_strided_slice %85 {offsets = [0, 0], sizes = [8, 32], strides = [1, 1]} : vector<8x64xf32> to vector<8x32xf32>
    %87 = vector.extract_strided_slice %85 {offsets = [0, 32], sizes = [8, 32], strides = [1, 1]} : vector<8x64xf32> to vector<8x32xf32>
    %88 = vector.shape_cast %80 : vector<8x32xf32> to vector<8x4x8xf32>
    %89 = tpu.transpose %88, [1, 0, 2] : vector<8x4x8xf32> -> vector<4x8x8xf32>
    %90 = vector.shape_cast %86 : vector<8x32xf32> to vector<8x4x8xf32>
    %91 = tpu.transpose %90, [1, 0, 2] : vector<8x4x8xf32> -> vector<4x8x8xf32>
    %92 = vector.shape_cast %87 : vector<8x32xf32> to vector<8x4x8xf32>
    %93 = tpu.transpose %92, [1, 0, 2] : vector<8x4x8xf32> -> vector<4x8x8xf32>
    "tpu.trace_start"() <{level = 10 : i32, message = "hqd,hkd->hqk"}> : () -> ()
    %cst_46 = arith.constant dense<0.000000e+00> : vector<4x8x8xf32>
    %94 = tpu.matmul %89, %91, %cst_46 {dimension_numbers = #tpu.dot_dimension_numbers<[2], [2], [1], [1], [0, 0, 0, 1, 1, 1], [0], [0]>} : vector<4x8x8xf32>, vector<4x8x8xf32>, vector<4x8x8xf32> -> vector<4x8x8xf32>
    %c0_i32_47 = arith.constant 0 : i32
    "tpu.trace_stop"() : () -> ()
    %95 = vector.broadcast %c0_i32_47 : i32 to vector<1x8xi32>
    %96 = arith.cmpi eq, %7, %95 : vector<1x8xi32>
    %cst_48 = arith.constant -1.000000e+10 : f32
    %97 = vector.shape_cast %96 : vector<1x8xi1> to vector<1x1x8xi1>
    %98 = vector.broadcast %97 : vector<1x1x8xi1> to vector<4x8x8xi1>
    %99 = vector.broadcast %cst_48 : f32 to vector<4x8x8xf32>
    %100 = arith.select %98, %99, %94 : vector<4x8x8xi1>, vector<4x8x8xf32>
    %cst_49 = arith.constant dense<0xFF800000> : vector<4x8xf32>
    %101 = vector.multi_reduction <maximumf>, %100, %cst_49 [2] : vector<4x8x8xf32> to vector<4x8xf32>
    %102 = vector.shape_cast %101 : vector<4x8xf32> to vector<4x8x1xf32>
    %103 = vector.broadcast %102 : vector<4x8x1xf32> to vector<4x8x8xf32>
    %104 = arith.subf %100, %103 : vector<4x8x8xf32>
    %105 = math.exp %104 : vector<4x8x8xf32>
    %cst_50 = arith.constant dense<0.000000e+00> : vector<4x8xf32>
    %106 = vector.multi_reduction <add>, %105, %cst_50 [2] : vector<4x8x8xf32> to vector<4x8xf32>
    %107 = vector.shape_cast %106 : vector<4x8xf32> to vector<4x8x1xf32>
    %108 = tpu.reciprocal %107 {approx = true} : vector<4x8x1xf32> -> vector<4x8x1xf32>
    %109 = vector.broadcast %108 : vector<4x8x1xf32> to vector<4x8x8xf32>
    %110 = arith.mulf %105, %109 : vector<4x8x8xf32>
    "tpu.trace_start"() <{level = 10 : i32, message = "hqk,hkd->hqd"}> : () -> ()
    %cst_51 = arith.constant dense<0.000000e+00> : vector<4x8x8xf32>
    %111 = tpu.matmul %110, %93, %cst_51 {dimension_numbers = #tpu.dot_dimension_numbers<[2], [1], [1], [2], [0, 0, 0, 1, 1, 2], [0], [0]>} : vector<4x8x8xf32>, vector<4x8x8xf32>, vector<4x8x8xf32> -> vector<4x8x8xf32>
    "tpu.trace_stop"() : () -> ()
    %112 = tpu.transpose %111, [1, 0, 2] : vector<4x8x8xf32> -> vector<8x4x8xf32>
    %113 = vector.shape_cast %112 : vector<8x4x8xf32> to vector<8x32xf32>
    %c0_52 = arith.constant 0 : index
    %c0_53 = arith.constant 0 : index
    %114 = vector.load %arg13[%c0_52, %c0_53] : memref<32x32xf32, #tpu.memory_space<vmem>>, vector<32x32xf32>
    %cst_54 = arith.constant dense<0.000000e+00> : vector<8x32xf32>
    %115 = tpu.matmul %113, %114, %cst_54 {dimension_numbers = #tpu.dot_dimension_numbers<[1], [0], [0], [1], [0, 0, 1, 1], [], []>} : vector<8x32xf32>, vector<32x32xf32>, vector<8x32xf32> -> vector<8x32xf32>
    %c0_55 = arith.constant 0 : index
    %c0_56 = arith.constant 0 : index
    %116 = vector.load %arg14[%c0_55, %c0_56] : memref<1x32xf32, #tpu.memory_space<vmem>>, vector<1x32xf32>
    %117 = vector.broadcast %116 : vector<1x32xf32> to vector<8x32xf32>
    %118 = arith.addf %115, %117 : vector<8x32xf32>
    %c0_57 = arith.constant 0 : index
    %c0_58 = arith.constant 0 : index
    %c0_59 = arith.constant 0 : index
    %c0_60 = arith.constant 0 : index
    %119 = vector.load %arg26[%c0_57, %c0_58, %c0_59, %c0_60] : memref<1x4x8x8xf32, #tpu.memory_space<vmem>>, vector<1x4x8x8xf32>
    %120 = vector.shape_cast %119 : vector<1x4x8x8xf32> to vector<4x8x8xf32>
    %121 = vector.shape_cast %110 : vector<4x8x8xf32> to vector<1x4x8x8xf32>
    tpu.vector_store %arg26[%c0_57, %c0_58, %c0_59, %c0_60], %121 {strides = array<i32>} : memref<1x4x8x8xf32, #tpu.memory_space<vmem>>, vector<1x4x8x8xf32>,
    %122 = arith.addf %73, %118 : vector<8x32xf32>
    %cst_61 = arith.constant dense<0.000000e+00> : vector<8xf32>
    %123 = vector.multi_reduction <add>, %122, %cst_61 [1] : vector<8x32xf32> to vector<8xf32>
    %124 = vector.shape_cast %123 : vector<8xf32> to vector<8x1xf32>
    %cst_62 = arith.constant 3.200000e+01 : f32
    %125 = vector.broadcast %cst_62 : f32 to vector<8x1xf32>
    %126 = arith.divf %124, %125 : vector<8x1xf32>
    %127 = vector.broadcast %126 : vector<8x1xf32> to vector<8x32xf32>
    %128 = arith.subf %122, %127 : vector<8x32xf32>
    %129 = arith.mulf %128, %128 : vector<8x32xf32>
    %cst_63 = arith.constant dense<0.000000e+00> : vector<8xf32>
    %130 = vector.multi_reduction <add>, %129, %cst_63 [1] : vector<8x32xf32> to vector<8xf32>
    %131 = vector.shape_cast %130 : vector<8xf32> to vector<8x1xf32>
    %cst_64 = arith.constant 3.200000e+01 : f32
    %132 = vector.broadcast %cst_64 : f32 to vector<8x1xf32>
    %133 = arith.divf %131, %132 : vector<8x1xf32>
    %134 = vector.broadcast %126 : vector<8x1xf32> to vector<8x32xf32>
    %135 = arith.subf %122, %134 : vector<8x32xf32>
    %cst_65 = arith.constant 9.99999974E-6 : f32
    %136 = vector.broadcast %cst_65 : f32 to vector<8x1xf32>
    %137 = arith.addf %133, %136 : vector<8x1xf32>
    %138 = math.rsqrt %137 : vector<8x1xf32>
    %139 = vector.broadcast %138 : vector<8x1xf32> to vector<8x32xf32>
    %140 = arith.mulf %135, %139 : vector<8x32xf32>
    %c0_66 = arith.constant 0 : index
    %c0_67 = arith.constant 0 : index
    %141 = vector.load %arg17[%c0_66, %c0_67] : memref<1x32xf32, #tpu.memory_space<vmem>>, vector<1x32xf32>
    %142 = vector.broadcast %141 : vector<1x32xf32> to vector<8x32xf32>
    %143 = arith.mulf %140, %142 : vector<8x32xf32>
    %c0_68 = arith.constant 0 : index
    %c0_69 = arith.constant 0 : index
    %144 = vector.load %arg18[%c0_68, %c0_69] : memref<1x32xf32, #tpu.memory_space<vmem>>, vector<1x32xf32>
    %145 = vector.broadcast %144 : vector<1x32xf32> to vector<8x32xf32>
    %146 = arith.addf %143, %145 : vector<8x32xf32>
    %c0_70 = arith.constant 0 : index
    %c0_71 = arith.constant 0 : index
    %147 = vector.load %arg21[%c0_70, %c0_71] : memref<32x64xf32, #tpu.memory_space<vmem>>, vector<32x64xf32>
    %cst_72 = arith.constant dense<0.000000e+00> : vector<8x64xf32>
    %148 = tpu.matmul %146, %147, %cst_72 {dimension_numbers = #tpu.dot_dimension_numbers<[1], [0], [0], [1], [0, 0, 1, 1], [], []>} : vector<8x32xf32>, vector<32x64xf32>, vector<8x64xf32> -> vector<8x64xf32>
    %c0_73 = arith.constant 0 : index
    %c0_74 = arith.constant 0 : index
    %149 = vector.load %arg22[%c0_73, %c0_74] : memref<1x64xf32, #tpu.memory_space<vmem>>, vector<1x64xf32>
    %150 = vector.broadcast %149 : vector<1x64xf32> to vector<8x64xf32>
    %151 = arith.addf %148, %150 : vector<8x64xf32>
    %cst_75 = arith.constant 0.000000e+00 : f32
    %152 = vector.broadcast %cst_75 : f32 to vector<8x64xf32>
    %153 = arith.maximumf %151, %152 : vector<8x64xf32>
    %c0_76 = arith.constant 0 : index
    %c0_77 = arith.constant 0 : index
    %154 = vector.load %arg23[%c0_76, %c0_77] : memref<64x32xf32, #tpu.memory_space<vmem>>, vector<64x32xf32>
    %cst_78 = arith.constant dense<0.000000e+00> : vector<8x32xf32>
    %155 = tpu.matmul %153, %154, %cst_78 {dimension_numbers = #tpu.dot_dimension_numbers<[1], [0], [0], [1], [0, 0, 1, 1], [], []>} : vector<8x64xf32>, vector<64x32xf32>, vector<8x32xf32> -> vector<8x32xf32>
    %c0_79 = arith.constant 0 : index
    %c0_80 = arith.constant 0 : index
    %156 = vector.load %arg24[%c0_79, %c0_80] : memref<1x32xf32, #tpu.memory_space<vmem>>, vector<1x32xf32>
    %157 = vector.broadcast %156 : vector<1x32xf32> to vector<8x32xf32>
    %158 = arith.addf %155, %157 : vector<8x32xf32>
    %159 = arith.addf %146, %158 : vector<8x32xf32>
    %cst_81 = arith.constant dense<0.000000e+00> : vector<8xf32>
    %160 = vector.multi_reduction <add>, %159, %cst_81 [1] : vector<8x32xf32> to vector<8xf32>
    %161 = vector.shape_cast %160 : vector<8xf32> to vector<8x1xf32>
    %cst_82 = arith.constant 3.200000e+01 : f32
    %162 = vector.broadcast %cst_82 : f32 to vector<8x1xf32>
    %163 = arith.divf %161, %162 : vector<8x1xf32>
    %164 = vector.broadcast %163 : vector<8x1xf32> to vector<8x32xf32>
    %165 = arith.subf %159, %164 : vector<8x32xf32>
    %166 = arith.mulf %165, %165 : vector<8x32xf32>
    %cst_83 = arith.constant dense<0.000000e+00> : vector<8xf32>
    %167 = vector.multi_reduction <add>, %166, %cst_83 [1] : vector<8x32xf32> to vector<8xf32>
    %168 = vector.shape_cast %167 : vector<8xf32> to vector<8x1xf32>
    %cst_84 = arith.constant 3.200000e+01 : f32
    %169 = vector.broadcast %cst_84 : f32 to vector<8x1xf32>
    %170 = arith.divf %168, %169 : vector<8x1xf32>
    %171 = vector.broadcast %163 : vector<8x1xf32> to vector<8x32xf32>
    %172 = arith.subf %159, %171 : vector<8x32xf32>
    %cst_85 = arith.constant 9.99999974E-6 : f32
    %173 = vector.broadcast %cst_85 : f32 to vector<8x1xf32>
    %174 = arith.addf %170, %173 : vector<8x1xf32>
    %175 = math.rsqrt %174 : vector<8x1xf32>
    %176 = vector.broadcast %175 : vector<8x1xf32> to vector<8x32xf32>
    %177 = arith.mulf %172, %176 : vector<8x32xf32>
    %c0_86 = arith.constant 0 : index
    %c0_87 = arith.constant 0 : index
    %178 = vector.load %arg19[%c0_86, %c0_87] : memref<1x32xf32, #tpu.memory_space<vmem>>, vector<1x32xf32>
    %179 = vector.broadcast %178 : vector<1x32xf32> to vector<8x32xf32>
    %180 = arith.mulf %177, %179 : vector<8x32xf32>
    %c0_88 = arith.constant 0 : index
    %c0_89 = arith.constant 0 : index
    %181 = vector.load %arg20[%c0_88, %c0_89] : memref<1x32xf32, #tpu.memory_space<vmem>>, vector<1x32xf32>
    %182 = vector.broadcast %181 : vector<1x32xf32> to vector<8x32xf32>
    %183 = arith.addf %180, %182 : vector<8x32xf32>
    %c0_90 = arith.constant 0 : index
    %c0_91 = arith.constant 0 : index
    %c0_92 = arith.constant 0 : index
    %184 = vector.load %arg25[%c0_90, %c0_91, %c0_92] : memref<1x8x32xf32, #tpu.memory_space<vmem>>, vector<1x8x32xf32>
    %185 = vector.shape_cast %184 : vector<1x8x32xf32> to vector<8x32xf32>
    %186 = vector.shape_cast %183 : vector<8x32xf32> to vector<1x8x32xf32>
    tpu.vector_store %arg25[%c0_90, %c0_91, %c0_92], %186 {strides = array<i32>} : memref<1x8x32xf32, #tpu.memory_space<vmem>>, vector<1x8x32xf32>,
    return
  }
  func.func @transform_0(%arg0: i32) -> (i32, i32, i32) {
    %c0_i32 = arith.constant 0 : i32
    %c0_i32_0 = arith.constant 0 : i32
    %c0_i32_1 = arith.constant 0 : i32
    return %arg0, %c0_i32, %c0_i32_0 : i32, i32, i32
  }
  func.func @transform_1(%arg0: i32) -> (i32, i32, i32) {
    %c0_i32 = arith.constant 0 : i32
    %c0_i32_0 = arith.constant 0 : i32
    %c0_i32_1 = arith.constant 0 : i32
    return %arg0, %c0_i32, %c0_i32_0 : i32, i32, i32
  }
  func.func @transform_2(%arg0: i32) -> (i32, i32, i32) {
    %c0_i32 = arith.constant 0 : i32
    %c0_i32_0 = arith.constant 0 : i32
    %c0_i32_1 = arith.constant 0 : i32
    return %arg0, %c0_i32, %c0_i32_0 : i32, i32, i32
  }
  func.func @transform_3(%arg0: i32) -> (i32, i32, i32) {
    %c0_i32 = arith.constant 0 : i32
    %c0_i32_0 = arith.constant 0 : i32
    %c0_i32_1 = arith.constant 0 : i32
    return %arg0, %c0_i32, %c0_i32_0 : i32, i32, i32
  }
  func.func @transform_4(%arg0: i32) -> (i32, i32) {
    %c0_i32 = arith.constant 0 : i32
    %c0_i32_0 = arith.constant 0 : i32
    %c0_i32_1 = arith.constant 0 : i32
    return %c0_i32, %c0_i32_0 : i32, i32
  }
  func.func @transform_5(%arg0: i32) -> (i32, i32) {
    %c0_i32 = arith.constant 0 : i32
    %c0_i32_0 = arith.constant 0 : i32
    %c0_i32_1 = arith.constant 0 : i32
    return %c0_i32, %c0_i32_0 : i32, i32
  }
  func.func @transform_6(%arg0: i32) -> (i32, i32) {
    %c0_i32 = arith.constant 0 : i32
    %c0_i32_0 = arith.constant 0 : i32
    %c0_i32_1 = arith.constant 0 : i32
    return %c0_i32, %c0_i32_0 : i32, i32
  }
  func.func @transform_7(%arg0: i32) -> (i32, i32) {
    %c0_i32 = arith.constant 0 : i32
    %c0_i32_0 = arith.constant 0 : i32
    %c0_i32_1 = arith.constant 0 : i32
    return %c0_i32, %c0_i32_0 : i32, i32
  }
  func.func @transform_8(%arg0: i32) -> (i32, i32) {
    %c0_i32 = arith.constant 0 : i32
    %c0_i32_0 = arith.constant 0 : i32
    %c0_i32_1 = arith.constant 0 : i32
    return %c0_i32, %c0_i32_0 : i32, i32
  }
  func.func @transform_9(%arg0: i32) -> (i32, i32) {
    %c0_i32 = arith.constant 0 : i32
    %c0_i32_0 = arith.constant 0 : i32
    %c0_i32_1 = arith.constant 0 : i32
    return %c0_i32, %c0_i32_0 : i32, i32
  }
  func.func @transform_10(%arg0: i32) -> (i32, i32) {
    %c0_i32 = arith.constant 0 : i32
    %c0_i32_0 = arith.constant 0 : i32
    %c0_i32_1 = arith.constant 0 : i32
    return %c0_i32, %c0_i32_0 : i32, i32
  }
  func.func @transform_11(%arg0: i32) -> (i32, i32) {
    %c0_i32 = arith.constant 0 : i32
    %c0_i32_0 = arith.constant 0 : i32
    %c0_i32_1 = arith.constant 0 : i32
    return %c0_i32, %c0_i32_0 : i32, i32
  }
  func.func @transform_12(%arg0: i32) -> (i32, i32) {
    %c0_i32 = arith.constant 0 : i32
    %c0_i32_0 = arith.constant 0 : i32
    %c0_i32_1 = arith.constant 0 : i32
    return %c0_i32, %c0_i32_0 : i32, i32
  }
  func.func @transform_13(%arg0: i32) -> (i32, i32) {
    %c0_i32 = arith.constant 0 : i32
    %c0_i32_0 = arith.constant 0 : i32
    %c0_i32_1 = arith.constant 0 : i32
    return %c0_i32, %c0_i32_0 : i32, i32
  }
  func.func @transform_14(%arg0: i32) -> (i32, i32) {
    %c0_i32 = arith.constant 0 : i32
    %c0_i32_0 = arith.constant 0 : i32
    %c0_i32_1 = arith.constant 0 : i32
    return %c0_i32, %c0_i32_0 : i32, i32
  }
  func.func @transform_15(%arg0: i32) -> (i32, i32) {
    %c0_i32 = arith.constant 0 : i32
    %c0_i32_0 = arith.constant 0 : i32
    %c0_i32_1 = arith.constant 0 : i32
    return %c0_i32, %c0_i32_0 : i32, i32
  }
  func.func @transform_16(%arg0: i32) -> (i32, i32) {
    %c0_i32 = arith.constant 0 : i32
    %c0_i32_0 = arith.constant 0 : i32
    %c0_i32_1 = arith.constant 0 : i32
    return %c0_i32, %c0_i32_0 : i32, i32
  }
  func.func @transform_17(%arg0: i32) -> (i32, i32) {
    %c0_i32 = arith.constant 0 : i32
    %c0_i32_0 = arith.constant 0 : i32
    %c0_i32_1 = arith.constant 0 : i32
    return %c0_i32, %c0_i32_0 : i32, i32
  }
  func.func @transform_18(%arg0: i32) -> (i32, i32) {
    %c0_i32 = arith.constant 0 : i32
    %c0_i32_0 = arith.constant 0 : i32
    %c0_i32_1 = arith.constant 0 : i32
    return %c0_i32, %c0_i32_0 : i32, i32
  }
  func.func @transform_19(%arg0: i32) -> (i32, i32) {
    %c0_i32 = arith.constant 0 : i32
    %c0_i32_0 = arith.constant 0 : i32
    %c0_i32_1 = arith.constant 0 : i32
    return %c0_i32, %c0_i32_0 : i32, i32
  }
  func.func @transform_20(%arg0: i32) -> (i32, i32) {
    %c0_i32 = arith.constant 0 : i32
    %c0_i32_0 = arith.constant 0 : i32
    %c0_i32_1 = arith.constant 0 : i32
    return %c0_i32, %c0_i32_0 : i32, i32
  }
  func.func @transform_21(%arg0: i32) -> (i32, i32) {
    %c0_i32 = arith.constant 0 : i32
    %c0_i32_0 = arith.constant 0 : i32
    %c0_i32_1 = arith.constant 0 : i32
    return %c0_i32, %c0_i32_0 : i32, i32
  }
  func.func @transform_22(%arg0: i32) -> (i32, i32) {
    %c0_i32 = arith.constant 0 : i32
    %c0_i32_0 = arith.constant 0 : i32
    %c0_i32_1 = arith.constant 0 : i32
    return %c0_i32, %c0_i32_0 : i32, i32
  }
  func.func @transform_23(%arg0: i32) -> (i32, i32) {
    %c0_i32 = arith.constant 0 : i32
    %c0_i32_0 = arith.constant 0 : i32
    %c0_i32_1 = arith.constant 0 : i32
    return %c0_i32, %c0_i32_0 : i32, i32
  }
  func.func @transform_24(%arg0: i32) -> (i32, i32, i32) {
    %c0_i32 = arith.constant 0 : i32
    %c0_i32_0 = arith.constant 0 : i32
    %c0_i32_1 = arith.constant 0 : i32
    return %arg0, %c0_i32, %c0_i32_0 : i32, i32, i32
  }
  func.func @transform_25(%arg0: i32) -> (i32, i32, i32, i32) {
    %c0_i32 = arith.constant 0 : i32
    %c0_i32_0 = arith.constant 0 : i32
    %c0_i32_1 = arith.constant 0 : i32
    %c0_i32_2 = arith.constant 0 : i32
    return %arg0, %c0_i32, %c0_i32_0, %c0_i32_1 : i32, i32, i32, i32
  }
}

</mosaic_0001>

<llo_original>
// kernel: tpu_custom_call.1
$region0: #{tpu_custom_call.1}
  #allocation0 [shape = 'u32[]', space=smem, size = 0x4, offset = 0x4, fixed_abs, tag = 'smem constant byte address 0x4 - core index']
  #allocation1 [shape = 'u32[144,128]{1,0:T(1,128)}', space=vmem, size = 0x12000, scoped, tag = 'internal scratch']
  %s0 = inlined_call_operand.hbm [shape: f32[2,8,32], index: 0, kind: input, shape index: {}]
  %s1 = inlined_call_operand.hbm [shape: f32[2,8,32], index: 1, kind: input, shape index: {}]
  %s2 = inlined_call_operand.hbm [shape: s32[2,8,8], index: 2, kind: input, shape index: {}]
  %s3 = inlined_call_operand.hbm [shape: s32[2,1,8], index: 3, kind: input, shape index: {}]
  %s4 = inlined_call_operand.vmem [shape: f32[32,96], index: 4, kind: input, shape index: {}]
  %s5 = inlined_call_operand.hbm [shape: f32[1,96], index: 5, kind: input, shape index: {}]
  %s6 = inlined_call_operand.vmem [shape: f32[32,32], index: 6, kind: input, shape index: {}]
  %s7 = inlined_call_operand.hbm [shape: f32[1,32], index: 7, kind: input, shape index: {}]
  %s8 = inlined_call_operand.vmem [shape: f32[32,32], index: 8, kind: input, shape index: {}]
  %s9 = inlined_call_operand.hbm [shape: f32[1,32], index: 9, kind: input, shape index: {}]
  %s10 = inlined_call_operand.vmem [shape: f32[32,64], index: 10, kind: input, shape index: {}]
  %s11 = inlined_call_operand.hbm [shape: f32[1,64], index: 11, kind: input, shape index: {}]
  %s12 = inlined_call_operand.hbm [shape: f32[32,32], index: 12, kind: input, shape index: {}]
  %s13 = inlined_call_operand.hbm [shape: f32[1,32], index: 13, kind: input, shape index: {}]
  %s14 = inlined_call_operand.hbm [shape: f32[1,32], index: 14, kind: input, shape index: {}]
  %s15 = inlined_call_operand.hbm [shape: f32[1,32], index: 15, kind: input, shape index: {}]
  %s16 = inlined_call_operand.hbm [shape: f32[1,32], index: 16, kind: input, shape index: {}]
  %s17 = inlined_call_operand.hbm [shape: f32[1,32], index: 17, kind: input, shape index: {}]
  %s18 = inlined_call_operand.vmem [shape: f32[1,32], index: 18, kind: input, shape index: {}]
  %s19 = inlined_call_operand.vmem [shape: f32[1,32], index: 19, kind: input, shape index: {}]
  %s20 = inlined_call_operand.hbm [shape: f32[32,64], index: 20, kind: input, shape index: {}]
  %s21 = inlined_call_operand.vmem [shape: f32[1,64], index: 21, kind: input, shape index: {}]
  %s22 = inlined_call_operand.vmem [shape: f32[64,32], index: 22, kind: input, shape index: {}]
  %s23 = inlined_call_operand.vmem [shape: f32[1,32], index: 23, kind: input, shape index: {}]
  %s24 = inlined_call_operand.hbm [shape: f32[2,8,32], index: 24, kind: output, shape index: {0}]
  %s25 = inlined_call_operand.hbm [shape: f32[2,4,8,8], index: 25, kind: output, shape index: {1}]
  %26 = xla_tuple %s24, %s25
  %s27 = sld [smem:[#allocation0]]
  $region197: #{tpu_custom_call.1} parent=0
    _
  %s29 = ssub.s32 1, %s27
  %s30 = scalar_select 0, %s29, %s27
  $region1: #{tpu_custom_call.1} parent=0
    #allocation2 [shape = 'u8[8192]{0}', space=vmem, size = 0x2000, scoped, tag = 'input window, operand 0']
    #allocation3 [shape = 's32[2]{0}', space=sflag, size = 0x8, scoped, tag = 'scoped memory for tpu_custom_call.1']
    #allocation4 [shape = 's32[2]{0}', space=sflag, size = 0x8, scoped, tag = 'scoped memory for tpu_custom_call.1']
    #allocation5 [shape = 'u8[8192]{0}', space=vmem, size = 0x2000, scoped, tag = 'input window, operand 1']
    #allocation6 [shape = 's32[2]{0}', space=sflag, size = 0x8, scoped, tag = 'scoped memory for tpu_custom_call.1']
    #allocation7 [shape = 'u8[8192]{0}', space=vmem, size = 0x2000, scoped, tag = 'input window, operand 2']
    #allocation8 [shape = 'u8[1024]{0}', space=vmem, size = 0x400, scoped, tag = 'input window, operand 3']
    #allocation9 [shape = 's32[2]{0}', space=sflag, size = 0x8, scoped, tag = 'scoped memory for tpu_custom_call.1']
    #allocation10 [shape = 'u8[512]{0}', space=vmem, size = 0x400, scoped, tag = 'input window, operand 5, single buffered']
    #allocation11 [shape = 'u8[512]{0}', space=vmem, size = 0x400, scoped, tag = 'input window, operand 7, single buffered']
    #allocation12 [shape = 's32[1]{0}', space=sflag, size = 0x4, scoped, tag = 'scoped memory for tpu_custom_call.1']
    #allocation13 [shape = 'u8[512]{0}', space=vmem, size = 0x400, scoped, tag = 'input window, operand 9, single buffered']
    #allocation14 [shape = 'u8[512]{0}', space=vmem, size = 0x400, scoped, tag = 'input window, operand 11, single buffered']
    #allocation15 [shape = 's32[1]{0}', space=sflag, size = 0x4, scoped, tag = 'scoped memory for tpu_custom_call.1']
    #allocation16 [shape = 'u8[16384]{0}', space=vmem, size = 0x4000, scoped, tag = 'input window, operand 12, single buffered']
    #allocation17 [shape = 'u8[512]{0}', space=vmem, size = 0x400, scoped, tag = 'input window, operand 13, single buffered']
    #allocation18 [shape = 's32[1]{0}', space=sflag, size = 0x4, scoped, tag = 'scoped memory for tpu_custom_call.1']
    #allocation19 [shape = 'u8[512]{0}', space=vmem, size = 0x400, scoped, tag = 'input window, operand 14, single buffered']
    #allocation20 [shape = 'u8[512]{0}', space=vmem, size = 0x400, scoped, tag = 'input window, operand 15, single buffered']
    #allocation21 [shape = 's32[1]{0}', space=sflag, size = 0x4, scoped, tag = 'scoped memory for tpu_custom_call.1']
    #allocation22 [shape = 'u8[512]{0}', space=vmem, size = 0x400, scoped, tag = 'input window, operand 16, single buffered']
    #allocation23 [shape = 'u8[512]{0}', space=vmem, size = 0x400, scoped, tag = 'input window, operand 17, single buffered']
    #allocation24 [shape = 's32[1]{0}', space=sflag, size = 0x4, scoped, tag = 'scoped memory for tpu_custom_call.1']
    #allocation25 [shape = 'u8[16384]{0}', space=vmem, size = 0x4000, scoped, tag = 'input window, operand 20, single buffered']
    #allocation26 [shape = 'u8[8192]{0}', space=vmem, size = 0x2000, scoped, tag = 'output window, operand 0']
    #allocation27 [shape = 'u8[32768]{0}', space=vmem, size = 0x8000, scoped, tag = 'output window, operand 1']
    #allocation28 [shape = 's32[2]{0}', space=sflag, size = 0x8, scoped, tag = 'scoped memory for tpu_custom_call.1']
    %31 = vsyncpa [#allocation3], 0
    %s32 = scalar_lea.sflag [#allocation3], 1
    %33 = vsyncpa %s32, 0
    %34 = vsyncpa [#allocation6], 0
    %s35 = scalar_lea.sflag [#allocation6], 1
    %36 = vsyncpa %s35, 0
    %37 = vsyncpa [#allocation9], 0
    %s38 = scalar_lea.sflag [#allocation9], 1
    %39 = vsyncpa %s38, 0
    %40 = vsyncpa [#allocation12], 0
    %41 = vsyncpa [#allocation15], 0
    %42 = vsyncpa [#allocation18], 0
    %43 = vsyncpa [#allocation21], 0
    %44 = vsyncpa [#allocation24], 0
    %45 = vsyncpa [#allocation4], 0
    %s46 = scalar_lea.sflag [#allocation4], 1
    %47 = vsyncpa %s46, 0
    %48 = vsyncpa [#allocation28], 0
    %s49 = scalar_lea.sflag [#allocation28], 1
    %50 = vsyncpa %s49, 0
    loop: start=0, step=1, limit=4
    $region2: #{tpu_custom_call.1} parent=1 // loop_pre_header
      _
    $region3: #{tpu_custom_call.1} parent=1 // loop_header
      %s52 = sphi 0, %s56
      %p53 = scmp.ge.s32.totalorder %s52, 4
      %s62 = sphi 0, %s64
      %s65 = sphi 0, %s62
      %s66 = sphi 0, %s65
      %s82 = sphi 0, %s66
      %s88 = sphi 0, %s90
      %s91 = sphi 0, %s88
      %s92 = sphi 0, %s91
      %s108 = sphi 0, %s92
      %s114 = sphi 0, %s116
      %s117 = sphi 0, %s114
      %s118 = sphi 0, %s117
      %s134 = sphi 0, %s118
      %s140 = sphi 0, %s142
      %s143 = sphi 0, %s140
      %s144 = sphi 0, %s143
      %s160 = sphi 0, %s144
      %s164 = sphi 0, %s164
      %s166 = sphi 0, %s164
      %s167 = sphi 0, %s166
      %s181 = sphi 0, %s167
      %s185 = sphi 0, %s185
      %s187 = sphi 0, %s185
      %s188 = sphi 0, %s187
      %s202 = sphi 0, %s188
      %s206 = sphi 0, %s206
      %s208 = sphi 0, %s206
      %s209 = sphi 0, %s208
      %s223 = sphi 0, %s209
      %s227 = sphi 0, %s227
      %s229 = sphi 0, %s227
      %s230 = sphi 0, %s229
      %s244 = sphi 0, %s230
      %s248 = sphi 0, %s248
      %s250 = sphi 0, %s248
      %s251 = sphi 0, %s250
      %s265 = sphi 0, %s251
      %s269 = sphi 0, %s269
      %s271 = sphi 0, %s269
      %s272 = sphi 0, %s271
      %s286 = sphi 0, %s272
      %s290 = sphi 0, %s290
      %s292 = sphi 0, %s290
      %s293 = sphi 0, %s292
      %s307 = sphi 0, %s293
      %s311 = sphi 0, %s311
      %s313 = sphi 0, %s311
      %s314 = sphi 0, %s313
      %s328 = sphi 0, %s314
      %s332 = sphi 0, %s332
      %s334 = sphi 0, %s332
      %s335 = sphi 0, %s334
      %s349 = sphi 0, %s335
      %s353 = sphi 0, %s353
      %s355 = sphi 0, %s353
      %s356 = sphi 0, %s355
      %s370 = sphi 0, %s356
      %s374 = sphi 0, %s374
      %s376 = sphi 0, %s374
      %s377 = sphi 0, %s376
      %s391 = sphi 0, %s377
      %s395 = sphi 0, %s395
      %s397 = sphi 0, %s395
      %s398 = sphi 0, %s397
      %s412 = sphi 0, %s398
      %s416 = sphi 0, %s416
      %s418 = sphi 0, %s416
      %s419 = sphi 0, %s418
      %s433 = sphi 0, %s419
      %s437 = sphi 0, %s437
      %s439 = sphi 0, %s437
      %s440 = sphi 0, %s439
      %s454 = sphi 0, %s440
      %s458 = sphi 0, %s458
      %s460 = sphi 0, %s458
      %s461 = sphi 0, %s460
      %s475 = sphi 0, %s461
      %s479 = sphi 0, %s479
      %s481 = sphi 0, %s479
      %s482 = sphi 0, %s481
      %s496 = sphi 0, %s482
      %s500 = sphi 0, %s500
      %s502 = sphi 0, %s500
      %s503 = sphi 0, %s502
      %s517 = sphi 0, %s503
      %s521 = sphi 0, %s521
      %s523 = sphi 0, %s521
      %s524 = sphi 0, %s523
      %s538 = sphi 0, %s524
      %s542 = sphi 0, %s542
      %s544 = sphi 0, %s542
      %s545 = sphi 0, %s544
      %s559 = sphi 0, %s545
      %s563 = sphi 0, %s563
      %s565 = sphi 0, %s563
      %s566 = sphi 0, %s565
      %s580 = sphi 0, %s566
      %s586 = sphi 0, %s588
      %s589 = sphi 0, %s586
      %s590 = sphi 0, %s589
      %s606 = sphi 0, %s590
      %s612 = sphi 0, %s614
      %s615 = sphi 0, %s612
      %s616 = sphi 0, %s615
      %s632 = sphi 0, %s616
    $region4: #{tpu_custom_call.1} parent=1 // loop_header_branch
      %55 = sbr.rel (%p53) target = $region8
    $region5: #{tpu_custom_call.1} parent=1 // loop_body
      %s57 = ssub.s32 %s52, 1
      %s58 = ssub.s32 %s52, 2
      %s59 = sadd.s32 %s52, 1
      %s60 = ssub.s32 %s52, %s59
      %p61 = scmp.eq.s32.totalorder %s60, 0
      %s63 = sadd.s32 %s62, 1
      %s64 = scalar_select %p61, %s62, %s63
      %p67 = pneg %p61
      %p68 = scmp.eq.s32.totalorder %s52, 1
      %p69 = por %p67, %p68
      %p70 = scmp.ne.s32.totalorder %s62, %s65
      %p71 = scmp.eq.s32.totalorder %s52, 0
      %p72 = por %p70, %p71
      %p73 = scmp.ne.s32.totalorder %s62, %s65
      %p74 = scmp.eq.s32.totalorder %s57, 1
      %p75 = por %p73, %p74
      %p76 = scmp.ne.s32.totalorder %s65, %s66
      %p77 = scmp.eq.s32.totalorder %s57, 0
      %p78 = por %p76, %p77
      %p79 = scmp.ne.s32.totalorder %s65, %s66
      %p80 = scmp.eq.s32.totalorder %s58, 1
      %p81 = por %p79, %p80
      %p83 = scmp.ne.s32.totalorder %s66, %s82
      %p84 = scmp.eq.s32.totalorder %s58, 0
      %p85 = por %p83, %p84
      %s86 = ssub.s32 %s52, %s59
      %p87 = scmp.eq.s32.totalorder %s86, 0
      %s89 = sadd.s32 %s88, 1
      %s90 = scalar_select %p87, %s88, %s89
      %p93 = pneg %p87
      %p94 = scmp.eq.s32.totalorder %s52, 1
      %p95 = por %p93, %p94
      %p96 = scmp.ne.s32.totalorder %s88, %s91
      %p97 = scmp.eq.s32.totalorder %s52, 0
      %p98 = por %p96, %p97
      %p99 = scmp.ne.s32.totalorder %s88, %s91
      %p100 = scmp.eq.s32.totalorder %s57, 1
      %p101 = por %p99, %p100
      %p102 = scmp.ne.s32.totalorder %s91, %s92
      %p103 = scmp.eq.s32.totalorder %s57, 0
      %p104 = por %p102, %p103
      %p105 = scmp.ne.s32.totalorder %s91, %s92
      %p106 = scmp.eq.s32.totalorder %s58, 1
      %p107 = por %p105, %p106
      %p109 = scmp.ne.s32.totalorder %s92, %s108
      %p110 = scmp.eq.s32.totalorder %s58, 0
      %p111 = por %p109, %p110
      %s112 = ssub.s32 %s52, %s59
      %p113 = scmp.eq.s32.totalorder %s112, 0
      %s115 = sadd.s32 %s114, 1
      %s116 = scalar_select %p113, %s114, %s115
      %p119 = pneg %p113
      %p120 = scmp.eq.s32.totalorder %s52, 1
      %p121 = por %p119, %p120
      %p122 = scmp.ne.s32.totalorder %s114, %s117
      %p123 = scmp.eq.s32.totalorder %s52, 0
      %p124 = por %p122, %p123
      %p125 = scmp.ne.s32.totalorder %s114, %s117
      %p126 = scmp.eq.s32.totalorder %s57, 1
      %p127 = por %p125, %p126
      %p128 = scmp.ne.s32.totalorder %s117, %s118
      %p129 = scmp.eq.s32.totalorder %s57, 0
      %p130 = por %p128, %p129
      %p131 = scmp.ne.s32.totalorder %s117, %s118
      %p132 = scmp.eq.s32.totalorder %s58, 1
      %p133 = por %p131, %p132
      %p135 = scmp.ne.s32.totalorder %s118, %s134
      %p136 = scmp.eq.s32.totalorder %s58, 0
      %p137 = por %p135, %p136
      %s138 = ssub.s32 %s52, %s59
      %p139 = scmp.eq.s32.totalorder %s138, 0
      %s141 = sadd.s32 %s140, 1
      %s142 = scalar_select %p139, %s140, %s141
      %p145 = pneg %p139
      %p146 = scmp.eq.s32.totalorder %s52, 1
      %p147 = por %p145, %p146
      %p148 = scmp.ne.s32.totalorder %s140, %s143
      %p149 = scmp.eq.s32.totalorder %s52, 0
      %p150 = por %p148, %p149
      %p151 = scmp.ne.s32.totalorder %s140, %s143
      %p152 = scmp.eq.s32.totalorder %s57, 1
      %p153 = por %p151, %p152
      %p154 = scmp.ne.s32.totalorder %s143, %s144
      %p155 = scmp.eq.s32.totalorder %s57, 0
      %p156 = por %p154, %p155
      %p157 = scmp.ne.s32.totalorder %s143, %s144
      %p158 = scmp.eq.s32.totalorder %s58, 1
      %p159 = por %p157, %p158
      %p161 = scmp.ne.s32.totalorder %s144, %s160
      %p162 = scmp.eq.s32.totalorder %s58, 0
      %p163 = por %p161, %p162
      %s165 = sadd.s32 %s164, 1
      %p168 = scmp.eq.s32.totalorder %s52, 1
      %p169 = scmp.ne.s32.totalorder %s164, %s166
      %p170 = scmp.eq.s32.totalorder %s52, 0
      %p171 = por %p169, %p170
      %p172 = scmp.ne.s32.totalorder %s164, %s166
      %p173 = scmp.eq.s32.totalorder %s57, 1
      %p174 = por %p172, %p173
      %p175 = scmp.ne.s32.totalorder %s166, %s167
      %p176 = scmp.eq.s32.totalorder %s57, 0
      %p177 = por %p175, %p176
      %p178 = scmp.ne.s32.totalorder %s166, %s167
      %p179 = scmp.eq.s32.totalorder %s58, 1
      %p180 = por %p178, %p179
      %p182 = scmp.ne.s32.totalorder %s167, %s181
      %p183 = scmp.eq.s32.totalorder %s58, 0
      %p184 = por %p182, %p183
      %s186 = sadd.s32 %s185, 1
      %p189 = scmp.eq.s32.totalorder %s52, 1
      %p190 = scmp.ne.s32.totalorder %s185, %s187
      %p191 = scmp.eq.s32.totalorder %s52, 0
      %p192 = por %p190, %p191
      %p193 = scmp.ne.s32.totalorder %s185, %s187
      %p194 = scmp.eq.s32.totalorder %s57, 1
      %p195 = por %p193, %p194
      %p196 = scmp.ne.s32.totalorder %s187, %s188
      %p197 = scmp.eq.s32.totalorder %s57, 0
      %p198 = por %p196, %p197
      %p199 = scmp.ne.s32.totalorder %s187, %s188
      %p200 = scmp.eq.s32.totalorder %s58, 1
      %p201 = por %p199, %p200
      %p203 = scmp.ne.s32.totalorder %s188, %s202
      %p204 = scmp.eq.s32.totalorder %s58, 0
      %p205 = por %p203, %p204
      %s207 = sadd.s32 %s206, 1
      %p210 = scmp.eq.s32.totalorder %s52, 1
      %p211 = scmp.ne.s32.totalorder %s206, %s208
      %p212 = scmp.eq.s32.totalorder %s52, 0
      %p213 = por %p211, %p212
      %p214 = scmp.ne.s32.totalorder %s206, %s208
      %p215 = scmp.eq.s32.totalorder %s57, 1
      %p216 = por %p214, %p215
      %p217 = scmp.ne.s32.totalorder %s208, %s209
      %p218 = scmp.eq.s32.totalorder %s57, 0
      %p219 = por %p217, %p218
      %p220 = scmp.ne.s32.totalorder %s208, %s209
      %p221 = scmp.eq.s32.totalorder %s58, 1
      %p222 = por %p220, %p221
      %p224 = scmp.ne.s32.totalorder %s209, %s223
      %p225 = scmp.eq.s32.totalorder %s58, 0
      %p226 = por %p224, %p225
      %s228 = sadd.s32 %s227, 1
      %p231 = scmp.eq.s32.totalorder %s52, 1
      %p232 = scmp.ne.s32.totalorder %s227, %s229
      %p233 = scmp.eq.s32.totalorder %s52, 0
      %p234 = por %p232, %p233
      %p235 = scmp.ne.s32.totalorder %s227, %s229
      %p236 = scmp.eq.s32.totalorder %s57, 1
      %p237 = por %p235, %p236
      %p238 = scmp.ne.s32.totalorder %s229, %s230
      %p239 = scmp.eq.s32.totalorder %s57, 0
      %p240 = por %p238, %p239
      %p241 = scmp.ne.s32.totalorder %s229, %s230
      %p242 = scmp.eq.s32.totalorder %s58, 1
      %p243 = por %p241, %p242
      %p245 = scmp.ne.s32.totalorder %s230, %s244
      %p246 = scmp.eq.s32.totalorder %s58, 0
      %p247 = por %p245, %p246
      %s249 = sadd.s32 %s248, 1
      %p252 = scmp.eq.s32.totalorder %s52, 1
      %p253 = scmp.ne.s32.totalorder %s248, %s250
      %p254 = scmp.eq.s32.totalorder %s52, 0
      %p255 = por %p253, %p254
      %p256 = scmp.ne.s32.totalorder %s248, %s250
      %p257 = scmp.eq.s32.totalorder %s57, 1
      %p258 = por %p256, %p257
      %p259 = scmp.ne.s32.totalorder %s250, %s251
      %p260 = scmp.eq.s32.totalorder %s57, 0
      %p261 = por %p259, %p260
      %p262 = scmp.ne.s32.totalorder %s250, %s251
      %p263 = scmp.eq.s32.totalorder %s58, 1
      %p264 = por %p262, %p263
      %p266 = scmp.ne.s32.totalorder %s251, %s265
      %p267 = scmp.eq.s32.totalorder %s58, 0
      %p268 = por %p266, %p267
      %s270 = sadd.s32 %s269, 1
      %p273 = scmp.eq.s32.totalorder %s52, 1
      %p274 = scmp.ne.s32.totalorder %s269, %s271
      %p275 = scmp.eq.s32.totalorder %s52, 0
      %p276 = por %p274, %p275
      %p277 = scmp.ne.s32.totalorder %s269, %s271
      %p278 = scmp.eq.s32.totalorder %s57, 1
      %p279 = por %p277, %p278
      %p280 = scmp.ne.s32.totalorder %s271, %s272
      %p281 = scmp.eq.s32.totalorder %s57, 0
      %p282 = por %p280, %p281
      %p283 = scmp.ne.s32.totalorder %s271, %s272
      %p284 = scmp.eq.s32.totalorder %s58, 1
      %p285 = por %p283, %p284
      %p287 = scmp.ne.s32.totalorder %s272, %s286
      %p288 = scmp.eq.s32.totalorder %s58, 0
      %p289 = por %p287, %p288
      %s291 = sadd.s32 %s290, 1
      %p294 = scmp.eq.s32.totalorder %s52, 1
      %p295 = scmp.ne.s32.totalorder %s290, %s292
      %p296 = scmp.eq.s32.totalorder %s52, 0
      %p297 = por %p295, %p296
      %p298 = scmp.ne.s32.totalorder %s290, %s292
      %p299 = scmp.eq.s32.totalorder %s57, 1
      %p300 = por %p298, %p299
      %p301 = scmp.ne.s32.totalorder %s292, %s293
      %p302 = scmp.eq.s32.totalorder %s57, 0
      %p303 = por %p301, %p302
      %p304 = scmp.ne.s32.totalorder %s292, %s293
      %p305 = scmp.eq.s32.totalorder %s58, 1
      %p306 = por %p304, %p305
      %p308 = scmp.ne.s32.totalorder %s293, %s307
      %p309 = scmp.eq.s32.totalorder %s58, 0
      %p310 = por %p308, %p309
      %s312 = sadd.s32 %s311, 1
      %p315 = scmp.eq.s32.totalorder %s52, 1
      %p316 = scmp.ne.s32.totalorder %s311, %s313
      %p317 = scmp.eq.s32.totalorder %s52, 0
      %p318 = por %p316, %p317
      %p319 = scmp.ne.s32.totalorder %s311, %s313
      %p320 = scmp.eq.s32.totalorder %s57, 1
      %p321 = por %p319, %p320
      %p322 = scmp.ne.s32.totalorder %s313, %s314
      %p323 = scmp.eq.s32.totalorder %s57, 0
      %p324 = por %p322, %p323
      %p325 = scmp.ne.s32.totalorder %s313, %s314
      %p326 = scmp.eq.s32.totalorder %s58, 1
      %p327 = por %p325, %p326
      %p329 = scmp.ne.s32.totalorder %s314, %s328
      %p330 = scmp.eq.s32.totalorder %s58, 0
      %p331 = por %p329, %p330
      %s333 = sadd.s32 %s332, 1
      %p336 = scmp.eq.s32.totalorder %s52, 1
      %p337 = scmp.ne.s32.totalorder %s332, %s334
      %p338 = scmp.eq.s32.totalorder %s52, 0
      %p339 = por %p337, %p338
      %p340 = scmp.ne.s32.totalorder %s332, %s334
      %p341 = scmp.eq.s32.totalorder %s57, 1
      %p342 = por %p340, %p341
      %p343 = scmp.ne.s32.totalorder %s334, %s335
      %p344 = scmp.eq.s32.totalorder %s57, 0
      %p345 = por %p343, %p344
      %p346 = scmp.ne.s32.totalorder %s334, %s335
      %p347 = scmp.eq.s32.totalorder %s58, 1
      %p348 = por %p346, %p347
      %p350 = scmp.ne.s32.totalorder %s335, %s349
      %p351 = scmp.eq.s32.totalorder %s58, 0
      %p352 = por %p350, %p351
      %s354 = sadd.s32 %s353, 1
      %p357 = scmp.eq.s32.totalorder %s52, 1
      %p358 = scmp.ne.s32.totalorder %s353, %s355
      %p359 = scmp.eq.s32.totalorder %s52, 0
      %p360 = por %p358, %p359
      %p361 = scmp.ne.s32.totalorder %s353, %s355
      %p362 = scmp.eq.s32.totalorder %s57, 1
      %p363 = por %p361, %p362
      %p364 = scmp.ne.s32.totalorder %s355, %s356
      %p365 = scmp.eq.s32.totalorder %s57, 0
      %p366 = por %p364, %p365
      %p367 = scmp.ne.s32.totalorder %s355, %s356
      %p368 = scmp.eq.s32.totalorder %s58, 1
      %p369 = por %p367, %p368
      %p371 = scmp.ne.s32.totalorder %s356, %s370
      %p372 = scmp.eq.s32.totalorder %s58, 0
      %p373 = por %p371, %p372
      %s375 = sadd.s32 %s374, 1
      %p378 = scmp.eq.s32.totalorder %s52, 1
      %p379 = scmp.ne.s32.totalorder %s374, %s376
      %p380 = scmp.eq.s32.totalorder %s52, 0
      %p381 = por %p379, %p380
      %p382 = scmp.ne.s32.totalorder %s374, %s376
      %p383 = scmp.eq.s32.totalorder %s57, 1
      %p384 = por %p382, %p383
      %p385 = scmp.ne.s32.totalorder %s376, %s377
      %p386 = scmp.eq.s32.totalorder %s57, 0
      %p387 = por %p385, %p386
      %p388 = scmp.ne.s32.totalorder %s376, %s377
      %p389 = scmp.eq.s32.totalorder %s58, 1
      %p390 = por %p388, %p389
      %p392 = scmp.ne.s32.totalorder %s377, %s391
      %p393 = scmp.eq.s32.totalorder %s58, 0
      %p394 = por %p392, %p393
      %s396 = sadd.s32 %s395, 1
      %p399 = scmp.eq.s32.totalorder %s52, 1
      %p400 = scmp.ne.s32.totalorder %s395, %s397
      %p401 = scmp.eq.s32.totalorder %s52, 0
      %p402 = por %p400, %p401
      %p403 = scmp.ne.s32.totalorder %s395, %s397
      %p404 = scmp.eq.s32.totalorder %s57, 1
      %p405 = por %p403, %p404
      %p406 = scmp.ne.s32.totalorder %s397, %s398
      %p407 = scmp.eq.s32.totalorder %s57, 0
      %p408 = por %p406, %p407
      %p409 = scmp.ne.s32.totalorder %s397, %s398
      %p410 = scmp.eq.s32.totalorder %s58, 1
      %p411 = por %p409, %p410
      %p413 = scmp.ne.s32.totalorder %s398, %s412
      %p414 = scmp.eq.s32.totalorder %s58, 0
      %p415 = por %p413, %p414
      %s417 = sadd.s32 %s416, 1
      %p420 = scmp.eq.s32.totalorder %s52, 1
      %p421 = scmp.ne.s32.totalorder %s416, %s418
      %p422 = scmp.eq.s32.totalorder %s52, 0
      %p423 = por %p421, %p422
      %p424 = scmp.ne.s32.totalorder %s416, %s418
      %p425 = scmp.eq.s32.totalorder %s57, 1
      %p426 = por %p424, %p425
      %p427 = scmp.ne.s32.totalorder %s418, %s419
      %p428 = scmp.eq.s32.totalorder %s57, 0
      %p429 = por %p427, %p428
      %p430 = scmp.ne.s32.totalorder %s418, %s419
      %p431 = scmp.eq.s32.totalorder %s58, 1
      %p432 = por %p430, %p431
      %p434 = scmp.ne.s32.totalorder %s419, %s433
      %p435 = scmp.eq.s32.totalorder %s58, 0
      %p436 = por %p434, %p435
      %s438 = sadd.s32 %s437, 1
      %p441 = scmp.eq.s32.totalorder %s52, 1
      %p442 = scmp.ne.s32.totalorder %s437, %s439
      %p443 = scmp.eq.s32.totalorder %s52, 0
      %p444 = por %p442, %p443
      %p445 = scmp.ne.s32.totalorder %s437, %s439
      %p446 = scmp.eq.s32.totalorder %s57, 1
      %p447 = por %p445, %p446
      %p448 = scmp.ne.s32.totalorder %s439, %s440
      %p449 = scmp.eq.s32.totalorder %s57, 0
      %p450 = por %p448, %p449
      %p451 = scmp.ne.s32.totalorder %s439, %s440
      %p452 = scmp.eq.s32.totalorder %s58, 1
      %p453 = por %p451, %p452
      %p455 = scmp.ne.s32.totalorder %s440, %s454
      %p456 = scmp.eq.s32.totalorder %s58, 0
      %p457 = por %p455, %p456
      %s459 = sadd.s32 %s458, 1
      %p462 = scmp.eq.s32.totalorder %s52, 1
      %p463 = scmp.ne.s32.totalorder %s458, %s460
      %p464 = scmp.eq.s32.totalorder %s52, 0
      %p465 = por %p463, %p464
      %p466 = scmp.ne.s32.totalorder %s458, %s460
      %p467 = scmp.eq.s32.totalorder %s57, 1
      %p468 = por %p466, %p467
      %p469 = scmp.ne.s32.totalorder %s460, %s461
      %p470 = scmp.eq.s32.totalorder %s57, 0
      %p471 = por %p469, %p470
      %p472 = scmp.ne.s32.totalorder %s460, %s461
      %p473 = scmp.eq.s32.totalorder %s58, 1
      %p474 = por %p472, %p473
      %p476 = scmp.ne.s32.totalorder %s461, %s475
      %p477 = scmp.eq.s32.totalorder %s58, 0
      %p478 = por %p476, %p477
      %s480 = sadd.s32 %s479, 1
      %p483 = scmp.eq.s32.totalorder %s52, 1
      %p484 = scmp.ne.s32.totalorder %s479, %s481
      %p485 = scmp.eq.s32.totalorder %s52, 0
      %p486 = por %p484, %p485
      %p487 = scmp.ne.s32.totalorder %s479, %s481
      %p488 = scmp.eq.s32.totalorder %s57, 1
      %p489 = por %p487, %p488
      %p490 = scmp.ne.s32.totalorder %s481, %s482
      %p491 = scmp.eq.s32.totalorder %s57, 0
      %p492 = por %p490, %p491
      %p493 = scmp.ne.s32.totalorder %s481, %s482
      %p494 = scmp.eq.s32.totalorder %s58, 1
      %p495 = por %p493, %p494
      %p497 = scmp.ne.s32.totalorder %s482, %s496
      %p498 = scmp.eq.s32.totalorder %s58, 0
      %p499 = por %p497, %p498
      %s501 = sadd.s32 %s500, 1
      %p504 = scmp.eq.s32.totalorder %s52, 1
      %p505 = scmp.ne.s32.totalorder %s500, %s502
      %p506 = scmp.eq.s32.totalorder %s52, 0
      %p507 = por %p505, %p506
      %p508 = scmp.ne.s32.totalorder %s500, %s502
      %p509 = scmp.eq.s32.totalorder %s57, 1
      %p510 = por %p508, %p509
      %p511 = scmp.ne.s32.totalorder %s502, %s503
      %p512 = scmp.eq.s32.totalorder %s57, 0
      %p513 = por %p511, %p512
      %p514 = scmp.ne.s32.totalorder %s502, %s503
      %p515 = scmp.eq.s32.totalorder %s58, 1
      %p516 = por %p514, %p515
      %p518 = scmp.ne.s32.totalorder %s503, %s517
      %p519 = scmp.eq.s32.totalorder %s58, 0
      %p520 = por %p518, %p519
      %s522 = sadd.s32 %s521, 1
      %p525 = scmp.eq.s32.totalorder %s52, 1
      %p526 = scmp.ne.s32.totalorder %s521, %s523
      %p527 = scmp.eq.s32.totalorder %s52, 0
      %p528 = por %p526, %p527
      %p529 = scmp.ne.s32.totalorder %s521, %s523
      %p530 = scmp.eq.s32.totalorder %s57, 1
      %p531 = por %p529, %p530
      %p532 = scmp.ne.s32.totalorder %s523, %s524
      %p533 = scmp.eq.s32.totalorder %s57, 0
      %p534 = por %p532, %p533
      %p535 = scmp.ne.s32.totalorder %s523, %s524
      %p536 = scmp.eq.s32.totalorder %s58, 1
      %p537 = por %p535, %p536
      %p539 = scmp.ne.s32.totalorder %s524, %s538
      %p540 = scmp.eq.s32.totalorder %s58, 0
      %p541 = por %p539, %p540
      %s543 = sadd.s32 %s542, 1
      %p546 = scmp.eq.s32.totalorder %s52, 1
      %p547 = scmp.ne.s32.totalorder %s542, %s544
      %p548 = scmp.eq.s32.totalorder %s52, 0
      %p549 = por %p547, %p548
      %p550 = scmp.ne.s32.totalorder %s542, %s544
      %p551 = scmp.eq.s32.totalorder %s57, 1
      %p552 = por %p550, %p551
      %p553 = scmp.ne.s32.totalorder %s544, %s545
      %p554 = scmp.eq.s32.totalorder %s57, 0
      %p555 = por %p553, %p554
      %p556 = scmp.ne.s32.totalorder %s544, %s545
      %p557 = scmp.eq.s32.totalorder %s58, 1
      %p558 = por %p556, %p557
      %p560 = scmp.ne.s32.totalorder %s545, %s559
      %p561 = scmp.eq.s32.totalorder %s58, 0
      %p562 = por %p560, %p561
      %s564 = sadd.s32 %s563, 1
      %p567 = scmp.eq.s32.totalorder %s52, 1
      %p568 = scmp.ne.s32.totalorder %s563, %s565
      %p569 = scmp.eq.s32.totalorder %s52, 0
      %p570 = por %p568, %p569
      %p571 = scmp.ne.s32.totalorder %s563, %s565
      %p572 = scmp.eq.s32.totalorder %s57, 1
      %p573 = por %p571, %p572
      %p574 = scmp.ne.s32.totalorder %s565, %s566
      %p575 = scmp.eq.s32.totalorder %s57, 0
      %p576 = por %p574, %p575
      %p577 = scmp.ne.s32.totalorder %s565, %s566
      %p578 = scmp.eq.s32.totalorder %s58, 1
      %p579 = por %p577, %p578
      %p581 = scmp.ne.s32.totalorder %s566, %s580
      %p582 = scmp.eq.s32.totalorder %s58, 0
      %p583 = por %p581, %p582
      %s584 = ssub.s32 %s52, %s59
      %p585 = scmp.eq.s32.totalorder %s584, 0
      %s587 = sadd.s32 %s586, 1
      %s588 = scalar_select %p585, %s586, %s587
      %p591 = pneg %p585
      %p592 = scmp.eq.s32.totalorder %s52, 1
      %p593 = por %p591, %p592
      %p594 = scmp.ne.s32.totalorder %s586, %s589
      %p595 = scmp.eq.s32.totalorder %s52, 0
      %p596 = por %p594, %p595
      %p597 = scmp.ne.s32.totalorder %s586, %s589
      %p598 = scmp.eq.s32.totalorder %s57, 1
      %p599 = por %p597, %p598
      %p600 = scmp.ne.s32.totalorder %s589, %s590
      %p601 = scmp.eq.s32.totalorder %s57, 0
      %p602 = por %p600, %p601
      %p603 = scmp.ne.s32.totalorder %s589, %s590
      %p604 = scmp.eq.s32.totalorder %s58, 1
      %p605 = por %p603, %p604
      %p607 = scmp.ne.s32.totalorder %s590, %s606
      %p608 = scmp.eq.s32.totalorder %s58, 0
      %p609 = por %p607, %p608
      %s610 = ssub.s32 %s52, %s59
      %p611 = scmp.eq.s32.totalorder %s610, 0
      %s613 = sadd.s32 %s612, 1
      %s614 = scalar_select %p611, %s612, %s613
      %p617 = pneg %p611
      %p618 = scmp.eq.s32.totalorder %s52, 1
      %p619 = por %p617, %p618
      %p620 = scmp.ne.s32.totalorder %s612, %s615
      %p621 = scmp.eq.s32.totalorder %s52, 0
      %p622 = por %p620, %p621
      %p623 = scmp.ne.s32.totalorder %s612, %s615
      %p624 = scmp.eq.s32.totalorder %s57, 1
      %p625 = por %p623, %p624
      %p626 = scmp.ne.s32.totalorder %s615, %s616
      %p627 = scmp.eq.s32.totalorder %s57, 0
      %p628 = por %p626, %p627
      %p629 = scmp.ne.s32.totalorder %s615, %s616
      %p630 = scmp.eq.s32.totalorder %s58, 1
      %p631 = por %p629, %p630
      %p633 = scmp.ne.s32.totalorder %s616, %s632
      %p634 = scmp.eq.s32.totalorder %s58, 0
      %p635 = por %p633, %p634
      %p636 = scmp.le.s32.totalorder 1, %s52
      %p637 = scmp.lt.s32.totalorder %s52, 3
      %p638 = pnand %p636, %p637
      %p639 = pneg %p638
      // Predicated region
      $region9: #{tpu_custom_call.1} parent=5 // pred_check
        _
      $region10: #{tpu_custom_call.1} parent=5 // pred_check_branch
        %641 = sbr.rel (%p638) target = $region12
      $region11: #{tpu_custom_call.1} parent=5 // pred_region
        %s642 = ssub.s32 %s52, 1
        // Predicated region
        $region13: #{tpu_custom_call.1} parent=11 // pred_check
          %p643 = pneg %p177
        $region14: #{tpu_custom_call.1} parent=11 // pred_check_branch
          %645 = sbr.rel (%p643) target = $region16
        $region15: #{tpu_custom_call.1} parent=11 // pred_region
          _
        $region16: #{tpu_custom_call.1} parent=11 // pred_fallthru
          _
        // Predicated region
        $region17: #{tpu_custom_call.1} parent=11 // pred_check
          %p646 = pneg %p198
        $region18: #{tpu_custom_call.1} parent=11 // pred_check_branch
          %648 = sbr.rel (%p646) target = $region20
        $region19: #{tpu_custom_call.1} parent=11 // pred_region
          %s650 = ssub.s32 16, 16
          %651 = vsyncadd [#allocation9], %s650
          %s653 = sshll.u32 [#allocation10], 4
          %s654 = int_to_ptr.vmem [resolvable:$true] %s653
          %656 = dma.hbm_to_vmem [thread:$0]  %s5, 16, %s654, [#allocation9]
        $region20: #{tpu_custom_call.1} parent=11 // pred_fallthru
          _
        // Predicated region
        $region21: #{tpu_custom_call.1} parent=11 // pred_check
          %p657 = pneg %p219
        $region22: #{tpu_custom_call.1} parent=11 // pred_check_branch
          %659 = sbr.rel (%p657) target = $region24
        $region23: #{tpu_custom_call.1} parent=11 // pred_region
          _
        $region24: #{tpu_custom_call.1} parent=11 // pred_fallthru
          _
        // Predicated region
        $region25: #{tpu_custom_call.1} parent=11 // pred_check
          %p660 = pneg %p240
        $region26: #{tpu_custom_call.1} parent=11 // pred_check_branch
          %662 = sbr.rel (%p660) target = $region28
        $region27: #{tpu_custom_call.1} parent=11 // pred_region
          %s664 = ssub.s32 16, 16
          %665 = vsyncadd [#allocation12], %s664
          %s667 = sshll.u32 [#allocation11], 4
          %s668 = int_to_ptr.vmem [resolvable:$true] %s667
          %670 = dma.hbm_to_vmem [thread:$0]  %s7, 16, %s668, [#allocation12]
        $region28: #{tpu_custom_call.1} parent=11 // pred_fallthru
          _
        // Predicated region
        $region29: #{tpu_custom_call.1} parent=11 // pred_check
          %p671 = pneg %p261
        $region30: #{tpu_custom_call.1} parent=11 // pred_check_branch
          %673 = sbr.rel (%p671) target = $region32
        $region31: #{tpu_custom_call.1} parent=11 // pred_region
          _
        $region32: #{tpu_custom_call.1} parent=11 // pred_fallthru
          _
        // Predicated region
        $region33: #{tpu_custom_call.1} parent=11 // pred_check
          %p674 = pneg %p282
        $region34: #{tpu_custom_call.1} parent=11 // pred_check_branch
          %676 = sbr.rel (%p674) target = $region36
        $region35: #{tpu_custom_call.1} parent=11 // pred_region
          %s678 = ssub.s32 16, 16
          %679 = vsyncadd [#allocation12], %s678
          %s681 = sshll.u32 [#allocation13], 4
          %s682 = int_to_ptr.vmem [resolvable:$true] %s681
          %684 = dma.hbm_to_vmem [thread:$0]  %s9, 16, %s682, [#allocation12]
        $region36: #{tpu_custom_call.1} parent=11 // pred_fallthru
          _
        // Predicated region
        $region37: #{tpu_custom_call.1} parent=11 // pred_check
          %p685 = pneg %p303
        $region38: #{tpu_custom_call.1} parent=11 // pred_check_branch
          %687 = sbr.rel (%p685) target = $region40
        $region39: #{tpu_custom_call.1} parent=11 // pred_region
          _
        $region40: #{tpu_custom_call.1} parent=11 // pred_fallthru
          _
        // Predicated region
        $region41: #{tpu_custom_call.1} parent=11 // pred_check
          %p688 = pneg %p324
        $region42: #{tpu_custom_call.1} parent=11 // pred_check_branch
          %690 = sbr.rel (%p688) target = $region44
        $region43: #{tpu_custom_call.1} parent=11 // pred_region
          %s692 = ssub.s32 16, 16
          %693 = vsyncadd [#allocation15], %s692
          %s695 = sshll.u32 [#allocation14], 4
          %s696 = int_to_ptr.vmem [resolvable:$true] %s695
          %698 = dma.hbm_to_vmem [thread:$0]  %s11, 16, %s696, [#allocation15]
        $region44: #{tpu_custom_call.1} parent=11 // pred_fallthru
          _
        // Predicated region
        $region45: #{tpu_custom_call.1} parent=11 // pred_check
          %p699 = pneg %p345
        $region46: #{tpu_custom_call.1} parent=11 // pred_check_branch
          %701 = sbr.rel (%p699) target = $region48
        $region47: #{tpu_custom_call.1} parent=11 // pred_region
          %s703 = ssub.s32 512, 512
          %704 = vsyncadd [#allocation15], %s703
          %s705 = sshll.u32 [#allocation16], 4
          %s706 = int_to_ptr.vmem [resolvable:$true] %s705
          %711 = dma.hbm_to_vmem [thread:$0]  %s12, 512, %s706, [#allocation15], 128, 128, 8
        $region48: #{tpu_custom_call.1} parent=11 // pred_fallthru
          _
        // Predicated region
        $region49: #{tpu_custom_call.1} parent=11 // pred_check
          %p712 = pneg %p366
        $region50: #{tpu_custom_call.1} parent=11 // pred_check_branch
          %714 = sbr.rel (%p712) target = $region52
        $region51: #{tpu_custom_call.1} parent=11 // pred_region
          %s716 = ssub.s32 16, 16
          %717 = vsyncadd [#allocation18], %s716
          %s719 = sshll.u32 [#allocation17], 4
          %s720 = int_to_ptr.vmem [resolvable:$true] %s719
          %722 = dma.hbm_to_vmem [thread:$0]  %s13, 16, %s720, [#allocation18]
        $region52: #{tpu_custom_call.1} parent=11 // pred_fallthru
          _
        // Predicated region
        $region53: #{tpu_custom_call.1} parent=11 // pred_check
          %p723 = pneg %p387
        $region54: #{tpu_custom_call.1} parent=11 // pred_check_branch
          %725 = sbr.rel (%p723) target = $region56
        $region55: #{tpu_custom_call.1} parent=11 // pred_region
          %s727 = ssub.s32 16, 16
          %728 = vsyncadd [#allocation18], %s727
          %s730 = sshll.u32 [#allocation19], 4
          %s731 = int_to_ptr.vmem [resolvable:$true] %s730
          %733 = dma.hbm_to_vmem [thread:$0]  %s14, 16, %s731, [#allocation18]
        $region56: #{tpu_custom_call.1} parent=11 // pred_fallthru
          _
        // Predicated region
        $region57: #{tpu_custom_call.1} parent=11 // pred_check
          %p734 = pneg %p408
        $region58: #{tpu_custom_call.1} parent=11 // pred_check_branch
          %736 = sbr.rel (%p734) target = $region60
        $region59: #{tpu_custom_call.1} parent=11 // pred_region
          %s738 = ssub.s32 16, 16
          %739 = vsyncadd [#allocation21], %s738
          %s741 = sshll.u32 [#allocation20], 4
          %s742 = int_to_ptr.vmem [resolvable:$true] %s741
          %744 = dma.hbm_to_vmem [thread:$0]  %s15, 16, %s742, [#allocation21]
        $region60: #{tpu_custom_call.1} parent=11 // pred_fallthru
          _
        // Predicated region
        $region61: #{tpu_custom_call.1} parent=11 // pred_check
          %p745 = pneg %p429
        $region62: #{tpu_custom_call.1} parent=11 // pred_check_branch
          %747 = sbr.rel (%p745) target = $region64
        $region63: #{tpu_custom_call.1} parent=11 // pred_region
          %s749 = ssub.s32 16, 16
          %750 = vsyncadd [#allocation21], %s749
          %s752 = sshll.u32 [#allocation22], 4
          %s753 = int_to_ptr.vmem [resolvable:$true] %s752
          %755 = dma.hbm_to_vmem [thread:$0]  %s16, 16, %s753, [#allocation21]
        $region64: #{tpu_custom_call.1} parent=11 // pred_fallthru
          _
        // Predicated region
        $region65: #{tpu_custom_call.1} parent=11 // pred_check
          %p756 = pneg %p450
        $region66: #{tpu_custom_call.1} parent=11 // pred_check_branch
          %758 = sbr.rel (%p756) target = $region68
        $region67: #{tpu_custom_call.1} parent=11 // pred_region
          %s760 = ssub.s32 16, 16
          %761 = vsyncadd [#allocation24], %s760
          %s763 = sshll.u32 [#allocation23], 4
          %s764 = int_to_ptr.vmem [resolvable:$true] %s763
          %766 = dma.hbm_to_vmem [thread:$0]  %s17, 16, %s764, [#allocation24]
        $region68: #{tpu_custom_call.1} parent=11 // pred_fallthru
          _
        // Predicated region
        $region69: #{tpu_custom_call.1} parent=11 // pred_check
          %p767 = pneg %p471
        $region70: #{tpu_custom_call.1} parent=11 // pred_check_branch
          %769 = sbr.rel (%p767) target = $region72
        $region71: #{tpu_custom_call.1} parent=11 // pred_region
          _
        $region72: #{tpu_custom_call.1} parent=11 // pred_fallthru
          _
        // Predicated region
        $region73: #{tpu_custom_call.1} parent=11 // pred_check
          %p770 = pneg %p492
        $region74: #{tpu_custom_call.1} parent=11 // pred_check_branch
          %772 = sbr.rel (%p770) target = $region76
        $region75: #{tpu_custom_call.1} parent=11 // pred_region
          _
        $region76: #{tpu_custom_call.1} parent=11 // pred_fallthru
          _
        // Predicated region
        $region77: #{tpu_custom_call.1} parent=11 // pred_check
          %p773 = pneg %p513
        $region78: #{tpu_custom_call.1} parent=11 // pred_check_branch
          %775 = sbr.rel (%p773) target = $region80
        $region79: #{tpu_custom_call.1} parent=11 // pred_region
          %s777 = ssub.s32 512, 512
          %778 = vsyncadd [#allocation24], %s777
          %s779 = sshll.u32 [#allocation25], 4
          %s780 = int_to_ptr.vmem [resolvable:$true] %s779
          %785 = dma.hbm_to_vmem [thread:$0]  %s20, 512, %s780, [#allocation24], 128, 128, 8
        $region80: #{tpu_custom_call.1} parent=11 // pred_fallthru
          _
        // Predicated region
        $region81: #{tpu_custom_call.1} parent=11 // pred_check
          %p786 = pneg %p534
        $region82: #{tpu_custom_call.1} parent=11 // pred_check_branch
          %788 = sbr.rel (%p786) target = $region84
        $region83: #{tpu_custom_call.1} parent=11 // pred_region
          _
        $region84: #{tpu_custom_call.1} parent=11 // pred_fallthru
          _
        // Predicated region
        $region85: #{tpu_custom_call.1} parent=11 // pred_check
          %p789 = pneg %p555
        $region86: #{tpu_custom_call.1} parent=11 // pred_check_branch
          %791 = sbr.rel (%p789) target = $region88
        $region87: #{tpu_custom_call.1} parent=11 // pred_region
          _
        $region88: #{tpu_custom_call.1} parent=11 // pred_fallthru
          _
        // Predicated region
        $region89: #{tpu_custom_call.1} parent=11 // pred_check
          %p792 = pneg %p576
        $region90: #{tpu_custom_call.1} parent=11 // pred_check_branch
          %794 = sbr.rel (%p792) target = $region92
        $region91: #{tpu_custom_call.1} parent=11 // pred_region
          _
        $region92: #{tpu_custom_call.1} parent=11 // pred_fallthru
          _
      $region12: #{tpu_custom_call.1} parent=5 // pred_fallthru
        _
      %p795 = scmp.lt.s32.totalorder %s52, 2
      // Predicated region
      $region93: #{tpu_custom_call.1} parent=5 // pred_check
        %p796 = pneg %p795
      $region94: #{tpu_custom_call.1} parent=5 // pred_check_branch
        %798 = sbr.rel (%p796) target = $region96
      $region95: #{tpu_custom_call.1} parent=5 // pred_region
        // Predicated region
        $region97: #{tpu_custom_call.1} parent=95 // pred_check
          %p799 = pneg %p72
        $region98: #{tpu_custom_call.1} parent=95 // pred_check_branch
          %801 = sbr.rel (%p799) target = $region100
        $region99: #{tpu_custom_call.1} parent=95 // pred_region
          %s802 = sand.u32 %s62, 1
          %s803 = scalar_lea.sflag [#allocation3], %s802
          %s804 = sand.u32 %s62, 1
          %s805 = smul.addr %s804, 8
          %s806 = scalar_lea.vmem [#allocation2], %s805
          %s808 = ssub.s32 128, 128
          %809 = vsyncadd %s803, %s808
          %s810 = smul.addr %s52, 128
          %s811 = scalar_lea.hbm %s0, %s810
          %s813 = sshll.u32 %s806, 4
          %s814 = int_to_ptr.vmem [resolvable:$true] %s813
          %816 = dma.hbm_to_vmem [thread:$0]  %s811, 128, %s814, %s803
        $region100: #{tpu_custom_call.1} parent=95 // pred_fallthru
          _
        // Predicated region
        $region101: #{tpu_custom_call.1} parent=95 // pred_check
          %p817 = pneg %p98
        $region102: #{tpu_custom_call.1} parent=95 // pred_check_branch
          %819 = sbr.rel (%p817) target = $region104
        $region103: #{tpu_custom_call.1} parent=95 // pred_region
          %s820 = sand.u32 %s52, 1
          %s821 = scalar_lea.sflag [#allocation6], %s820
          %s822 = sand.u32 %s88, 1
          %s823 = smul.addr %s822, 8
          %s824 = scalar_lea.vmem [#allocation5], %s823
          %s826 = ssub.s32 128, 128
          %827 = vsyncadd %s821, %s826
          %s828 = smul.addr %s52, 128
          %s829 = scalar_lea.hbm %s1, %s828
          %s831 = sshll.u32 %s824, 4
          %s832 = int_to_ptr.vmem [resolvable:$true] %s831
          %834 = dma.hbm_to_vmem [thread:$0]  %s829, 128, %s832, %s821
        $region104: #{tpu_custom_call.1} parent=95 // pred_fallthru
          _
        // Predicated region
        $region105: #{tpu_custom_call.1} parent=95 // pred_check
          %p835 = pneg %p124
        $region106: #{tpu_custom_call.1} parent=95 // pred_check_branch
          %837 = sbr.rel (%p835) target = $region108
        $region107: #{tpu_custom_call.1} parent=95 // pred_region
          %s838 = sand.u32 %s52, 1
          %s839 = scalar_lea.sflag [#allocation6], %s838
          %s840 = sand.u32 %s114, 1
          %s841 = smul.addr %s840, 8
          %s842 = scalar_lea.vmem [#allocation7], %s841
          %s844 = ssub.s32 128, 128
          %845 = vsyncadd %s839, %s844
          %s846 = smul.addr %s52, 128
          %s847 = scalar_lea.hbm %s2, %s846
          %s849 = sshll.u32 %s842, 4
          %s850 = int_to_ptr.vmem [resolvable:$true] %s849
          %852 = dma.hbm_to_vmem [thread:$0]  %s847, 128, %s850, %s839
        $region108: #{tpu_custom_call.1} parent=95 // pred_fallthru
          _
        // Predicated region
        $region109: #{tpu_custom_call.1} parent=95 // pred_check
          %p853 = pneg %p150
        $region110: #{tpu_custom_call.1} parent=95 // pred_check_branch
          %855 = sbr.rel (%p853) target = $region112
        $region111: #{tpu_custom_call.1} parent=95 // pred_region
          %s856 = sand.u32 %s52, 1
          %s857 = scalar_lea.sflag [#allocation9], %s856
          %s858 = sand.u32 %s140, 1
          %s859 = scalar_lea.vmem [#allocation8], %s858
          %s861 = ssub.s32 16, 16
          %862 = vsyncadd %s857, %s861
          %s863 = smul.addr %s52, 16
          %s864 = scalar_lea.hbm %s3, %s863
          %s866 = sshll.u32 %s859, 4
          %s867 = int_to_ptr.vmem [resolvable:$true] %s866
          %869 = dma.hbm_to_vmem [thread:$0]  %s864, 16, %s867, %s857
        $region112: #{tpu_custom_call.1} parent=95 // pred_fallthru
          _
      $region96: #{tpu_custom_call.1} parent=5 // pred_fallthru
        _
      %p870 = scmp.le.s32.totalorder 1, %s52
      %p871 = scmp.lt.s32.totalorder %s52, 3
      %p872 = pnand %p870, %p871
      %p873 = pneg %p872
      // Predicated region
      $region113: #{tpu_custom_call.1} parent=5 // pred_check
        _
      $region114: #{tpu_custom_call.1} parent=5 // pred_check_branch
        %875 = sbr.rel (%p872) target = $region116
      $region115: #{tpu_custom_call.1} parent=5 // pred_region
        %s876 = ssub.s32 %s52, 1
        %s877 = sand.u32 %s65, 1
        %s878 = scalar_lea.sflag [#allocation3], %s877
        %s879 = sand.u32 %s65, 1
        %s880 = smul.addr %s879, 8
        %s881 = scalar_lea.vmem [#allocation2], %s880
        // Predicated region
        $region117: #{tpu_custom_call.1} parent=115 // pred_check
          %p882 = pneg %p78
        $region118: #{tpu_custom_call.1} parent=115 // pred_check_branch
          %884 = sbr.rel (%p882) target = $region120
        $region119: #{tpu_custom_call.1} parent=115 // pred_region
          %885 = dma.done %s878, 128
        $region120: #{tpu_custom_call.1} parent=115 // pred_fallthru
          _
        %s886 = sand.u32 %s57, 1
        %s887 = scalar_lea.sflag [#allocation6], %s886
        %s888 = sand.u32 %s91, 1
        %s889 = smul.addr %s888, 8
        %s890 = scalar_lea.vmem [#allocation5], %s889
        // Predicated region
        $region121: #{tpu_custom_call.1} parent=115 // pred_check
          %p891 = pneg %p104
        $region122: #{tpu_custom_call.1} parent=115 // pred_check_branch
          %893 = sbr.rel (%p891) target = $region124
        $region123: #{tpu_custom_call.1} parent=115 // pred_region
          %894 = dma.done %s887, 128
        $region124: #{tpu_custom_call.1} parent=115 // pred_fallthru
          _
        %s895 = sand.u32 %s57, 1
        %s896 = scalar_lea.sflag [#allocation6], %s895
        %s897 = sand.u32 %s117, 1
        %s898 = smul.addr %s897, 8
        %s899 = scalar_lea.vmem [#allocation7], %s898
        // Predicated region
        $region125: #{tpu_custom_call.1} parent=115 // pred_check
          %p900 = pneg %p130
        $region126: #{tpu_custom_call.1} parent=115 // pred_check_branch
          %902 = sbr.rel (%p900) target = $region128
        $region127: #{tpu_custom_call.1} parent=115 // pred_region
          %903 = dma.done %s896, 128
        $region128: #{tpu_custom_call.1} parent=115 // pred_fallthru
          _
        %s904 = sand.u32 %s57, 1
        %s905 = scalar_lea.sflag [#allocation9], %s904
        %s906 = sand.u32 %s143, 1
        %s907 = scalar_lea.vmem [#allocation8], %s906
        // Predicated region
        $region129: #{tpu_custom_call.1} parent=115 // pred_check
          %p908 = pneg %p156
        $region130: #{tpu_custom_call.1} parent=115 // pred_check_branch
          %910 = sbr.rel (%p908) target = $region132
        $region131: #{tpu_custom_call.1} parent=115 // pred_region
          %911 = dma.done %s905, 16
        $region132: #{tpu_custom_call.1} parent=115 // pred_fallthru
          _
        // Predicated region
        $region133: #{tpu_custom_call.1} parent=115 // pred_check
          %p912 = pneg %p198
        $region134: #{tpu_custom_call.1} parent=115 // pred_check_branch
          %914 = sbr.rel (%p912) target = $region136
        $region135: #{tpu_custom_call.1} parent=115 // pred_region
          %915 = dma.done [#allocation9], 16
        $region136: #{tpu_custom_call.1} parent=115 // pred_fallthru
          _
        // Predicated region
        $region137: #{tpu_custom_call.1} parent=115 // pred_check
          %p916 = pneg %p240
        $region138: #{tpu_custom_call.1} parent=115 // pred_check_branch
          %918 = sbr.rel (%p916) target = $region140
        $region139: #{tpu_custom_call.1} parent=115 // pred_region
          %919 = dma.done [#allocation12], 16
        $region140: #{tpu_custom_call.1} parent=115 // pred_fallthru
          _
        // Predicated region
        $region141: #{tpu_custom_call.1} parent=115 // pred_check
          %p920 = pneg %p282
        $region142: #{tpu_custom_call.1} parent=115 // pred_check_branch
          %922 = sbr.rel (%p920) target = $region144
        $region143: #{tpu_custom_call.1} parent=115 // pred_region
          %923 = dma.done [#allocation12], 16
        $region144: #{tpu_custom_call.1} parent=115 // pred_fallthru
          _
        // Predicated region
        $region145: #{tpu_custom_call.1} parent=115 // pred_check
          %p924 = pneg %p324
        $region146: #{tpu_custom_call.1} parent=115 // pred_check_branch
          %926 = sbr.rel (%p924) target = $region148
        $region147: #{tpu_custom_call.1} parent=115 // pred_region
          %927 = dma.done [#allocation15], 16
        $region148: #{tpu_custom_call.1} parent=115 // pred_fallthru
          _
        // Predicated region
        $region149: #{tpu_custom_call.1} parent=115 // pred_check
          %p928 = pneg %p345
        $region150: #{tpu_custom_call.1} parent=115 // pred_check_branch
          %930 = sbr.rel (%p928) target = $region152
        $region151: #{tpu_custom_call.1} parent=115 // pred_region
          %931 = dma.done [#allocation15], 512
        $region152: #{tpu_custom_call.1} parent=115 // pred_fallthru
          _
        // Predicated region
        $region153: #{tpu_custom_call.1} parent=115 // pred_check
          %p932 = pneg %p366
        $region154: #{tpu_custom_call.1} parent=115 // pred_check_branch
          %934 = sbr.rel (%p932) target = $region156
        $region155: #{tpu_custom_call.1} parent=115 // pred_region
          %935 = dma.done [#allocation18], 16
        $region156: #{tpu_custom_call.1} parent=115 // pred_fallthru
          _
        // Predicated region
        $region157: #{tpu_custom_call.1} parent=115 // pred_check
          %p936 = pneg %p387
        $region158: #{tpu_custom_call.1} parent=115 // pred_check_branch
          %938 = sbr.rel (%p936) target = $region160
        $region159: #{tpu_custom_call.1} parent=115 // pred_region
          %939 = dma.done [#allocation18], 16
        $region160: #{tpu_custom_call.1} parent=115 // pred_fallthru
          _
        // Predicated region
        $region161: #{tpu_custom_call.1} parent=115 // pred_check
          %p940 = pneg %p408
        $region162: #{tpu_custom_call.1} parent=115 // pred_check_branch
          %942 = sbr.rel (%p940) target = $region164
        $region163: #{tpu_custom_call.1} parent=115 // pred_region
          %943 = dma.done [#allocation21], 16
        $region164: #{tpu_custom_call.1} parent=115 // pred_fallthru
          _
        // Predicated region
        $region165: #{tpu_custom_call.1} parent=115 // pred_check
          %p944 = pneg %p429
        $region166: #{tpu_custom_call.1} parent=115 // pred_check_branch
          %946 = sbr.rel (%p944) target = $region168
        $region167: #{tpu_custom_call.1} parent=115 // pred_region
          %947 = dma.done [#allocation21], 16
        $region168: #{tpu_custom_call.1} parent=115 // pred_fallthru
          _
        // Predicated region
        $region169: #{tpu_custom_call.1} parent=115 // pred_check
          %p948 = pneg %p450
        $region170: #{tpu_custom_call.1} parent=115 // pred_check_branch
          %950 = sbr.rel (%p948) target = $region172
        $region171: #{tpu_custom_call.1} parent=115 // pred_region
          %951 = dma.done [#allocation24], 16
        $region172: #{tpu_custom_call.1} parent=115 // pred_fallthru
          _
        // Predicated region
        $region173: #{tpu_custom_call.1} parent=115 // pred_check
          %p952 = pneg %p513
        $region174: #{tpu_custom_call.1} parent=115 // pred_check_branch
          %954 = sbr.rel (%p952) target = $region176
        $region175: #{tpu_custom_call.1} parent=115 // pred_region
          %955 = dma.done [#allocation24], 512
        $region176: #{tpu_custom_call.1} parent=115 // pred_fallthru
          _
        %s956 = sand.u32 %s65, 1
        %s957 = scalar_lea.sflag [#allocation3], %s956
        %s958 = sand.u32 %s65, 1
        %s959 = smul.addr %s958, 8
        %s960 = scalar_lea.vmem [#allocation2], %s959
        %p961 = pneg %p78
        %p962 = pneg %p75
        %s963 = sand.u32 %s57, 1
        %s964 = scalar_lea.sflag [#allocation6], %s963
        %s965 = sand.u32 %s91, 1
        %s966 = smul.addr %s965, 8
        %s967 = scalar_lea.vmem [#allocation5], %s966
        %p968 = pneg %p104
        %p969 = pneg %p101
        %s970 = sand.u32 %s57, 1
        %s971 = scalar_lea.sflag [#allocation6], %s970
        %s972 = sand.u32 %s117, 1
        %s973 = smul.addr %s972, 8
        %s974 = scalar_lea.vmem [#allocation7], %s973
        %p975 = pneg %p130
        %p976 = pneg %p127
        %s977 = sand.u32 %s57, 1
        %s978 = scalar_lea.sflag [#allocation9], %s977
        %s979 = sand.u32 %s143, 1
        %s980 = scalar_lea.vmem [#allocation8], %s979
        %p981 = pneg %p156
        %p982 = pneg %p153
        %p983 = pneg %p177
        %p984 = pneg %p174
        %p985 = pneg %p198
        %p986 = pneg %p195
        %p987 = pneg %p219
        %p988 = pneg %p216
        %p989 = pneg %p240
        %p990 = pneg %p237
        %p991 = pneg %p261
        %p992 = pneg %p258
        %p993 = pneg %p282
        %p994 = pneg %p279
        %p995 = pneg %p303
        %p996 = pneg %p300
        %p997 = pneg %p324
        %p998 = pneg %p321
        %p999 = pneg %p345
        %p1000 = pneg %p342
        %p1001 = pneg %p366
        %p1002 = pneg %p363
        %p1003 = pneg %p387
        %p1004 = pneg %p384
        %p1005 = pneg %p408
        %p1006 = pneg %p405
        %p1007 = pneg %p429
        %p1008 = pneg %p426
        %p1009 = pneg %p450
        %p1010 = pneg %p447
        %p1011 = pneg %p471
        %p1012 = pneg %p468
        %p1013 = pneg %p492
        %p1014 = pneg %p489
        %p1015 = pneg %p513
        %p1016 = pneg %p510
        %p1017 = pneg %p534
        %p1018 = pneg %p531
        %p1019 = pneg %p555
        %p1020 = pneg %p552
        %p1021 = pneg %p576
        %p1022 = pneg %p573
        %p1023 = pneg %p602
        %p1024 = pneg %p599
        %s1025 = sand.u32 %s589, 1
        %s1026 = scalar_lea.sflag [#allocation4], %s1025
        %s1027 = sand.u32 %s589, 1
        %s1028 = smul.addr %s1027, 8
        %s1029 = scalar_lea.vmem [#allocation26], %s1028
        %p1030 = pneg %p628
        %p1031 = pneg %p625
        %s1032 = sand.u32 %s615, 1
        %s1033 = scalar_lea.sflag [#allocation28], %s1032
        %s1034 = sand.u32 %s615, 1
        %s1035 = smul.addr %s1034, 32
        %s1036 = scalar_lea.vmem [#allocation27], %s1035
        %v1037 = vld [vmem:[%s881] sm:$0xff]
        %v1038 = vld [vmem:[%s890] sm:$0xff]
        %v1039 = vld [vmem:[%s899] sm:$0xff]
        %v1040 = vld [vmem:[%s907] sm:$0x1]
        %v1041 = vld [vmem:[%s4] sm:$0xff]
        %v1042 = vld [vmem:[%s4 + $0x8] sm:$0xff]
        %v1043 = vld [vmem:[%s4 + $0x10] sm:$0xff]
        %v1044 = vld [vmem:[%s4 + $0x18] sm:$0xff]
        %v1045 = vld [vmem:[#allocation10] sm:$0x1]
        %v1047 = vlaneseq
        %v1048 = vshrl.u32 %v1047, 7
        %v1049 = vsub.s32 0, %v1048
        %v1050 = vrot.slane %v1045, %v1049
        %vm1052 = vcmask 261120
        %v1054 = vsel %vm1052, %v1037, 0
        %1056 = vmatprep.subr.mxu0 0.0
        %1057 = vmatpush1.msra.mxu0 %v1041
        %1058 = vmatprep.subr.mxu0 0.0
        %1059 = vmatpush1.msra.mxu0 %v1042
        %1060 = vmatprep.subr.mxu0 0.0
        %1061 = vmatpush1.msra.mxu0 %v1043
        %1062 = vmatprep.subr.mxu0 0.0
        %1063 = vmatpush1.msra.mxu0 %v1044
        %1064 = vmatprep.subr.mxu0 0.0
        %1065 = vmatpush1.msra.mxu0 0.0
        %1066 = vmatprep.subr.mxu0 0.0
        %1067 = vmatpush1.msra.mxu0 0.0
        %1068 = vmatprep.subr.mxu0 0.0
        %1069 = vmatpush1.msra.mxu0 0.0
        %1070 = vmatprep.subr.mxu0 0.0
        %1071 = vmatpush1.msra.mxu0 0.0
        %1072 = vmatprep.subr.mxu0 0.0
        %1073 = vmatpush1.msra.mxu0 0.0
        %1074 = vmatprep.subr.mxu0 0.0
        %1075 = vmatpush1.msra.mxu0 0.0
        %1076 = vmatprep.subr.mxu0 0.0
        %1077 = vmatpush1.msra.mxu0 0.0
        %1078 = vmatprep.subr.mxu0 0.0
        %1079 = vmatpush1.msra.mxu0 0.0
        %1080 = vmatprep.subr.mxu0 0.0
        %1081 = vmatpush1.msra.mxu0 0.0
        %1082 = vmatprep.subr.mxu0 0.0
        %1083 = vmatpush1.msra.mxu0 0.0
        %1084 = vmatprep.subr.mxu0 0.0
        %1085 = vmatpush1.msra.mxu0 0.0
        %1086 = vmatprep.subr.mxu0 0.0
        %1087 = vmatpush1.msra.mxu0 0.0
        %1088 = vmatprep.subr.mxu0 0.0
        %1089 = vmatpush1.msra.mxu0 0.0
        %1090 = vmatprep.subr.mxu0 0.0
        %1091 = vmatpush1.msra.mxu0 0.0
        %1092 = vmatprep.subr.mxu0 0.0
        %1093 = vmatpush1.msra.mxu0 0.0
        %1094 = vmatprep.subr.mxu0 0.0
        %1095 = vmatpush1.msra.mxu0 0.0
        %1096 = vmatprep.subr.mxu0 0.0
        %1097 = vmatpush1.msra.mxu0 0.0
        %1098 = vmatprep.subr.mxu0 0.0
        %1099 = vmatpush1.msra.mxu0 0.0
        %1100 = vmatprep.subr.mxu0 0.0
        %1101 = vmatpush1.msra.mxu0 0.0
        %1102 = vmatprep.subr.mxu0 0.0
        %1103 = vmatpush1.msra.mxu0 0.0
        %1104 = vmatprep.subr.mxu0 0.0
        %1105 = vmatpush1.msra.mxu0 0.0
        %1106 = vmatprep.subr.mxu0 0.0
        %1107 = vmatpush1.msra.mxu0 0.0
        %1108 = vmatprep.subr.mxu0 0.0
        %1109 = vmatpush1.msra.mxu0 0.0
        %1110 = vmatprep.subr.mxu0 0.0
        %1111 = vmatpush1.msra.mxu0 0.0
        %1112 = vmatprep.subr.mxu0 0.0
        %1113 = vmatpush1.msra.mxu0 0.0
        %1114 = vmatprep.subr.mxu0 0.0
        %1115 = vmatpush1.msra.mxu0 0.0
        %1116 = vmatprep.subr.mxu0 0.0
        %1117 = vmatpush1.msra.mxu0 0.0
        %1118 = vmatprep.subr.mxu0 0.0
        %1119 = vmatpush1.msra.mxu0 0.0
        %1120 = vmatprep.mubr.f32.mxu0 0.0
        %1121 = vmatmul.mubr.f32.gmra.mrb[0].mxu0 %v1054
        %v1122 = vpop.f32.mrb[0].mxu0
        %v1123 = vadd.f32 %v1050, %v1122
        %v1124 = vpop.f32.mrb[0].mxu0
        %1125 = vdwg.mxu0
        %v1126 = vmul.f32 %v1123, 0.35355338
        %1128 = vrot.lane.b32.xlu0 %v1126, 120
        %v1129 = vpop.permute.xlu0 %1128
        %1131 = vrot.lane.b32.xlu0 %v1126, 112
        %v1132 = vpop.permute.xlu0 %1131
        %1134 = vrot.lane.b32.xlu0 %v1126, 104
        %v1135 = vpop.permute.xlu0 %1134
        %v1137 = vcombine.low %v1126, %v1132
        %v1138 = vcombine.high %v1126, %v1132
        %v1140 = vunpack.c.l.s4 1983009808
        %v1141 = vunpack.c.0.s8 %v1140
        %v1142 = vlaneseq
        %v1143 = vshrl.u32 %v1142, 7
        %v1144 = vsub.s32 %v1141, %v1143
        %v1145 = vrot.slane %v1137, %v1144
        %v1147 = vunpack.c.l.s4 1983009808
        %v1148 = vunpack.c.0.s8 %v1147
        %v1149 = vlaneseq
        %v1150 = vshrl.u32 %v1149, 7
        %v1151 = vsub.s32 %v1148, %v1150
        %v1152 = vrot.slane %v1138, %v1151
        %v1153 = vcombine.low %v1129, %v1135
        %v1154 = vcombine.high %v1129, %v1135
        %v1156 = vunpack.c.l.s4 1983009808
        %v1157 = vunpack.c.0.s8 %v1156
        %v1158 = vlaneseq
        %v1159 = vshrl.u32 %v1158, 7
        %v1160 = vsub.s32 %v1157, %v1159
        %v1161 = vrot.slane %v1153, %v1160
        %v1163 = vunpack.c.l.s4 1983009808
        %v1164 = vunpack.c.0.s8 %v1163
        %v1165 = vlaneseq
        %v1166 = vshrl.u32 %v1165, 7
        %v1167 = vsub.s32 %v1164, %v1166
        %v1168 = vrot.slane %v1154, %v1167
        %v1169 = vcombine.low %v1145, %v1161
        %v1170 = vcombine.high %v1145, %v1161
        %v1172 = vunpack.c.l.s4 1934713408
        %v1173 = vunpack.c.0.s8 %v1172
        %v1174 = vlaneseq
        %v1175 = vshrl.u32 %v1174, 7
        %v1176 = vsub.s32 %v1173, %v1175
        %v1177 = vrot.slane %v1169, %v1176
        %v1179 = vunpack.c.l.s4 1934713408
        %v1180 = vunpack.c.0.s8 %v1179
        %v1181 = vlaneseq
        %v1182 = vshrl.u32 %v1181, 7
        %v1183 = vsub.s32 %v1180, %v1182
        %v1184 = vrot.slane %v1170, %v1183
        %v1185 = vcombine.low %v1152, %v1168
        %v1186 = vcombine.high %v1152, %v1168
        %v1188 = vunpack.c.l.s4 1934713408
        %v1189 = vunpack.c.0.s8 %v1188
        %v1190 = vlaneseq
        %v1191 = vshrl.u32 %v1190, 7
        %v1192 = vsub.s32 %v1189, %v1191
        %v1193 = vrot.slane %v1185, %v1192
        %v1195 = vunpack.c.l.s4 1934713408
        %v1196 = vunpack.c.0.s8 %v1195
        %v1197 = vlaneseq
        %v1198 = vshrl.u32 %v1197, 7
        %v1199 = vsub.s32 %v1196, %v1198
        %v1200 = vrot.slane %v1186, %v1199
        %v1201 = vcombine.high %v1177, 0.0
        %v1202 = vcombine.high %v1184, 0.0
        %v1203 = vcombine.high %v1193, 0.0
        %v1204 = vcombine.high %v1200, 0.0
        %v1205 = vcombine.low %v1177, %v1184
        %v1207 = vunpack.c.l.s4 1983009808
        %v1208 = vunpack.c.0.s8 %v1207
        %v1209 = vlaneseq
        %v1210 = vshrl.u32 %v1209, 7
        %v1211 = vsub.s32 %v1208, %v1210
        %v1212 = vrot.slane %v1205, %v1211
        %v1213 = vcombine.low %v1201, %v1202
        %v1215 = vunpack.c.l.s4 1983009808
        %v1216 = vunpack.c.0.s8 %v1215
        %v1217 = vlaneseq
        %v1218 = vshrl.u32 %v1217, 7
        %v1219 = vsub.s32 %v1216, %v1218
        %v1220 = vrot.slane %v1213, %v1219
        %v1221 = vcombine.low %v1193, %v1200
        %v1223 = vunpack.c.l.s4 1983009808
        %v1224 = vunpack.c.0.s8 %v1223
        %v1225 = vlaneseq
        %v1226 = vshrl.u32 %v1225, 7
        %v1227 = vsub.s32 %v1224, %v1226
        %v1228 = vrot.slane %v1221, %v1227
        %v1229 = vcombine.low %v1203, %v1204
        %v1231 = vunpack.c.l.s4 1983009808
        %v1232 = vunpack.c.0.s8 %v1231
        %v1233 = vlaneseq
        %v1234 = vshrl.u32 %v1233, 7
        %v1235 = vsub.s32 %v1232, %v1234
        %v1236 = vrot.slane %v1229, %v1235
        %v1237 = vcombine.low %v1212, %v1220
        %v1238 = vcombine.high %v1212, %v1220
        %v1240 = vunpack.c.l.s4 1934713408
        %v1241 = vunpack.c.0.s8 %v1240
        %v1242 = vlaneseq
        %v1243 = vshrl.u32 %v1242, 7
        %v1244 = vsub.s32 %v1241, %v1243
        %v1245 = vrot.slane %v1237, %v1244
        %v1247 = vunpack.c.l.s4 1934713408
        %v1248 = vunpack.c.0.s8 %v1247
        %v1249 = vlaneseq
        %v1250 = vshrl.u32 %v1249, 7
        %v1251 = vsub.s32 %v1248, %v1250
        %v1252 = vrot.slane %v1238, %v1251
        %v1253 = vcombine.low %v1228, %v1236
        %v1254 = vcombine.high %v1228, %v1236
        %v1256 = vunpack.c.l.s4 1934713408
        %v1257 = vunpack.c.0.s8 %v1256
        %v1258 = vlaneseq
        %v1259 = vshrl.u32 %v1258, 7
        %v1260 = vsub.s32 %v1257, %v1259
        %v1261 = vrot.slane %v1253, %v1260
        %v1263 = vunpack.c.l.s4 1934713408
        %v1264 = vunpack.c.0.s8 %v1263
        %v1265 = vlaneseq
        %v1266 = vshrl.u32 %v1265, 7
        %v1267 = vsub.s32 %v1264, %v1266
        %v1268 = vrot.slane %v1254, %v1267
        %v1269 = vcombine.low %v1245, %v1261
        %v1270 = vcombine.high %v1245, %v1261
        %v1271 = vcombine.low %v1252, %v1268
        %v1272 = vcombine.high %v1252, %v1268
        %1274 = vrot.lane.b32.xlu0 %v1123, 120
        %v1275 = vpop.permute.xlu0 %1274
        %1276 = vrot.lane.b32.xlu0 %v1123, 112
        %v1277 = vpop.permute.xlu0 %1276
        %1278 = vrot.lane.b32.xlu0 %v1123, 104
        %v1279 = vpop.permute.xlu0 %1278
        %1280 = vrot.lane.b32.xlu0 %v1123, 96
        %v1281 = vpop.permute.xlu0 %1280
        %1282 = vrot.lane.b32.xlu0 %v1275, 96
        %v1283 = vpop.permute.xlu0 %1282
        %1284 = vrot.lane.b32.xlu0 %v1277, 96
        %v1285 = vpop.permute.xlu0 %1284
        %1286 = vrot.lane.b32.xlu0 %v1279, 96
        %v1287 = vpop.permute.xlu0 %1286
        %v1292 = vcombine.low %v1281, %v1285
        %v1293 = vcombine.high %v1281, %v1285
        %v1295 = vunpack.c.l.s4 1983009808
        %v1296 = vunpack.c.0.s8 %v1295
        %v1297 = vlaneseq
        %v1298 = vshrl.u32 %v1297, 7
        %v1299 = vsub.s32 %v1296, %v1298
        %v1300 = vrot.slane %v1292, %v1299
        %v1302 = vunpack.c.l.s4 1983009808
        %v1303 = vunpack.c.0.s8 %v1302
        %v1304 = vlaneseq
        %v1305 = vshrl.u32 %v1304, 7
        %v1306 = vsub.s32 %v1303, %v1305
        %v1307 = vrot.slane %v1293, %v1306
        %v1308 = vcombine.low %v1283, %v1287
        %v1309 = vcombine.high %v1283, %v1287
        %v1311 = vunpack.c.l.s4 1983009808
        %v1312 = vunpack.c.0.s8 %v1311
        %v1313 = vlaneseq
        %v1314 = vshrl.u32 %v1313, 7
        %v1315 = vsub.s32 %v1312, %v1314
        %v1316 = vrot.slane %v1308, %v1315
        %v1318 = vunpack.c.l.s4 1983009808
        %v1319 = vunpack.c.0.s8 %v1318
        %v1320 = vlaneseq
        %v1321 = vshrl.u32 %v1320, 7
        %v1322 = vsub.s32 %v1319, %v1321
        %v1323 = vrot.slane %v1309, %v1322
        %v1324 = vcombine.low %v1300, %v1316
        %v1325 = vcombine.high %v1300, %v1316
        %v1327 = vunpack.c.l.s4 1934713408
        %v1328 = vunpack.c.0.s8 %v1327
        %v1329 = vlaneseq
        %v1330 = vshrl.u32 %v1329, 7
        %v1331 = vsub.s32 %v1328, %v1330
        %v1332 = vrot.slane %v1324, %v1331
        %v1334 = vunpack.c.l.s4 1934713408
        %v1335 = vunpack.c.0.s8 %v1334
        %v1336 = vlaneseq
        %v1337 = vshrl.u32 %v1336, 7
        %v1338 = vsub.s32 %v1335, %v1337
        %v1339 = vrot.slane %v1325, %v1338
        %v1340 = vcombine.low %v1307, %v1323
        %v1341 = vcombine.high %v1307, %v1323
        %v1343 = vunpack.c.l.s4 1934713408
        %v1344 = vunpack.c.0.s8 %v1343
        %v1345 = vlaneseq
        %v1346 = vshrl.u32 %v1345, 7
        %v1347 = vsub.s32 %v1344, %v1346
        %v1348 = vrot.slane %v1340, %v1347
        %v1350 = vunpack.c.l.s4 1934713408
        %v1351 = vunpack.c.0.s8 %v1350
        %v1352 = vlaneseq
        %v1353 = vshrl.u32 %v1352, 7
        %v1354 = vsub.s32 %v1351, %v1353
        %v1355 = vrot.slane %v1341, %v1354
        %v1356 = vcombine.high %v1332, 0.0
        %v1357 = vcombine.high %v1339, 0.0
        %v1358 = vcombine.high %v1348, 0.0
        %v1359 = vcombine.high %v1355, 0.0
        %v1360 = vcombine.low %v1332, %v1339
        %v1362 = vunpack.c.l.s4 1983009808
        %v1363 = vunpack.c.0.s8 %v1362
        %v1364 = vlaneseq
        %v1365 = vshrl.u32 %v1364, 7
        %v1366 = vsub.s32 %v1363, %v1365
        %v1367 = vrot.slane %v1360, %v1366
        %v1368 = vcombine.low %v1356, %v1357
        %v1370 = vunpack.c.l.s4 1983009808
        %v1371 = vunpack.c.0.s8 %v1370
        %v1372 = vlaneseq
        %v1373 = vshrl.u32 %v1372, 7
        %v1374 = vsub.s32 %v1371, %v1373
        %v1375 = vrot.slane %v1368, %v1374
        %v1376 = vcombine.low %v1348, %v1355
        %v1378 = vunpack.c.l.s4 1983009808
        %v1379 = vunpack.c.0.s8 %v1378
        %v1380 = vlaneseq
        %v1381 = vshrl.u32 %v1380, 7
        %v1382 = vsub.s32 %v1379, %v1381
        %v1383 = vrot.slane %v1376, %v1382
        %v1384 = vcombine.low %v1358, %v1359
        %v1386 = vunpack.c.l.s4 1983009808
        %v1387 = vunpack.c.0.s8 %v1386
        %v1388 = vlaneseq
        %v1389 = vshrl.u32 %v1388, 7
        %v1390 = vsub.s32 %v1387, %v1389
        %v1391 = vrot.slane %v1384, %v1390
        %v1392 = vcombine.low %v1367, %v1375
        %v1393 = vcombine.high %v1367, %v1375
        %v1395 = vunpack.c.l.s4 1934713408
        %v1396 = vunpack.c.0.s8 %v1395
        %v1397 = vlaneseq
        %v1398 = vshrl.u32 %v1397, 7
        %v1399 = vsub.s32 %v1396, %v1398
        %v1400 = vrot.slane %v1392, %v1399
        %v1402 = vunpack.c.l.s4 1934713408
        %v1403 = vunpack.c.0.s8 %v1402
        %v1404 = vlaneseq
        %v1405 = vshrl.u32 %v1404, 7
        %v1406 = vsub.s32 %v1403, %v1405
        %v1407 = vrot.slane %v1393, %v1406
        %v1408 = vcombine.low %v1383, %v1391
        %v1409 = vcombine.high %v1383, %v1391
        %v1411 = vunpack.c.l.s4 1934713408
        %v1412 = vunpack.c.0.s8 %v1411
        %v1413 = vlaneseq
        %v1414 = vshrl.u32 %v1413, 7
        %v1415 = vsub.s32 %v1412, %v1414
        %v1416 = vrot.slane %v1408, %v1415
        %v1418 = vunpack.c.l.s4 1934713408
        %v1419 = vunpack.c.0.s8 %v1418
        %v1420 = vlaneseq
        %v1421 = vshrl.u32 %v1420, 7
        %v1422 = vsub.s32 %v1419, %v1421
        %v1423 = vrot.slane %v1409, %v1422
        %v1424 = vcombine.low %v1400, %v1416
        %v1425 = vcombine.high %v1400, %v1416
        %v1426 = vcombine.low %v1407, %v1423
        %v1427 = vcombine.high %v1407, %v1423
        %1428 = vrot.lane.b32.xlu0 %v1123, 64
        %v1429 = vpop.permute.xlu0 %1428
        %1430 = vrot.lane.b32.xlu0 %v1275, 64
        %v1431 = vpop.permute.xlu0 %1430
        %1432 = vrot.lane.b32.xlu0 %v1277, 64
        %v1433 = vpop.permute.xlu0 %1432
        %1434 = vrot.lane.b32.xlu0 %v1279, 64
        %v1435 = vpop.permute.xlu0 %1434
        %v1440 = vcombine.low %v1429, %v1433
        %v1441 = vcombine.high %v1429, %v1433
        %v1443 = vunpack.c.l.s4 1983009808
        %v1444 = vunpack.c.0.s8 %v1443
        %v1445 = vlaneseq
        %v1446 = vshrl.u32 %v1445, 7
        %v1447 = vsub.s32 %v1444, %v1446
        %v1448 = vrot.slane %v1440, %v1447
        %v1450 = vunpack.c.l.s4 1983009808
        %v1451 = vunpack.c.0.s8 %v1450
        %v1452 = vlaneseq
        %v1453 = vshrl.u32 %v1452, 7
        %v1454 = vsub.s32 %v1451, %v1453
        %v1455 = vrot.slane %v1441, %v1454
        %v1456 = vcombine.low %v1431, %v1435
        %v1457 = vcombine.high %v1431, %v1435
        %v1459 = vunpack.c.l.s4 1983009808
        %v1460 = vunpack.c.0.s8 %v1459
        %v1461 = vlaneseq
        %v1462 = vshrl.u32 %v1461, 7
        %v1463 = vsub.s32 %v1460, %v1462
        %v1464 = vrot.slane %v1456, %v1463
        %v1466 = vunpack.c.l.s4 1983009808
        %v1467 = vunpack.c.0.s8 %v1466
        %v1468 = vlaneseq
        %v1469 = vshrl.u32 %v1468, 7
        %v1470 = vsub.s32 %v1467, %v1469
        %v1471 = vrot.slane %v1457, %v1470
        %v1472 = vcombine.low %v1448, %v1464
        %v1473 = vcombine.high %v1448, %v1464
        %v1475 = vunpack.c.l.s4 1934713408
        %v1476 = vunpack.c.0.s8 %v1475
        %v1477 = vlaneseq
        %v1478 = vshrl.u32 %v1477, 7
        %v1479 = vsub.s32 %v1476, %v1478
        %v1480 = vrot.slane %v1472, %v1479
        %v1482 = vunpack.c.l.s4 1934713408
        %v1483 = vunpack.c.0.s8 %v1482
        %v1484 = vlaneseq
        %v1485 = vshrl.u32 %v1484, 7
        %v1486 = vsub.s32 %v1483, %v1485
        %v1487 = vrot.slane %v1473, %v1486
        %v1488 = vcombine.low %v1455, %v1471
        %v1489 = vcombine.high %v1455, %v1471
        %v1491 = vunpack.c.l.s4 1934713408
        %v1492 = vunpack.c.0.s8 %v1491
        %v1493 = vlaneseq
        %v1494 = vshrl.u32 %v1493, 7
        %v1495 = vsub.s32 %v1492, %v1494
        %v1496 = vrot.slane %v1488, %v1495
        %v1498 = vunpack.c.l.s4 1934713408
        %v1499 = vunpack.c.0.s8 %v1498
        %v1500 = vlaneseq
        %v1501 = vshrl.u32 %v1500, 7
        %v1502 = vsub.s32 %v1499, %v1501
        %v1503 = vrot.slane %v1489, %v1502
        %v1504 = vcombine.high %v1480, 0.0
        %v1505 = vcombine.high %v1487, 0.0
        %v1506 = vcombine.high %v1496, 0.0
        %v1507 = vcombine.high %v1503, 0.0
        %v1508 = vcombine.low %v1480, %v1487
        %v1510 = vunpack.c.l.s4 1983009808
        %v1511 = vunpack.c.0.s8 %v1510
        %v1512 = vlaneseq
        %v1513 = vshrl.u32 %v1512, 7
        %v1514 = vsub.s32 %v1511, %v1513
        %v1515 = vrot.slane %v1508, %v1514
        %v1516 = vcombine.low %v1504, %v1505
        %v1518 = vunpack.c.l.s4 1983009808
        %v1519 = vunpack.c.0.s8 %v1518
        %v1520 = vlaneseq
        %v1521 = vshrl.u32 %v1520, 7
        %v1522 = vsub.s32 %v1519, %v1521
        %v1523 = vrot.slane %v1516, %v1522
        %v1524 = vcombine.low %v1496, %v1503
        %v1526 = vunpack.c.l.s4 1983009808
        %v1527 = vunpack.c.0.s8 %v1526
        %v1528 = vlaneseq
        %v1529 = vshrl.u32 %v1528, 7
        %v1530 = vsub.s32 %v1527, %v1529
        %v1531 = vrot.slane %v1524, %v1530
        %v1532 = vcombine.low %v1506, %v1507
        %v1534 = vunpack.c.l.s4 1983009808
        %v1535 = vunpack.c.0.s8 %v1534
        %v1536 = vlaneseq
        %v1537 = vshrl.u32 %v1536, 7
        %v1538 = vsub.s32 %v1535, %v1537
        %v1539 = vrot.slane %v1532, %v1538
        %v1540 = vcombine.low %v1515, %v1523
        %v1541 = vcombine.high %v1515, %v1523
        %v1543 = vunpack.c.l.s4 1934713408
        %v1544 = vunpack.c.0.s8 %v1543
        %v1545 = vlaneseq
        %v1546 = vshrl.u32 %v1545, 7
        %v1547 = vsub.s32 %v1544, %v1546
        %v1548 = vrot.slane %v1540, %v1547
        %v1550 = vunpack.c.l.s4 1934713408
        %v1551 = vunpack.c.0.s8 %v1550
        %v1552 = vlaneseq
        %v1553 = vshrl.u32 %v1552, 7
        %v1554 = vsub.s32 %v1551, %v1553
        %v1555 = vrot.slane %v1541, %v1554
        %v1556 = vcombine.low %v1531, %v1539
        %v1557 = vcombine.high %v1531, %v1539
        %v1559 = vunpack.c.l.s4 1934713408
        %v1560 = vunpack.c.0.s8 %v1559
        %v1561 = vlaneseq
        %v1562 = vshrl.u32 %v1561, 7
        %v1563 = vsub.s32 %v1560, %v1562
        %v1564 = vrot.slane %v1556, %v1563
        %v1566 = vunpack.c.l.s4 1934713408
        %v1567 = vunpack.c.0.s8 %v1566
        %v1568 = vlaneseq
        %v1569 = vshrl.u32 %v1568, 7
        %v1570 = vsub.s32 %v1567, %v1569
        %v1571 = vrot.slane %v1557, %v1570
        %v1572 = vcombine.low %v1548, %v1564
        %v1573 = vcombine.high %v1548, %v1564
        %v1574 = vcombine.low %v1555, %v1571
        %v1575 = vcombine.high %v1555, %v1571
        %vm1576 = vcmask 64512
        %v1578 = vsel %vm1576, %v1269, 0
        %v1581 = vsel %vm1576, %v1424, 0
        %1583 = vmatprep.subr.mxu0 0.0
        %1584 = vmatpush1.xpose.msra.mxu0 %v1581
        %1585 = vmatprep.subr.mxu0 0.0
        %1586 = vmatpush1.xpose.msra.mxu0 0.0
        %1587 = vmatprep.subr.mxu0 0.0
        %1588 = vmatpush1.xpose.msra.mxu0 0.0
        %1589 = vmatprep.subr.mxu0 0.0
        %1590 = vmatpush1.xpose.msra.mxu0 0.0
        %1591 = vmatprep.subr.mxu0 0.0
        %1592 = vmatpush1.xpose.msra.mxu0 0.0
        %1593 = vmatprep.subr.mxu0 0.0
        %1594 = vmatpush1.xpose.msra.mxu0 0.0
        %1595 = vmatprep.subr.mxu0 0.0
        %1596 = vmatpush1.xpose.msra.mxu0 0.0
        %1597 = vmatprep.subr.mxu0 0.0
        %1598 = vmatpush1.xpose.msra.mxu0 0.0
        %1599 = vmatprep.subr.mxu0 0.0
        %1600 = vmatpush1.xpose.msra.mxu0 0.0
        %1601 = vmatprep.subr.mxu0 0.0
        %1602 = vmatpush1.xpose.msra.mxu0 0.0
        %1603 = vmatprep.subr.mxu0 0.0
        %1604 = vmatpush1.xpose.msra.mxu0 0.0
        %1605 = vmatprep.subr.mxu0 0.0
        %1606 = vmatpush1.xpose.msra.mxu0 0.0
        %1607 = vmatprep.subr.mxu0 0.0
        %1608 = vmatpush1.xpose.msra.mxu0 0.0
        %1609 = vmatprep.subr.mxu0 0.0
        %1610 = vmatpush1.xpose.msra.mxu0 0.0
        %1611 = vmatprep.subr.mxu0 0.0
        %1612 = vmatpush1.xpose.msra.mxu0 0.0
        %1613 = vmatprep.subr.mxu0 0.0
        %1614 = vmatpush1.xpose.msra.mxu0 0.0
        %1615 = vmatprep.subr.mxu0 0.0
        %1616 = vmatpush1.xpose.msra.mxu0 0.0
        %1617 = vmatprep.subr.mxu0 0.0
        %1618 = vmatpush1.xpose.msra.mxu0 0.0
        %1619 = vmatprep.subr.mxu0 0.0
        %1620 = vmatpush1.xpose.msra.mxu0 0.0
        %1621 = vmatprep.subr.mxu0 0.0
        %1622 = vmatpush1.xpose.msra.mxu0 0.0
        %1623 = vmatprep.subr.mxu0 0.0
        %1624 = vmatpush1.xpose.msra.mxu0 0.0
        %1625 = vmatprep.subr.mxu0 0.0
        %1626 = vmatpush1.xpose.msra.mxu0 0.0
        %1627 = vmatprep.subr.mxu0 0.0
        %1628 = vmatpush1.xpose.msra.mxu0 0.0
        %1629 = vmatprep.subr.mxu0 0.0
        %1630 = vmatpush1.xpose.msra.mxu0 0.0
        %1631 = vmatprep.subr.mxu0 0.0
        %1632 = vmatpush1.xpose.msra.mxu0 0.0
        %1633 = vmatprep.subr.mxu0 0.0
        %1634 = vmatpush1.xpose.msra.mxu0 0.0
        %1635 = vmatprep.subr.mxu0 0.0
        %1636 = vmatpush1.xpose.msra.mxu0 0.0
        %1637 = vmatprep.subr.mxu0 0.0
        %1638 = vmatpush1.xpose.msra.mxu0 0.0
        %1639 = vmatprep.subr.mxu0 0.0
        %1640 = vmatpush1.xpose.msra.mxu0 0.0
        %1641 = vmatprep.subr.mxu0 0.0
        %1642 = vmatpush1.xpose.msra.mxu0 0.0
        %1643 = vmatprep.subr.mxu0 0.0
        %1644 = vmatpush1.xpose.msra.mxu0 0.0
        %1645 = vmatprep.subr.mxu0 0.0
        %1646 = vmatpush1.xpose.msra.mxu0 0.0
        %1647 = vmatprep.mubr.f32.mxu0 0.0
        %1648 = vmatmul.mubr.f32.gmra.mrb[0].mxu0 %v1578
        %v1649 = vpop.f32.mrb[0].mxu0
        %v1650 = vadd.f32 0.0, %v1649
        %v1651 = vpop.f32.mrb[0].mxu0
        %1652 = vdwg.mxu0
        %v1654 = vsel %vm1576, %v1270, 0
        %v1657 = vsel %vm1576, %v1425, 0
        %1659 = vmatprep.subr.mxu0 0.0
        %1660 = vmatpush1.xpose.msra.mxu0 %v1657
        %1661 = vmatprep.subr.mxu0 0.0
        %1662 = vmatpush1.xpose.msra.mxu0 0.0
        %1663 = vmatprep.subr.mxu0 0.0
        %1664 = vmatpush1.xpose.msra.mxu0 0.0
        %1665 = vmatprep.subr.mxu0 0.0
        %1666 = vmatpush1.xpose.msra.mxu0 0.0
        %1667 = vmatprep.subr.mxu0 0.0
        %1668 = vmatpush1.xpose.msra.mxu0 0.0
        %1669 = vmatprep.subr.mxu0 0.0
        %1670 = vmatpush1.xpose.msra.mxu0 0.0
        %1671 = vmatprep.subr.mxu0 0.0
        %1672 = vmatpush1.xpose.msra.mxu0 0.0
        %1673 = vmatprep.subr.mxu0 0.0
        %1674 = vmatpush1.xpose.msra.mxu0 0.0
        %1675 = vmatprep.subr.mxu0 0.0
        %1676 = vmatpush1.xpose.msra.mxu0 0.0
        %1677 = vmatprep.subr.mxu0 0.0
        %1678 = vmatpush1.xpose.msra.mxu0 0.0
        %1679 = vmatprep.subr.mxu0 0.0
        %1680 = vmatpush1.xpose.msra.mxu0 0.0
        %1681 = vmatprep.subr.mxu0 0.0
        %1682 = vmatpush1.xpose.msra.mxu0 0.0
        %1683 = vmatprep.subr.mxu0 0.0
        %1684 = vmatpush1.xpose.msra.mxu0 0.0
        %1685 = vmatprep.subr.mxu0 0.0
        %1686 = vmatpush1.xpose.msra.mxu0 0.0
        %1687 = vmatprep.subr.mxu0 0.0
        %1688 = vmatpush1.xpose.msra.mxu0 0.0
        %1689 = vmatprep.subr.mxu0 0.0
        %1690 = vmatpush1.xpose.msra.mxu0 0.0
        %1691 = vmatprep.subr.mxu0 0.0
        %1692 = vmatpush1.xpose.msra.mxu0 0.0
        %1693 = vmatprep.subr.mxu0 0.0
        %1694 = vmatpush1.xpose.msra.mxu0 0.0
        %1695 = vmatprep.subr.mxu0 0.0
        %1696 = vmatpush1.xpose.msra.mxu0 0.0
        %1697 = vmatprep.subr.mxu0 0.0
        %1698 = vmatpush1.xpose.msra.mxu0 0.0
        %1699 = vmatprep.subr.mxu0 0.0
        %1700 = vmatpush1.xpose.msra.mxu0 0.0
        %1701 = vmatprep.subr.mxu0 0.0
        %1702 = vmatpush1.xpose.msra.mxu0 0.0
        %1703 = vmatprep.subr.mxu0 0.0
        %1704 = vmatpush1.xpose.msra.mxu0 0.0
        %1705 = vmatprep.subr.mxu0 0.0
        %1706 = vmatpush1.xpose.msra.mxu0 0.0
        %1707 = vmatprep.subr.mxu0 0.0
        %1708 = vmatpush1.xpose.msra.mxu0 0.0
        %1709 = vmatprep.subr.mxu0 0.0
        %1710 = vmatpush1.xpose.msra.mxu0 0.0
        %1711 = vmatprep.subr.mxu0 0.0
        %1712 = vmatpush1.xpose.msra.mxu0 0.0
        %1713 = vmatprep.subr.mxu0 0.0
        %1714 = vmatpush1.xpose.msra.mxu0 0.0
        %1715 = vmatprep.subr.mxu0 0.0
        %1716 = vmatpush1.xpose.msra.mxu0 0.0
        %1717 = vmatprep.subr.mxu0 0.0
        %1718 = vmatpush1.xpose.msra.mxu0 0.0
        %1719 = vmatprep.subr.mxu0 0.0
        %1720 = vmatpush1.xpose.msra.mxu0 0.0
        %1721 = vmatprep.subr.mxu0 0.0
        %1722 = vmatpush1.xpose.msra.mxu0 0.0
        %1723 = vmatprep.mubr.f32.mxu0 0.0
        %1724 = vmatmul.mubr.f32.gmra.mrb[0].mxu0 %v1654
        %v1725 = vpop.f32.mrb[0].mxu0
        %v1726 = vadd.f32 0.0, %v1725
        %v1727 = vpop.f32.mrb[0].mxu0
        %1728 = vdwg.mxu0
        %v1730 = vsel %vm1576, %v1271, 0
        %v1733 = vsel %vm1576, %v1426, 0
        %1735 = vmatprep.subr.mxu0 0.0
        %1736 = vmatpush1.xpose.msra.mxu0 %v1733
        %1737 = vmatprep.subr.mxu0 0.0
        %1738 = vmatpush1.xpose.msra.mxu0 0.0
        %1739 = vmatprep.subr.mxu0 0.0
        %1740 = vmatpush1.xpose.msra.mxu0 0.0
        %1741 = vmatprep.subr.mxu0 0.0
        %1742 = vmatpush1.xpose.msra.mxu0 0.0
        %1743 = vmatprep.subr.mxu0 0.0
        %1744 = vmatpush1.xpose.msra.mxu0 0.0
        %1745 = vmatprep.subr.mxu0 0.0
        %1746 = vmatpush1.xpose.msra.mxu0 0.0
        %1747 = vmatprep.subr.mxu0 0.0
        %1748 = vmatpush1.xpose.msra.mxu0 0.0
        %1749 = vmatprep.subr.mxu0 0.0
        %1750 = vmatpush1.xpose.msra.mxu0 0.0
        %1751 = vmatprep.subr.mxu0 0.0
        %1752 = vmatpush1.xpose.msra.mxu0 0.0
        %1753 = vmatprep.subr.mxu0 0.0
        %1754 = vmatpush1.xpose.msra.mxu0 0.0
        %1755 = vmatprep.subr.mxu0 0.0
        %1756 = vmatpush1.xpose.msra.mxu0 0.0
        %1757 = vmatprep.subr.mxu0 0.0
        %1758 = vmatpush1.xpose.msra.mxu0 0.0
        %1759 = vmatprep.subr.mxu0 0.0
        %1760 = vmatpush1.xpose.msra.mxu0 0.0
        %1761 = vmatprep.subr.mxu0 0.0
        %1762 = vmatpush1.xpose.msra.mxu0 0.0
        %1763 = vmatprep.subr.mxu0 0.0
        %1764 = vmatpush1.xpose.msra.mxu0 0.0
        %1765 = vmatprep.subr.mxu0 0.0
        %1766 = vmatpush1.xpose.msra.mxu0 0.0
        %1767 = vmatprep.subr.mxu0 0.0
        %1768 = vmatpush1.xpose.msra.mxu0 0.0
        %1769 = vmatprep.subr.mxu0 0.0
        %1770 = vmatpush1.xpose.msra.mxu0 0.0
        %1771 = vmatprep.subr.mxu0 0.0
        %1772 = vmatpush1.xpose.msra.mxu0 0.0
        %1773 = vmatprep.subr.mxu0 0.0
        %1774 = vmatpush1.xpose.msra.mxu0 0.0
        %1775 = vmatprep.subr.mxu0 0.0
        %1776 = vmatpush1.xpose.msra.mxu0 0.0
        %1777 = vmatprep.subr.mxu0 0.0
        %1778 = vmatpush1.xpose.msra.mxu0 0.0
        %1779 = vmatprep.subr.mxu0 0.0
        %1780 = vmatpush1.xpose.msra.mxu0 0.0
        %1781 = vmatprep.subr.mxu0 0.0
        %1782 = vmatpush1.xpose.msra.mxu0 0.0
        %1783 = vmatprep.subr.mxu0 0.0
        %1784 = vmatpush1.xpose.msra.mxu0 0.0
        %1785 = vmatprep.subr.mxu0 0.0
        %1786 = vmatpush1.xpose.msra.mxu0 0.0
        %1787 = vmatprep.subr.mxu0 0.0
        %1788 = vmatpush1.xpose.msra.mxu0 0.0
        %1789 = vmatprep.subr.mxu0 0.0
        %1790 = vmatpush1.xpose.msra.mxu0 0.0
        %1791 = vmatprep.subr.mxu0 0.0
        %1792 = vmatpush1.xpose.msra.mxu0 0.0
        %1793 = vmatprep.subr.mxu0 0.0
        %1794 = vmatpush1.xpose.msra.mxu0 0.0
        %1795 = vmatprep.subr.mxu0 0.0
        %1796 = vmatpush1.xpose.msra.mxu0 0.0
        %1797 = vmatprep.subr.mxu0 0.0
        %1798 = vmatpush1.xpose.msra.mxu0 0.0
        %1799 = vmatprep.mubr.f32.mxu0 0.0
        %1800 = vmatmul.mubr.f32.gmra.mrb[0].mxu0 %v1730
        %v1801 = vpop.f32.mrb[0].mxu0
        %v1802 = vadd.f32 0.0, %v1801
        %v1803 = vpop.f32.mrb[0].mxu0
        %1804 = vdwg.mxu0
        %v1806 = vsel %vm1576, %v1272, 0
        %v1809 = vsel %vm1576, %v1427, 0
        %1811 = vmatprep.subr.mxu0 0.0
        %1812 = vmatpush1.xpose.msra.mxu0 %v1809
        %1813 = vmatprep.subr.mxu0 0.0
        %1814 = vmatpush1.xpose.msra.mxu0 0.0
        %1815 = vmatprep.subr.mxu0 0.0
        %1816 = vmatpush1.xpose.msra.mxu0 0.0
        %1817 = vmatprep.subr.mxu0 0.0
        %1818 = vmatpush1.xpose.msra.mxu0 0.0
        %1819 = vmatprep.subr.mxu0 0.0
        %1820 = vmatpush1.xpose.msra.mxu0 0.0
        %1821 = vmatprep.subr.mxu0 0.0
        %1822 = vmatpush1.xpose.msra.mxu0 0.0
        %1823 = vmatprep.subr.mxu0 0.0
        %1824 = vmatpush1.xpose.msra.mxu0 0.0
        %1825 = vmatprep.subr.mxu0 0.0
        %1826 = vmatpush1.xpose.msra.mxu0 0.0
        %1827 = vmatprep.subr.mxu0 0.0
        %1828 = vmatpush1.xpose.msra.mxu0 0.0
        %1829 = vmatprep.subr.mxu0 0.0
        %1830 = vmatpush1.xpose.msra.mxu0 0.0
        %1831 = vmatprep.subr.mxu0 0.0
        %1832 = vmatpush1.xpose.msra.mxu0 0.0
        %1833 = vmatprep.subr.mxu0 0.0
        %1834 = vmatpush1.xpose.msra.mxu0 0.0
        %1835 = vmatprep.subr.mxu0 0.0
        %1836 = vmatpush1.xpose.msra.mxu0 0.0
        %1837 = vmatprep.subr.mxu0 0.0
        %1838 = vmatpush1.xpose.msra.mxu0 0.0
        %1839 = vmatprep.subr.mxu0 0.0
        %1840 = vmatpush1.xpose.msra.mxu0 0.0
        %1841 = vmatprep.subr.mxu0 0.0
        %1842 = vmatpush1.xpose.msra.mxu0 0.0
        %1843 = vmatprep.subr.mxu0 0.0
        %1844 = vmatpush1.xpose.msra.mxu0 0.0
        %1845 = vmatprep.subr.mxu0 0.0
        %1846 = vmatpush1.xpose.msra.mxu0 0.0
        %1847 = vmatprep.subr.mxu0 0.0
        %1848 = vmatpush1.xpose.msra.mxu0 0.0
        %1849 = vmatprep.subr.mxu0 0.0
        %1850 = vmatpush1.xpose.msra.mxu0 0.0
        %1851 = vmatprep.subr.mxu0 0.0
        %1852 = vmatpush1.xpose.msra.mxu0 0.0
        %1853 = vmatprep.subr.mxu0 0.0
        %1854 = vmatpush1.xpose.msra.mxu0 0.0
        %1855 = vmatprep.subr.mxu0 0.0
        %1856 = vmatpush1.xpose.msra.mxu0 0.0
        %1857 = vmatprep.subr.mxu0 0.0
        %1858 = vmatpush1.xpose.msra.mxu0 0.0
        %1859 = vmatprep.subr.mxu0 0.0
        %1860 = vmatpush1.xpose.msra.mxu0 0.0
        %1861 = vmatprep.subr.mxu0 0.0
        %1862 = vmatpush1.xpose.msra.mxu0 0.0
        %1863 = vmatprep.subr.mxu0 0.0
        %1864 = vmatpush1.xpose.msra.mxu0 0.0
        %1865 = vmatprep.subr.mxu0 0.0
        %1866 = vmatpush1.xpose.msra.mxu0 0.0
        %1867 = vmatprep.subr.mxu0 0.0
        %1868 = vmatpush1.xpose.msra.mxu0 0.0
        %1869 = vmatprep.subr.mxu0 0.0
        %1870 = vmatpush1.xpose.msra.mxu0 0.0
        %1871 = vmatprep.subr.mxu0 0.0
        %1872 = vmatpush1.xpose.msra.mxu0 0.0
        %1873 = vmatprep.subr.mxu0 0.0
        %1874 = vmatpush1.xpose.msra.mxu0 0.0
        %1875 = vmatprep.mubr.f32.mxu0 0.0
        %1876 = vmatmul.mubr.f32.gmra.mrb[0].mxu0 %v1806
        %v1877 = vpop.f32.mrb[0].mxu0
        %v1878 = vadd.f32 0.0, %v1877
        %v1879 = vpop.f32.mrb[0].mxu0
        %1880 = vdwg.mxu0
        %vm1881 = vcmp.eq.s32.totalorder %v1039, 0
        %v1882 = vsel %vm1881, 1, 0
        %vm1883 = vcmp.eq.s32.totalorder %v1882, 1
        %v1884 = vsel %vm1883, -1e+10, %v1650
        %v1885 = vsel %vm1883, -1e+10, %v1726
        %v1886 = vsel %vm1883, -1e+10, %v1802
        %v1887 = vsel %vm1883, -1e+10, %v1878
        %v1888 = vsel %vm1576, %v1884, -inf
        %1889 = vmax.xlane.f32.xlu0 %v1888
        %v1890 = vpop.xlane.xlu0 %1889
        %v1891 = vsel %vm1576, %v1885, -inf
        %1892 = vmax.xlane.f32.xlu0 %v1891
        %v1893 = vpop.xlane.xlu0 %1892
        %v1894 = vsel %vm1576, %v1886, -inf
        %1895 = vmax.xlane.f32.xlu0 %v1894
        %v1896 = vpop.xlane.xlu0 %1895
        %v1897 = vsel %vm1576, %v1887, -inf
        %1898 = vmax.xlane.f32.xlu0 %v1897
        %v1899 = vpop.xlane.xlu0 %1898
        %v1900 = vsub.f32 %v1884, %v1890
        %v1901 = vsub.f32 %v1885, %v1893
        %v1902 = vsub.f32 %v1886, %v1896
        %v1903 = vsub.f32 %v1887, %v1899
        %v1904 = vmul.f32 %v1900, 1.442695
        %v1905 = vpow.pop %v1904
        %v1906 = vmul.f32 %v1901, 1.442695
        %v1907 = vpow.pop %v1906
        %v1908 = vmul.f32 %v1902, 1.442695
        %v1909 = vpow.pop %v1908
        %v1910 = vmul.f32 %v1903, 1.442695
        %v1911 = vpow.pop %v1910
        %v1912 = vsel %vm1576, %v1905, 0.0
        %1913 = vadd.xlane.f32.xlu0 %v1912
        %v1914 = vpop.xlane.xlu0 %1913
        %v1915 = vsel %vm1576, %v1907, 0.0
        %1916 = vadd.xlane.f32.xlu0 %v1915
        %v1917 = vpop.xlane.xlu0 %1916
        %v1918 = vsel %vm1576, %v1909, 0.0
        %1919 = vadd.xlane.f32.xlu0 %v1918
        %v1920 = vpop.xlane.xlu0 %1919
        %v1921 = vsel %vm1576, %v1911, 0.0
        %1922 = vadd.xlane.f32.xlu0 %v1921
        %v1923 = vpop.xlane.xlu0 %1922
        %v1924 = vrcp.pop %v1914
        %v1925 = vrcp.pop %v1917
        %v1926 = vrcp.pop %v1920
        %v1927 = vrcp.pop %v1923
        %v1928 = vmul.f32 %v1905, %v1924
        %v1929 = vmul.f32 %v1907, %v1925
        %v1930 = vmul.f32 %v1909, %v1926
        %v1931 = vmul.f32 %v1911, %v1927
        %v1933 = vsel %vm1576, %v1928, 0
        %1935 = vmatprep.subr.mxu0 0.0
        %1936 = vmatpush1.msra.mxu0 %v1572
        %1937 = vmatprep.subr.mxu0 0.0
        %1938 = vmatpush1.msra.mxu0 0.0
        %1939 = vmatprep.subr.mxu0 0.0
        %1940 = vmatpush1.msra.mxu0 0.0
        %1941 = vmatprep.subr.mxu0 0.0
        %1942 = vmatpush1.msra.mxu0 0.0
        %1943 = vmatprep.subr.mxu0 0.0
        %1944 = vmatpush1.msra.mxu0 0.0
        %1945 = vmatprep.subr.mxu0 0.0
        %1946 = vmatpush1.msra.mxu0 0.0
        %1947 = vmatprep.subr.mxu0 0.0
        %1948 = vmatpush1.msra.mxu0 0.0
        %1949 = vmatprep.subr.mxu0 0.0
        %1950 = vmatpush1.msra.mxu0 0.0
        %1951 = vmatprep.subr.mxu0 0.0
        %1952 = vmatpush1.msra.mxu0 0.0
        %1953 = vmatprep.subr.mxu0 0.0
        %1954 = vmatpush1.msra.mxu0 0.0
        %1955 = vmatprep.subr.mxu0 0.0
        %1956 = vmatpush1.msra.mxu0 0.0
        %1957 = vmatprep.subr.mxu0 0.0
        %1958 = vmatpush1.msra.mxu0 0.0
        %1959 = vmatprep.subr.mxu0 0.0
        %1960 = vmatpush1.msra.mxu0 0.0
        %1961 = vmatprep.subr.mxu0 0.0
        %1962 = vmatpush1.msra.mxu0 0.0
        %1963 = vmatprep.subr.mxu0 0.0
        %1964 = vmatpush1.msra.mxu0 0.0
        %1965 = vmatprep.subr.mxu0 0.0
        %1966 = vmatpush1.msra.mxu0 0.0
        %1967 = vmatprep.subr.mxu0 0.0
        %1968 = vmatpush1.msra.mxu0 0.0
        %1969 = vmatprep.subr.mxu0 0.0
        %1970 = vmatpush1.msra.mxu0 0.0
        %1971 = vmatprep.subr.mxu0 0.0
        %1972 = vmatpush1.msra.mxu0 0.0
        %1973 = vmatprep.subr.mxu0 0.0
        %1974 = vmatpush1.msra.mxu0 0.0
        %1975 = vmatprep.subr.mxu0 0.0
        %1976 = vmatpush1.msra.mxu0 0.0
        %1977 = vmatprep.subr.mxu0 0.0
        %1978 = vmatpush1.msra.mxu0 0.0
        %1979 = vmatprep.subr.mxu0 0.0
        %1980 = vmatpush1.msra.mxu0 0.0
        %1981 = vmatprep.subr.mxu0 0.0
        %1982 = vmatpush1.msra.mxu0 0.0
        %1983 = vmatprep.subr.mxu0 0.0
        %1984 = vmatpush1.msra.mxu0 0.0
        %1985 = vmatprep.subr.mxu0 0.0
        %1986 = vmatpush1.msra.mxu0 0.0
        %1987 = vmatprep.subr.mxu0 0.0
        %1988 = vmatpush1.msra.mxu0 0.0
        %1989 = vmatprep.subr.mxu0 0.0
        %1990 = vmatpush1.msra.mxu0 0.0
        %1991 = vmatprep.subr.mxu0 0.0
        %1992 = vmatpush1.msra.mxu0 0.0
        %1993 = vmatprep.subr.mxu0 0.0
        %1994 = vmatpush1.msra.mxu0 0.0
        %1995 = vmatprep.subr.mxu0 0.0
        %1996 = vmatpush1.msra.mxu0 0.0
        %1997 = vmatprep.subr.mxu0 0.0
        %1998 = vmatpush1.msra.mxu0 0.0
        %1999 = vmatprep.mubr.f32.mxu0 0.0
        %2000 = vmatmul.mubr.f32.gmra.mrb[0].mxu0 %v1933
        %v2001 = vpop.f32.mrb[0].mxu0
        %v2002 = vadd.f32 0.0, %v2001
        %v2003 = vpop.f32.mrb[0].mxu0
        %2004 = vdwg.mxu0
        %v2006 = vsel %vm1576, %v1929, 0
        %2008 = vmatprep.subr.mxu0 0.0
        %2009 = vmatpush1.msra.mxu0 %v1573
        %2010 = vmatprep.subr.mxu0 0.0
        %2011 = vmatpush1.msra.mxu0 0.0
        %2012 = vmatprep.subr.mxu0 0.0
        %2013 = vmatpush1.msra.mxu0 0.0
        %2014 = vmatprep.subr.mxu0 0.0
        %2015 = vmatpush1.msra.mxu0 0.0
        %2016 = vmatprep.subr.mxu0 0.0
        %2017 = vmatpush1.msra.mxu0 0.0
        %2018 = vmatprep.subr.mxu0 0.0
        %2019 = vmatpush1.msra.mxu0 0.0
        %2020 = vmatprep.subr.mxu0 0.0
        %2021 = vmatpush1.msra.mxu0 0.0
        %2022 = vmatprep.subr.mxu0 0.0
        %2023 = vmatpush1.msra.mxu0 0.0
        %2024 = vmatprep.subr.mxu0 0.0
        %2025 = vmatpush1.msra.mxu0 0.0
        %2026 = vmatprep.subr.mxu0 0.0
        %2027 = vmatpush1.msra.mxu0 0.0
        %2028 = vmatprep.subr.mxu0 0.0
        %2029 = vmatpush1.msra.mxu0 0.0
        %2030 = vmatprep.subr.mxu0 0.0
        %2031 = vmatpush1.msra.mxu0 0.0
        %2032 = vmatprep.subr.mxu0 0.0
        %2033 = vmatpush1.msra.mxu0 0.0
        %2034 = vmatprep.subr.mxu0 0.0
        %2035 = vmatpush1.msra.mxu0 0.0
        %2036 = vmatprep.subr.mxu0 0.0
        %2037 = vmatpush1.msra.mxu0 0.0
        %2038 = vmatprep.subr.mxu0 0.0
        %2039 = vmatpush1.msra.mxu0 0.0
        %2040 = vmatprep.subr.mxu0 0.0
        %2041 = vmatpush1.msra.mxu0 0.0
        %2042 = vmatprep.subr.mxu0 0.0
        %2043 = vmatpush1.msra.mxu0 0.0
        %2044 = vmatprep.subr.mxu0 0.0
        %2045 = vmatpush1.msra.mxu0 0.0
        %2046 = vmatprep.subr.mxu0 0.0
        %2047 = vmatpush1.msra.mxu0 0.0
        %2048 = vmatprep.subr.mxu0 0.0
        %2049 = vmatpush1.msra.mxu0 0.0
        %2050 = vmatprep.subr.mxu0 0.0
        %2051 = vmatpush1.msra.mxu0 0.0
        %2052 = vmatprep.subr.mxu0 0.0
        %2053 = vmatpush1.msra.mxu0 0.0
        %2054 = vmatprep.subr.mxu0 0.0
        %2055 = vmatpush1.msra.mxu0 0.0
        %2056 = vmatprep.subr.mxu0 0.0
        %2057 = vmatpush1.msra.mxu0 0.0
        %2058 = vmatprep.subr.mxu0 0.0
        %2059 = vmatpush1.msra.mxu0 0.0
        %2060 = vmatprep.subr.mxu0 0.0
        %2061 = vmatpush1.msra.mxu0 0.0
        %2062 = vmatprep.subr.mxu0 0.0
        %2063 = vmatpush1.msra.mxu0 0.0
        %2064 = vmatprep.subr.mxu0 0.0
        %2065 = vmatpush1.msra.mxu0 0.0
        %2066 = vmatprep.subr.mxu0 0.0
        %2067 = vmatpush1.msra.mxu0 0.0
        %2068 = vmatprep.subr.mxu0 0.0
        %2069 = vmatpush1.msra.mxu0 0.0
        %2070 = vmatprep.subr.mxu0 0.0
        %2071 = vmatpush1.msra.mxu0 0.0
        %2072 = vmatprep.mubr.f32.mxu0 0.0
        %2073 = vmatmul.mubr.f32.gmra.mrb[0].mxu0 %v2006
        %v2074 = vpop.f32.mrb[0].mxu0
        %v2075 = vadd.f32 0.0, %v2074
        %v2076 = vpop.f32.mrb[0].mxu0
        %2077 = vdwg.mxu0
        %v2079 = vsel %vm1576, %v1930, 0
        %2081 = vmatprep.subr.mxu0 0.0
        %2082 = vmatpush1.msra.mxu0 %v1574
        %2083 = vmatprep.subr.mxu0 0.0
        %2084 = vmatpush1.msra.mxu0 0.0
        %2085 = vmatprep.subr.mxu0 0.0
        %2086 = vmatpush1.msra.mxu0 0.0
        %2087 = vmatprep.subr.mxu0 0.0
        %2088 = vmatpush1.msra.mxu0 0.0
        %2089 = vmatprep.subr.mxu0 0.0
        %2090 = vmatpush1.msra.mxu0 0.0
        %2091 = vmatprep.subr.mxu0 0.0
        %2092 = vmatpush1.msra.mxu0 0.0
        %2093 = vmatprep.subr.mxu0 0.0
        %2094 = vmatpush1.msra.mxu0 0.0
        %2095 = vmatprep.subr.mxu0 0.0
        %2096 = vmatpush1.msra.mxu0 0.0
        %2097 = vmatprep.subr.mxu0 0.0
        %2098 = vmatpush1.msra.mxu0 0.0
        %2099 = vmatprep.subr.mxu0 0.0
        %2100 = vmatpush1.msra.mxu0 0.0
        %2101 = vmatprep.subr.mxu0 0.0
        %2102 = vmatpush1.msra.mxu0 0.0
        %2103 = vmatprep.subr.mxu0 0.0
        %2104 = vmatpush1.msra.mxu0 0.0
        %2105 = vmatprep.subr.mxu0 0.0
        %2106 = vmatpush1.msra.mxu0 0.0
        %2107 = vmatprep.subr.mxu0 0.0
        %2108 = vmatpush1.msra.mxu0 0.0
        %2109 = vmatprep.subr.mxu0 0.0
        %2110 = vmatpush1.msra.mxu0 0.0
        %2111 = vmatprep.subr.mxu0 0.0
        %2112 = vmatpush1.msra.mxu0 0.0
        %2113 = vmatprep.subr.mxu0 0.0
        %2114 = vmatpush1.msra.mxu0 0.0
        %2115 = vmatprep.subr.mxu0 0.0
        %2116 = vmatpush1.msra.mxu0 0.0
        %2117 = vmatprep.subr.mxu0 0.0
        %2118 = vmatpush1.msra.mxu0 0.0
        %2119 = vmatprep.subr.mxu0 0.0
        %2120 = vmatpush1.msra.mxu0 0.0
        %2121 = vmatprep.subr.mxu0 0.0
        %2122 = vmatpush1.msra.mxu0 0.0
        %2123 = vmatprep.subr.mxu0 0.0
        %2124 = vmatpush1.msra.mxu0 0.0
        %2125 = vmatprep.subr.mxu0 0.0
        %2126 = vmatpush1.msra.mxu0 0.0
        %2127 = vmatprep.subr.mxu0 0.0
        %2128 = vmatpush1.msra.mxu0 0.0
        %2129 = vmatprep.subr.mxu0 0.0
        %2130 = vmatpush1.msra.mxu0 0.0
        %2131 = vmatprep.subr.mxu0 0.0
        %2132 = vmatpush1.msra.mxu0 0.0
        %2133 = vmatprep.subr.mxu0 0.0
        %2134 = vmatpush1.msra.mxu0 0.0
        %2135 = vmatprep.subr.mxu0 0.0
        %2136 = vmatpush1.msra.mxu0 0.0
        %2137 = vmatprep.subr.mxu0 0.0
        %2138 = vmatpush1.msra.mxu0 0.0
        %2139 = vmatprep.subr.mxu0 0.0
        %2140 = vmatpush1.msra.mxu0 0.0
        %2141 = vmatprep.subr.mxu0 0.0
        %2142 = vmatpush1.msra.mxu0 0.0
        %2143 = vmatprep.subr.mxu0 0.0
        %2144 = vmatpush1.msra.mxu0 0.0
        %2145 = vmatprep.mubr.f32.mxu0 0.0
        %2146 = vmatmul.mubr.f32.gmra.mrb[0].mxu0 %v2079
        %v2147 = vpop.f32.mrb[0].mxu0
        %v2148 = vadd.f32 0.0, %v2147
        %v2149 = vpop.f32.mrb[0].mxu0
        %2150 = vdwg.mxu0
        %v2152 = vsel %vm1576, %v1931, 0
        %2154 = vmatprep.subr.mxu0 0.0
        %2155 = vmatpush1.msra.mxu0 %v1575
        %2156 = vmatprep.subr.mxu0 0.0
        %2157 = vmatpush1.msra.mxu0 0.0
        %2158 = vmatprep.subr.mxu0 0.0
        %2159 = vmatpush1.msra.mxu0 0.0
        %2160 = vmatprep.subr.mxu0 0.0
        %2161 = vmatpush1.msra.mxu0 0.0
        %2162 = vmatprep.subr.mxu0 0.0
        %2163 = vmatpush1.msra.mxu0 0.0
        %2164 = vmatprep.subr.mxu0 0.0
        %2165 = vmatpush1.msra.mxu0 0.0
        %2166 = vmatprep.subr.mxu0 0.0
        %2167 = vmatpush1.msra.mxu0 0.0
        %2168 = vmatprep.subr.mxu0 0.0
        %2169 = vmatpush1.msra.mxu0 0.0
        %2170 = vmatprep.subr.mxu0 0.0
        %2171 = vmatpush1.msra.mxu0 0.0
        %2172 = vmatprep.subr.mxu0 0.0
        %2173 = vmatpush1.msra.mxu0 0.0
        %2174 = vmatprep.subr.mxu0 0.0
        %2175 = vmatpush1.msra.mxu0 0.0
        %2176 = vmatprep.subr.mxu0 0.0
        %2177 = vmatpush1.msra.mxu0 0.0
        %2178 = vmatprep.subr.mxu0 0.0
        %2179 = vmatpush1.msra.mxu0 0.0
        %2180 = vmatprep.subr.mxu0 0.0
        %2181 = vmatpush1.msra.mxu0 0.0
        %2182 = vmatprep.subr.mxu0 0.0
        %2183 = vmatpush1.msra.mxu0 0.0
        %2184 = vmatprep.subr.mxu0 0.0
        %2185 = vmatpush1.msra.mxu0 0.0
        %2186 = vmatprep.subr.mxu0 0.0
        %2187 = vmatpush1.msra.mxu0 0.0
        %2188 = vmatprep.subr.mxu0 0.0
        %2189 = vmatpush1.msra.mxu0 0.0
        %2190 = vmatprep.subr.mxu0 0.0
        %2191 = vmatpush1.msra.mxu0 0.0
        %2192 = vmatprep.subr.mxu0 0.0
        %2193 = vmatpush1.msra.mxu0 0.0
        %2194 = vmatprep.subr.mxu0 0.0
        %2195 = vmatpush1.msra.mxu0 0.0
        %2196 = vmatprep.subr.mxu0 0.0
        %2197 = vmatpush1.msra.mxu0 0.0
        %2198 = vmatprep.subr.mxu0 0.0
        %2199 = vmatpush1.msra.mxu0 0.0
        %2200 = vmatprep.subr.mxu0 0.0
        %2201 = vmatpush1.msra.mxu0 0.0
        %2202 = vmatprep.subr.mxu0 0.0
        %2203 = vmatpush1.msra.mxu0 0.0
        %2204 = vmatprep.subr.mxu0 0.0
        %2205 = vmatpush1.msra.mxu0 0.0
        %2206 = vmatprep.subr.mxu0 0.0
        %2207 = vmatpush1.msra.mxu0 0.0
        %2208 = vmatprep.subr.mxu0 0.0
        %2209 = vmatpush1.msra.mxu0 0.0
        %2210 = vmatprep.subr.mxu0 0.0
        %2211 = vmatpush1.msra.mxu0 0.0
        %2212 = vmatprep.subr.mxu0 0.0
        %2213 = vmatpush1.msra.mxu0 0.0
        %2214 = vmatprep.subr.mxu0 0.0
        %2215 = vmatpush1.msra.mxu0 0.0
        %2216 = vmatprep.subr.mxu0 0.0
        %2217 = vmatpush1.msra.mxu0 0.0
        %2218 = vmatprep.mubr.f32.mxu0 0.0
        %2219 = vmatmul.mubr.f32.gmra.mrb[0].mxu0 %v2152
        %v2220 = vpop.f32.mrb[0].mxu0
        %v2221 = vadd.f32 0.0, %v2220
        %v2222 = vpop.f32.mrb[0].mxu0
        %2223 = vdwg.mxu0
        %v2224 = vcombine.low %v2002, %v2148
        %v2225 = vcombine.high %v2002, %v2148
        %v2227 = vunpack.c.l.s4 1983009808
        %v2228 = vunpack.c.0.s8 %v2227
        %v2229 = vlaneseq
        %v2230 = vshrl.u32 %v2229, 7
        %v2231 = vsub.s32 %v2228, %v2230
        %v2232 = vrot.slane %v2224, %v2231
        %v2234 = vunpack.c.l.s4 1983009808
        %v2235 = vunpack.c.0.s8 %v2234
        %v2236 = vlaneseq
        %v2237 = vshrl.u32 %v2236, 7
        %v2238 = vsub.s32 %v2235, %v2237
        %v2239 = vrot.slane %v2225, %v2238
        %v2240 = vcombine.low %v2075, %v2221
        %v2241 = vcombine.high %v2075, %v2221
        %v2243 = vunpack.c.l.s4 1983009808
        %v2244 = vunpack.c.0.s8 %v2243
        %v2245 = vlaneseq
        %v2246 = vshrl.u32 %v2245, 7
        %v2247 = vsub.s32 %v2244, %v2246
        %v2248 = vrot.slane %v2240, %v2247
        %v2250 = vunpack.c.l.s4 1983009808
        %v2251 = vunpack.c.0.s8 %v2250
        %v2252 = vlaneseq
        %v2253 = vshrl.u32 %v2252, 7
        %v2254 = vsub.s32 %v2251, %v2253
        %v2255 = vrot.slane %v2241, %v2254
        %v2256 = vcombine.low %v2232, %v2248
        %v2257 = vcombine.high %v2232, %v2248
        %v2259 = vunpack.c.l.s4 1934713408
        %v2260 = vunpack.c.0.s8 %v2259
        %v2261 = vlaneseq
        %v2262 = vshrl.u32 %v2261, 7
        %v2263 = vsub.s32 %v2260, %v2262
        %v2264 = vrot.slane %v2256, %v2263
        %v2266 = vunpack.c.l.s4 1934713408
        %v2267 = vunpack.c.0.s8 %v2266
        %v2268 = vlaneseq
        %v2269 = vshrl.u32 %v2268, 7
        %v2270 = vsub.s32 %v2267, %v2269
        %v2271 = vrot.slane %v2257, %v2270
        %v2272 = vcombine.low %v2239, %v2255
        %v2273 = vcombine.high %v2239, %v2255
        %v2275 = vunpack.c.l.s4 1934713408
        %v2276 = vunpack.c.0.s8 %v2275
        %v2277 = vlaneseq
        %v2278 = vshrl.u32 %v2277, 7
        %v2279 = vsub.s32 %v2276, %v2278
        %v2280 = vrot.slane %v2272, %v2279
        %v2282 = vunpack.c.l.s4 1934713408
        %v2283 = vunpack.c.0.s8 %v2282
        %v2284 = vlaneseq
        %v2285 = vshrl.u32 %v2284, 7
        %v2286 = vsub.s32 %v2283, %v2285
        %v2287 = vrot.slane %v2273, %v2286
        %v2288 = vcombine.high %v2264, 0.0
        %v2289 = vcombine.high %v2271, 0.0
        %v2290 = vcombine.high %v2280, 0.0
        %v2291 = vcombine.high %v2287, 0.0
        %v2292 = vcombine.low %v2264, %v2271
        %v2294 = vunpack.c.l.s4 1983009808
        %v2295 = vunpack.c.0.s8 %v2294
        %v2296 = vlaneseq
        %v2297 = vshrl.u32 %v2296, 7
        %v2298 = vsub.s32 %v2295, %v2297
        %v2299 = vrot.slane %v2292, %v2298
        %v2300 = vcombine.low %v2288, %v2289
        %v2302 = vunpack.c.l.s4 1983009808
        %v2303 = vunpack.c.0.s8 %v2302
        %v2304 = vlaneseq
        %v2305 = vshrl.u32 %v2304, 7
        %v2306 = vsub.s32 %v2303, %v2305
        %v2307 = vrot.slane %v2300, %v2306
        %v2308 = vcombine.low %v2280, %v2287
        %v2310 = vunpack.c.l.s4 1983009808
        %v2311 = vunpack.c.0.s8 %v2310
        %v2312 = vlaneseq
        %v2313 = vshrl.u32 %v2312, 7
        %v2314 = vsub.s32 %v2311, %v2313
        %v2315 = vrot.slane %v2308, %v2314
        %v2316 = vcombine.low %v2290, %v2291
        %v2318 = vunpack.c.l.s4 1983009808
        %v2319 = vunpack.c.0.s8 %v2318
        %v2320 = vlaneseq
        %v2321 = vshrl.u32 %v2320, 7
        %v2322 = vsub.s32 %v2319, %v2321
        %v2323 = vrot.slane %v2316, %v2322
        %v2324 = vcombine.low %v2299, %v2307
        %v2325 = vcombine.high %v2299, %v2307
        %v2327 = vunpack.c.l.s4 1934713408
        %v2328 = vunpack.c.0.s8 %v2327
        %v2329 = vlaneseq
        %v2330 = vshrl.u32 %v2329, 7
        %v2331 = vsub.s32 %v2328, %v2330
        %v2332 = vrot.slane %v2324, %v2331
        %v2334 = vunpack.c.l.s4 1934713408
        %v2335 = vunpack.c.0.s8 %v2334
        %v2336 = vlaneseq
        %v2337 = vshrl.u32 %v2336, 7
        %v2338 = vsub.s32 %v2335, %v2337
        %v2339 = vrot.slane %v2325, %v2338
        %v2340 = vcombine.low %v2315, %v2323
        %v2341 = vcombine.high %v2315, %v2323
        %v2343 = vunpack.c.l.s4 1934713408
        %v2344 = vunpack.c.0.s8 %v2343
        %v2345 = vlaneseq
        %v2346 = vshrl.u32 %v2345, 7
        %v2347 = vsub.s32 %v2344, %v2346
        %v2348 = vrot.slane %v2340, %v2347
        %v2350 = vunpack.c.l.s4 1934713408
        %v2351 = vunpack.c.0.s8 %v2350
        %v2352 = vlaneseq
        %v2353 = vshrl.u32 %v2352, 7
        %v2354 = vsub.s32 %v2351, %v2353
        %v2355 = vrot.slane %v2341, %v2354
        %v2356 = vcombine.low %v2332, %v2348
        %v2357 = vcombine.high %v2332, %v2348
        %v2358 = vcombine.low %v2339, %v2355
        %v2359 = vcombine.high %v2339, %v2355
        %2361 = vrot.lane.b32.xlu0 %v2357, 8
        %v2362 = vpop.permute.xlu0 %2361
        %2365 = vrot.lane.b32.xlu0 %v2358, 16
        %v2366 = vpop.permute.xlu0 %2365
        %2369 = vrot.lane.b32.xlu0 %v2359, 24
        %v2370 = vpop.permute.xlu0 %2369
        %v2372 = vsel %vm1576, %v2356, %v2362
        %vm2373 = vcmask 130048
        %v2374 = vsel %vm2373, %v2372, %v2366
        %vm2375 = vcmask 195584
        %v2376 = vsel %vm2375, %v2374, %v2370
        %v2377 = vld [vmem:[%s6] sm:$0xff]
        %v2378 = vld [vmem:[%s6 + $0x8] sm:$0xff]
        %v2379 = vld [vmem:[%s6 + $0x10] sm:$0xff]
        %v2380 = vld [vmem:[%s6 + $0x18] sm:$0xff]
        %v2381 = vld [vmem:[#allocation11] sm:$0x1]
        %v2383 = vlaneseq
        %v2384 = vshrl.u32 %v2383, 7
        %v2385 = vsub.s32 0, %v2384
        %v2386 = vrot.slane %v2381, %v2385
        %v2389 = vsel %vm1052, %v2376, 0
        %2391 = vmatprep.subr.mxu0 0.0
        %2392 = vmatpush1.msra.mxu0 %v2377
        %2393 = vmatprep.subr.mxu0 0.0
        %2394 = vmatpush1.msra.mxu0 %v2378
        %2395 = vmatprep.subr.mxu0 0.0
        %2396 = vmatpush1.msra.mxu0 %v2379
        %2397 = vmatprep.subr.mxu0 0.0
        %2398 = vmatpush1.msra.mxu0 %v2380
        %2399 = vmatprep.subr.mxu0 0.0
        %2400 = vmatpush1.msra.mxu0 0.0
        %2401 = vmatprep.subr.mxu0 0.0
        %2402 = vmatpush1.msra.mxu0 0.0
        %2403 = vmatprep.subr.mxu0 0.0
        %2404 = vmatpush1.msra.mxu0 0.0
        %2405 = vmatprep.subr.mxu0 0.0
        %2406 = vmatpush1.msra.mxu0 0.0
        %2407 = vmatprep.subr.mxu0 0.0
        %2408 = vmatpush1.msra.mxu0 0.0
        %2409 = vmatprep.subr.mxu0 0.0
        %2410 = vmatpush1.msra.mxu0 0.0
        %2411 = vmatprep.subr.mxu0 0.0
        %2412 = vmatpush1.msra.mxu0 0.0
        %2413 = vmatprep.subr.mxu0 0.0
        %2414 = vmatpush1.msra.mxu0 0.0
        %2415 = vmatprep.subr.mxu0 0.0
        %2416 = vmatpush1.msra.mxu0 0.0
        %2417 = vmatprep.subr.mxu0 0.0
        %2418 = vmatpush1.msra.mxu0 0.0
        %2419 = vmatprep.subr.mxu0 0.0
        %2420 = vmatpush1.msra.mxu0 0.0
        %2421 = vmatprep.subr.mxu0 0.0
        %2422 = vmatpush1.msra.mxu0 0.0
        %2423 = vmatprep.subr.mxu0 0.0
        %2424 = vmatpush1.msra.mxu0 0.0
        %2425 = vmatprep.subr.mxu0 0.0
        %2426 = vmatpush1.msra.mxu0 0.0
        %2427 = vmatprep.subr.mxu0 0.0
        %2428 = vmatpush1.msra.mxu0 0.0
        %2429 = vmatprep.subr.mxu0 0.0
        %2430 = vmatpush1.msra.mxu0 0.0
        %2431 = vmatprep.subr.mxu0 0.0
        %2432 = vmatpush1.msra.mxu0 0.0
        %2433 = vmatprep.subr.mxu0 0.0
        %2434 = vmatpush1.msra.mxu0 0.0
        %2435 = vmatprep.subr.mxu0 0.0
        %2436 = vmatpush1.msra.mxu0 0.0
        %2437 = vmatprep.subr.mxu0 0.0
        %2438 = vmatpush1.msra.mxu0 0.0
        %2439 = vmatprep.subr.mxu0 0.0
        %2440 = vmatpush1.msra.mxu0 0.0
        %2441 = vmatprep.subr.mxu0 0.0
        %2442 = vmatpush1.msra.mxu0 0.0
        %2443 = vmatprep.subr.mxu0 0.0
        %2444 = vmatpush1.msra.mxu0 0.0
        %2445 = vmatprep.subr.mxu0 0.0
        %2446 = vmatpush1.msra.mxu0 0.0
        %2447 = vmatprep.subr.mxu0 0.0
        %2448 = vmatpush1.msra.mxu0 0.0
        %2449 = vmatprep.subr.mxu0 0.0
        %2450 = vmatpush1.msra.mxu0 0.0
        %2451 = vmatprep.subr.mxu0 0.0
        %2452 = vmatpush1.msra.mxu0 0.0
        %2453 = vmatprep.subr.mxu0 0.0
        %2454 = vmatpush1.msra.mxu0 0.0
        %2455 = vmatprep.mubr.f32.mxu0 0.0
        %2456 = vmatmul.mubr.f32.gmra.mrb[0].mxu0 %v2389
        %v2457 = vpop.f32.mrb[0].mxu0
        %v2458 = vadd.f32 %v2386, %v2457
        %v2459 = vpop.f32.mrb[0].mxu0
        %2460 = vdwg.mxu0
        %v2461 = vadd.f32 %v1037, %v2458
        %v2462 = vsel %vm1052, %v2461, 0.0
        %2463 = vadd.xlane.f32.xlu0 %v2462
        %v2464 = vpop.xlane.xlu0 %2463
        %v2465 = vrcp.pop 32.0
        %v2466 = vmul.f32 %v2464, %v2465
        %v2467 = vsub.f32 %v2461, %v2466
        %v2468 = vmul.f32 %v2467, %v2467
        %v2469 = vsel %vm1052, %v2468, 0.0
        %2470 = vadd.xlane.f32.xlu0 %v2469
        %v2471 = vpop.xlane.xlu0 %2470
        %v2472 = vmul.f32 %v2471, %v2465
        %v2473 = vadd.f32 %v2472, 1e-05
        %v2474 = vrsqrt.pop %v2473
        %v2475 = vmul.f32 %v2467, %v2474
        %v2476 = vld [vmem:[#allocation19] sm:$0x1]
        %v2478 = vlaneseq
        %v2479 = vshrl.u32 %v2478, 7
        %v2480 = vsub.s32 0, %v2479
        %v2481 = vrot.slane %v2476, %v2480
        %v2483 = vmul.f32 %v2475, %v2481
        %v2484 = vld [vmem:[#allocation20] sm:$0x1]
        %v2486 = vlaneseq
        %v2487 = vshrl.u32 %v2486, 7
        %v2488 = vsub.s32 0, %v2487
        %v2489 = vrot.slane %v2484, %v2488
        %v2491 = vadd.f32 %v2483, %v2489
        %v2492 = vld [vmem:[%s8] sm:$0xff]
        %v2493 = vld [vmem:[%s8 + $0x8] sm:$0xff]
        %v2494 = vld [vmem:[%s8 + $0x10] sm:$0xff]
        %v2495 = vld [vmem:[%s8 + $0x18] sm:$0xff]
        %v2496 = vld [vmem:[#allocation13] sm:$0x1]
        %v2498 = vlaneseq
        %v2499 = vshrl.u32 %v2498, 7
        %v2500 = vsub.s32 0, %v2499
        %v2501 = vrot.slane %v2496, %v2500
        %v2504 = vsel %vm1052, %v2491, 0
        %2506 = vmatprep.subr.mxu0 0.0
        %2507 = vmatpush1.msra.mxu0 %v2492
        %2508 = vmatprep.subr.mxu0 0.0
        %2509 = vmatpush1.msra.mxu0 %v2493
        %2510 = vmatprep.subr.mxu0 0.0
        %2511 = vmatpush1.msra.mxu0 %v2494
        %2512 = vmatprep.subr.mxu0 0.0
        %2513 = vmatpush1.msra.mxu0 %v2495
        %2514 = vmatprep.subr.mxu0 0.0
        %2515 = vmatpush1.msra.mxu0 0.0
        %2516 = vmatprep.subr.mxu0 0.0
        %2517 = vmatpush1.msra.mxu0 0.0
        %2518 = vmatprep.subr.mxu0 0.0
        %2519 = vmatpush1.msra.mxu0 0.0
        %2520 = vmatprep.subr.mxu0 0.0
        %2521 = vmatpush1.msra.mxu0 0.0
        %2522 = vmatprep.subr.mxu0 0.0
        %2523 = vmatpush1.msra.mxu0 0.0
        %2524 = vmatprep.subr.mxu0 0.0
        %2525 = vmatpush1.msra.mxu0 0.0
        %2526 = vmatprep.subr.mxu0 0.0
        %2527 = vmatpush1.msra.mxu0 0.0
        %2528 = vmatprep.subr.mxu0 0.0
        %2529 = vmatpush1.msra.mxu0 0.0
        %2530 = vmatprep.subr.mxu0 0.0
        %2531 = vmatpush1.msra.mxu0 0.0
        %2532 = vmatprep.subr.mxu0 0.0
        %2533 = vmatpush1.msra.mxu0 0.0
        %2534 = vmatprep.subr.mxu0 0.0
        %2535 = vmatpush1.msra.mxu0 0.0
        %2536 = vmatprep.subr.mxu0 0.0
        %2537 = vmatpush1.msra.mxu0 0.0
        %2538 = vmatprep.subr.mxu0 0.0
        %2539 = vmatpush1.msra.mxu0 0.0
        %2540 = vmatprep.subr.mxu0 0.0
        %2541 = vmatpush1.msra.mxu0 0.0
        %2542 = vmatprep.subr.mxu0 0.0
        %2543 = vmatpush1.msra.mxu0 0.0
        %2544 = vmatprep.subr.mxu0 0.0
        %2545 = vmatpush1.msra.mxu0 0.0
        %2546 = vmatprep.subr.mxu0 0.0
        %2547 = vmatpush1.msra.mxu0 0.0
        %2548 = vmatprep.subr.mxu0 0.0
        %2549 = vmatpush1.msra.mxu0 0.0
        %2550 = vmatprep.subr.mxu0 0.0
        %2551 = vmatpush1.msra.mxu0 0.0
        %2552 = vmatprep.subr.mxu0 0.0
        %2553 = vmatpush1.msra.mxu0 0.0
        %2554 = vmatprep.subr.mxu0 0.0
        %2555 = vmatpush1.msra.mxu0 0.0
        %2556 = vmatprep.subr.mxu0 0.0
        %2557 = vmatpush1.msra.mxu0 0.0
        %2558 = vmatprep.subr.mxu0 0.0
        %2559 = vmatpush1.msra.mxu0 0.0
        %2560 = vmatprep.subr.mxu0 0.0
        %2561 = vmatpush1.msra.mxu0 0.0
        %2562 = vmatprep.subr.mxu0 0.0
        %2563 = vmatpush1.msra.mxu0 0.0
        %2564 = vmatprep.subr.mxu0 0.0
        %2565 = vmatpush1.msra.mxu0 0.0
        %2566 = vmatprep.subr.mxu0 0.0
        %2567 = vmatpush1.msra.mxu0 0.0
        %2568 = vmatprep.subr.mxu0 0.0
        %2569 = vmatpush1.msra.mxu0 0.0
        %2570 = vmatprep.mubr.f32.mxu0 0.0
        %2571 = vmatmul.mubr.f32.gmra.mrb[0].mxu0 %v2504
        %v2572 = vpop.f32.mrb[0].mxu0
        %v2573 = vadd.f32 %v2501, %v2572
        %v2574 = vpop.f32.mrb[0].mxu0
        %2575 = vdwg.mxu0
        %v2576 = vmul.f32 %v2573, 0.35355338
        %v2577 = vld [vmem:[%s10] sm:$0xff]
        %v2578 = vld [vmem:[%s10 + $0x8] sm:$0xff]
        %v2579 = vld [vmem:[%s10 + $0x10] sm:$0xff]
        %v2580 = vld [vmem:[%s10 + $0x18] sm:$0xff]
        %v2581 = vld [vmem:[#allocation14] sm:$0x1]
        %v2583 = vlaneseq
        %v2584 = vshrl.u32 %v2583, 7
        %v2585 = vsub.s32 0, %v2584
        %v2586 = vrot.slane %v2581, %v2585
        %v2589 = vsel %vm1052, %v1038, 0
        %2591 = vmatprep.subr.mxu0 0.0
        %2592 = vmatpush1.msra.mxu0 %v2577
        %2593 = vmatprep.subr.mxu0 0.0
        %2594 = vmatpush1.msra.mxu0 %v2578
        %2595 = vmatprep.subr.mxu0 0.0
        %2596 = vmatpush1.msra.mxu0 %v2579
        %2597 = vmatprep.subr.mxu0 0.0
        %2598 = vmatpush1.msra.mxu0 %v2580
        %2599 = vmatprep.subr.mxu0 0.0
        %2600 = vmatpush1.msra.mxu0 0.0
        %2601 = vmatprep.subr.mxu0 0.0
        %2602 = vmatpush1.msra.mxu0 0.0
        %2603 = vmatprep.subr.mxu0 0.0
        %2604 = vmatpush1.msra.mxu0 0.0
        %2605 = vmatprep.subr.mxu0 0.0
        %2606 = vmatpush1.msra.mxu0 0.0
        %2607 = vmatprep.subr.mxu0 0.0
        %2608 = vmatpush1.msra.mxu0 0.0
        %2609 = vmatprep.subr.mxu0 0.0
        %2610 = vmatpush1.msra.mxu0 0.0
        %2611 = vmatprep.subr.mxu0 0.0
        %2612 = vmatpush1.msra.mxu0 0.0
        %2613 = vmatprep.subr.mxu0 0.0
        %2614 = vmatpush1.msra.mxu0 0.0
        %2615 = vmatprep.subr.mxu0 0.0
        %2616 = vmatpush1.msra.mxu0 0.0
        %2617 = vmatprep.subr.mxu0 0.0
        %2618 = vmatpush1.msra.mxu0 0.0
        %2619 = vmatprep.subr.mxu0 0.0
        %2620 = vmatpush1.msra.mxu0 0.0
        %2621 = vmatprep.subr.mxu0 0.0
        %2622 = vmatpush1.msra.mxu0 0.0
        %2623 = vmatprep.subr.mxu0 0.0
        %2624 = vmatpush1.msra.mxu0 0.0
        %2625 = vmatprep.subr.mxu0 0.0
        %2626 = vmatpush1.msra.mxu0 0.0
        %2627 = vmatprep.subr.mxu0 0.0
        %2628 = vmatpush1.msra.mxu0 0.0
        %2629 = vmatprep.subr.mxu0 0.0
        %2630 = vmatpush1.msra.mxu0 0.0
        %2631 = vmatprep.subr.mxu0 0.0
        %2632 = vmatpush1.msra.mxu0 0.0
        %2633 = vmatprep.subr.mxu0 0.0
        %2634 = vmatpush1.msra.mxu0 0.0
        %2635 = vmatprep.subr.mxu0 0.0
        %2636 = vmatpush1.msra.mxu0 0.0
        %2637 = vmatprep.subr.mxu0 0.0
        %2638 = vmatpush1.msra.mxu0 0.0
        %2639 = vmatprep.subr.mxu0 0.0
        %2640 = vmatpush1.msra.mxu0 0.0
        %2641 = vmatprep.subr.mxu0 0.0
        %2642 = vmatpush1.msra.mxu0 0.0
        %2643 = vmatprep.subr.mxu0 0.0
        %2644 = vmatpush1.msra.mxu0 0.0
        %2645 = vmatprep.subr.mxu0 0.0
        %2646 = vmatpush1.msra.mxu0 0.0
        %2647 = vmatprep.subr.mxu0 0.0
        %2648 = vmatpush1.msra.mxu0 0.0
        %2649 = vmatprep.subr.mxu0 0.0
        %2650 = vmatpush1.msra.mxu0 0.0
        %2651 = vmatprep.subr.mxu0 0.0
        %2652 = vmatpush1.msra.mxu0 0.0
        %2653 = vmatprep.subr.mxu0 0.0
        %2654 = vmatpush1.msra.mxu0 0.0
        %2655 = vmatprep.mubr.f32.mxu0 0.0
        %2656 = vmatmul.mubr.f32.gmra.mrb[0].mxu0 %v2589
        %v2657 = vpop.f32.mrb[0].mxu0
        %v2658 = vadd.f32 %v2586, %v2657
        %v2659 = vpop.f32.mrb[0].mxu0
        %2660 = vdwg.mxu0
        %2662 = vrot.lane.b32.xlu0 %v2576, 120
        %v2663 = vpop.permute.xlu0 %2662
        %2665 = vrot.lane.b32.xlu0 %v2576, 112
        %v2666 = vpop.permute.xlu0 %2665
        %2668 = vrot.lane.b32.xlu0 %v2576, 104
        %v2669 = vpop.permute.xlu0 %2668
        %v2671 = vcombine.low %v2576, %v2666
        %v2672 = vcombine.high %v2576, %v2666
        %v2674 = vunpack.c.l.s4 1983009808
        %v2675 = vunpack.c.0.s8 %v2674
        %v2676 = vlaneseq
        %v2677 = vshrl.u32 %v2676, 7
        %v2678 = vsub.s32 %v2675, %v2677
        %v2679 = vrot.slane %v2671, %v2678
        %v2681 = vunpack.c.l.s4 1983009808
        %v2682 = vunpack.c.0.s8 %v2681
        %v2683 = vlaneseq
        %v2684 = vshrl.u32 %v2683, 7
        %v2685 = vsub.s32 %v2682, %v2684
        %v2686 = vrot.slane %v2672, %v2685
        %v2687 = vcombine.low %v2663, %v2669
        %v2688 = vcombine.high %v2663, %v2669
        %v2690 = vunpack.c.l.s4 1983009808
        %v2691 = vunpack.c.0.s8 %v2690
        %v2692 = vlaneseq
        %v2693 = vshrl.u32 %v2692, 7
        %v2694 = vsub.s32 %v2691, %v2693
        %v2695 = vrot.slane %v2687, %v2694
        %v2697 = vunpack.c.l.s4 1983009808
        %v2698 = vunpack.c.0.s8 %v2697
        %v2699 = vlaneseq
        %v2700 = vshrl.u32 %v2699, 7
        %v2701 = vsub.s32 %v2698, %v2700
        %v2702 = vrot.slane %v2688, %v2701
        %v2703 = vcombine.low %v2679, %v2695
        %v2704 = vcombine.high %v2679, %v2695
        %v2706 = vunpack.c.l.s4 1934713408
        %v2707 = vunpack.c.0.s8 %v2706
        %v2708 = vlaneseq
        %v2709 = vshrl.u32 %v2708, 7
        %v2710 = vsub.s32 %v2707, %v2709
        %v2711 = vrot.slane %v2703, %v2710
        %v2713 = vunpack.c.l.s4 1934713408
        %v2714 = vunpack.c.0.s8 %v2713
        %v2715 = vlaneseq
        %v2716 = vshrl.u32 %v2715, 7
        %v2717 = vsub.s32 %v2714, %v2716
        %v2718 = vrot.slane %v2704, %v2717
        %v2719 = vcombine.low %v2686, %v2702
        %v2720 = vcombine.high %v2686, %v2702
        %v2722 = vunpack.c.l.s4 1934713408
        %v2723 = vunpack.c.0.s8 %v2722
        %v2724 = vlaneseq
        %v2725 = vshrl.u32 %v2724, 7
        %v2726 = vsub.s32 %v2723, %v2725
        %v2727 = vrot.slane %v2719, %v2726
        %v2729 = vunpack.c.l.s4 1934713408
        %v2730 = vunpack.c.0.s8 %v2729
        %v2731 = vlaneseq
        %v2732 = vshrl.u32 %v2731, 7
        %v2733 = vsub.s32 %v2730, %v2732
        %v2734 = vrot.slane %v2720, %v2733
        %v2735 = vcombine.high %v2711, 0.0
        %v2736 = vcombine.high %v2718, 0.0
        %v2737 = vcombine.high %v2727, 0.0
        %v2738 = vcombine.high %v2734, 0.0
        %v2739 = vcombine.low %v2711, %v2718
        %v2741 = vunpack.c.l.s4 1983009808
        %v2742 = vunpack.c.0.s8 %v2741
        %v2743 = vlaneseq
        %v2744 = vshrl.u32 %v2743, 7
        %v2745 = vsub.s32 %v2742, %v2744
        %v2746 = vrot.slane %v2739, %v2745
        %v2747 = vcombine.low %v2735, %v2736
        %v2749 = vunpack.c.l.s4 1983009808
        %v2750 = vunpack.c.0.s8 %v2749
        %v2751 = vlaneseq
        %v2752 = vshrl.u32 %v2751, 7
        %v2753 = vsub.s32 %v2750, %v2752
        %v2754 = vrot.slane %v2747, %v2753
        %v2755 = vcombine.low %v2727, %v2734
        %v2757 = vunpack.c.l.s4 1983009808
        %v2758 = vunpack.c.0.s8 %v2757
        %v2759 = vlaneseq
        %v2760 = vshrl.u32 %v2759, 7
        %v2761 = vsub.s32 %v2758, %v2760
        %v2762 = vrot.slane %v2755, %v2761
        %v2763 = vcombine.low %v2737, %v2738
        %v2765 = vunpack.c.l.s4 1983009808
        %v2766 = vunpack.c.0.s8 %v2765
        %v2767 = vlaneseq
        %v2768 = vshrl.u32 %v2767, 7
        %v2769 = vsub.s32 %v2766, %v2768
        %v2770 = vrot.slane %v2763, %v2769
        %v2771 = vcombine.low %v2746, %v2754
        %v2772 = vcombine.high %v2746, %v2754
        %v2774 = vunpack.c.l.s4 1934713408
        %v2775 = vunpack.c.0.s8 %v2774
        %v2776 = vlaneseq
        %v2777 = vshrl.u32 %v2776, 7
        %v2778 = vsub.s32 %v2775, %v2777
        %v2779 = vrot.slane %v2771, %v2778
        %v2781 = vunpack.c.l.s4 1934713408
        %v2782 = vunpack.c.0.s8 %v2781
        %v2783 = vlaneseq
        %v2784 = vshrl.u32 %v2783, 7
        %v2785 = vsub.s32 %v2782, %v2784
        %v2786 = vrot.slane %v2772, %v2785
        %v2787 = vcombine.low %v2762, %v2770
        %v2788 = vcombine.high %v2762, %v2770
        %v2790 = vunpack.c.l.s4 1934713408
        %v2791 = vunpack.c.0.s8 %v2790
        %v2792 = vlaneseq
        %v2793 = vshrl.u32 %v2792, 7
        %v2794 = vsub.s32 %v2791, %v2793
        %v2795 = vrot.slane %v2787, %v2794
        %v2797 = vunpack.c.l.s4 1934713408
        %v2798 = vunpack.c.0.s8 %v2797
        %v2799 = vlaneseq
        %v2800 = vshrl.u32 %v2799, 7
        %v2801 = vsub.s32 %v2798, %v2800
        %v2802 = vrot.slane %v2788, %v2801
        %v2803 = vcombine.low %v2779, %v2795
        %v2804 = vcombine.high %v2779, %v2795
        %v2805 = vcombine.low %v2786, %v2802
        %v2806 = vcombine.high %v2786, %v2802
        %2808 = vrot.lane.b32.xlu0 %v2658, 120
        %v2809 = vpop.permute.xlu0 %2808
        %2811 = vrot.lane.b32.xlu0 %v2658, 112
        %v2812 = vpop.permute.xlu0 %2811
        %2814 = vrot.lane.b32.xlu0 %v2658, 104
        %v2815 = vpop.permute.xlu0 %2814
        %v2817 = vcombine.low %v2658, %v2812
        %v2818 = vcombine.high %v2658, %v2812
        %v2820 = vunpack.c.l.s4 1983009808
        %v2821 = vunpack.c.0.s8 %v2820
        %v2822 = vlaneseq
        %v2823 = vshrl.u32 %v2822, 7
        %v2824 = vsub.s32 %v2821, %v2823
        %v2825 = vrot.slane %v2817, %v2824
        %v2827 = vunpack.c.l.s4 1983009808
        %v2828 = vunpack.c.0.s8 %v2827
        %v2829 = vlaneseq
        %v2830 = vshrl.u32 %v2829, 7
        %v2831 = vsub.s32 %v2828, %v2830
        %v2832 = vrot.slane %v2818, %v2831
        %v2833 = vcombine.low %v2809, %v2815
        %v2834 = vcombine.high %v2809, %v2815
        %v2836 = vunpack.c.l.s4 1983009808
        %v2837 = vunpack.c.0.s8 %v2836
        %v2838 = vlaneseq
        %v2839 = vshrl.u32 %v2838, 7
        %v2840 = vsub.s32 %v2837, %v2839
        %v2841 = vrot.slane %v2833, %v2840
        %v2843 = vunpack.c.l.s4 1983009808
        %v2844 = vunpack.c.0.s8 %v2843
        %v2845 = vlaneseq
        %v2846 = vshrl.u32 %v2845, 7
        %v2847 = vsub.s32 %v2844, %v2846
        %v2848 = vrot.slane %v2834, %v2847
        %v2849 = vcombine.low %v2825, %v2841
        %v2850 = vcombine.high %v2825, %v2841
        %v2852 = vunpack.c.l.s4 1934713408
        %v2853 = vunpack.c.0.s8 %v2852
        %v2854 = vlaneseq
        %v2855 = vshrl.u32 %v2854, 7
        %v2856 = vsub.s32 %v2853, %v2855
        %v2857 = vrot.slane %v2849, %v2856
        %v2859 = vunpack.c.l.s4 1934713408
        %v2860 = vunpack.c.0.s8 %v2859
        %v2861 = vlaneseq
        %v2862 = vshrl.u32 %v2861, 7
        %v2863 = vsub.s32 %v2860, %v2862
        %v2864 = vrot.slane %v2850, %v2863
        %v2865 = vcombine.low %v2832, %v2848
        %v2866 = vcombine.high %v2832, %v2848
        %v2868 = vunpack.c.l.s4 1934713408
        %v2869 = vunpack.c.0.s8 %v2868
        %v2870 = vlaneseq
        %v2871 = vshrl.u32 %v2870, 7
        %v2872 = vsub.s32 %v2869, %v2871
        %v2873 = vrot.slane %v2865, %v2872
        %v2875 = vunpack.c.l.s4 1934713408
        %v2876 = vunpack.c.0.s8 %v2875
        %v2877 = vlaneseq
        %v2878 = vshrl.u32 %v2877, 7
        %v2879 = vsub.s32 %v2876, %v2878
        %v2880 = vrot.slane %v2866, %v2879
        %v2881 = vcombine.high %v2857, 0.0
        %v2882 = vcombine.high %v2864, 0.0
        %v2883 = vcombine.high %v2873, 0.0
        %v2884 = vcombine.high %v2880, 0.0
        %v2885 = vcombine.low %v2857, %v2864
        %v2887 = vunpack.c.l.s4 1983009808
        %v2888 = vunpack.c.0.s8 %v2887
        %v2889 = vlaneseq
        %v2890 = vshrl.u32 %v2889, 7
        %v2891 = vsub.s32 %v2888, %v2890
        %v2892 = vrot.slane %v2885, %v2891
        %v2893 = vcombine.low %v2881, %v2882
        %v2895 = vunpack.c.l.s4 1983009808
        %v2896 = vunpack.c.0.s8 %v2895
        %v2897 = vlaneseq
        %v2898 = vshrl.u32 %v2897, 7
        %v2899 = vsub.s32 %v2896, %v2898
        %v2900 = vrot.slane %v2893, %v2899
        %v2901 = vcombine.low %v2873, %v2880
        %v2903 = vunpack.c.l.s4 1983009808
        %v2904 = vunpack.c.0.s8 %v2903
        %v2905 = vlaneseq
        %v2906 = vshrl.u32 %v2905, 7
        %v2907 = vsub.s32 %v2904, %v2906
        %v2908 = vrot.slane %v2901, %v2907
        %v2909 = vcombine.low %v2883, %v2884
        %v2911 = vunpack.c.l.s4 1983009808
        %v2912 = vunpack.c.0.s8 %v2911
        %v2913 = vlaneseq
        %v2914 = vshrl.u32 %v2913, 7
        %v2915 = vsub.s32 %v2912, %v2914
        %v2916 = vrot.slane %v2909, %v2915
        %v2917 = vcombine.low %v2892, %v2900
        %v2918 = vcombine.high %v2892, %v2900
        %v2920 = vunpack.c.l.s4 1934713408
        %v2921 = vunpack.c.0.s8 %v2920
        %v2922 = vlaneseq
        %v2923 = vshrl.u32 %v2922, 7
        %v2924 = vsub.s32 %v2921, %v2923
        %v2925 = vrot.slane %v2917, %v2924
        %v2927 = vunpack.c.l.s4 1934713408
        %v2928 = vunpack.c.0.s8 %v2927
        %v2929 = vlaneseq
        %v2930 = vshrl.u32 %v2929, 7
        %v2931 = vsub.s32 %v2928, %v2930
        %v2932 = vrot.slane %v2918, %v2931
        %v2933 = vcombine.low %v2908, %v2916
        %v2934 = vcombine.high %v2908, %v2916
        %v2936 = vunpack.c.l.s4 1934713408
        %v2937 = vunpack.c.0.s8 %v2936
        %v2938 = vlaneseq
        %v2939 = vshrl.u32 %v2938, 7
        %v2940 = vsub.s32 %v2937, %v2939
        %v2941 = vrot.slane %v2933, %v2940
        %v2943 = vunpack.c.l.s4 1934713408
        %v2944 = vunpack.c.0.s8 %v2943
        %v2945 = vlaneseq
        %v2946 = vshrl.u32 %v2945, 7
        %v2947 = vsub.s32 %v2944, %v2946
        %v2948 = vrot.slane %v2934, %v2947
        %v2949 = vcombine.low %v2925, %v2941
        %v2950 = vcombine.high %v2925, %v2941
        %v2951 = vcombine.low %v2932, %v2948
        %v2952 = vcombine.high %v2932, %v2948
        %2953 = vrot.lane.b32.xlu0 %v2658, 96
        %v2954 = vpop.permute.xlu0 %2953
        %2955 = vrot.lane.b32.xlu0 %v2809, 96
        %v2956 = vpop.permute.xlu0 %2955
        %2957 = vrot.lane.b32.xlu0 %v2812, 96
        %v2958 = vpop.permute.xlu0 %2957
        %2959 = vrot.lane.b32.xlu0 %v2815, 96
        %v2960 = vpop.permute.xlu0 %2959
        %v2965 = vcombine.low %v2954, %v2958
        %v2966 = vcombine.high %v2954, %v2958
        %v2968 = vunpack.c.l.s4 1983009808
        %v2969 = vunpack.c.0.s8 %v2968
        %v2970 = vlaneseq
        %v2971 = vshrl.u32 %v2970, 7
        %v2972 = vsub.s32 %v2969, %v2971
        %v2973 = vrot.slane %v2965, %v2972
        %v2975 = vunpack.c.l.s4 1983009808
        %v2976 = vunpack.c.0.s8 %v2975
        %v2977 = vlaneseq
        %v2978 = vshrl.u32 %v2977, 7
        %v2979 = vsub.s32 %v2976, %v2978
        %v2980 = vrot.slane %v2966, %v2979
        %v2981 = vcombine.low %v2956, %v2960
        %v2982 = vcombine.high %v2956, %v2960
        %v2984 = vunpack.c.l.s4 1983009808
        %v2985 = vunpack.c.0.s8 %v2984
        %v2986 = vlaneseq
        %v2987 = vshrl.u32 %v2986, 7
        %v2988 = vsub.s32 %v2985, %v2987
        %v2989 = vrot.slane %v2981, %v2988
        %v2991 = vunpack.c.l.s4 1983009808
        %v2992 = vunpack.c.0.s8 %v2991
        %v2993 = vlaneseq
        %v2994 = vshrl.u32 %v2993, 7
        %v2995 = vsub.s32 %v2992, %v2994
        %v2996 = vrot.slane %v2982, %v2995
        %v2997 = vcombine.low %v2973, %v2989
        %v2998 = vcombine.high %v2973, %v2989
        %v3000 = vunpack.c.l.s4 1934713408
        %v3001 = vunpack.c.0.s8 %v3000
        %v3002 = vlaneseq
        %v3003 = vshrl.u32 %v3002, 7
        %v3004 = vsub.s32 %v3001, %v3003
        %v3005 = vrot.slane %v2997, %v3004
        %v3007 = vunpack.c.l.s4 1934713408
        %v3008 = vunpack.c.0.s8 %v3007
        %v3009 = vlaneseq
        %v3010 = vshrl.u32 %v3009, 7
        %v3011 = vsub.s32 %v3008, %v3010
        %v3012 = vrot.slane %v2998, %v3011
        %v3013 = vcombine.low %v2980, %v2996
        %v3014 = vcombine.high %v2980, %v2996
        %v3016 = vunpack.c.l.s4 1934713408
        %v3017 = vunpack.c.0.s8 %v3016
        %v3018 = vlaneseq
        %v3019 = vshrl.u32 %v3018, 7
        %v3020 = vsub.s32 %v3017, %v3019
        %v3021 = vrot.slane %v3013, %v3020
        %v3023 = vunpack.c.l.s4 1934713408
        %v3024 = vunpack.c.0.s8 %v3023
        %v3025 = vlaneseq
        %v3026 = vshrl.u32 %v3025, 7
        %v3027 = vsub.s32 %v3024, %v3026
        %v3028 = vrot.slane %v3014, %v3027
        %v3029 = vcombine.high %v3005, 0.0
        %v3030 = vcombine.high %v3012, 0.0
        %v3031 = vcombine.high %v3021, 0.0
        %v3032 = vcombine.high %v3028, 0.0
        %v3033 = vcombine.low %v3005, %v3012
        %v3035 = vunpack.c.l.s4 1983009808
        %v3036 = vunpack.c.0.s8 %v3035
        %v3037 = vlaneseq
        %v3038 = vshrl.u32 %v3037, 7
        %v3039 = vsub.s32 %v3036, %v3038
        %v3040 = vrot.slane %v3033, %v3039
        %v3041 = vcombine.low %v3029, %v3030
        %v3043 = vunpack.c.l.s4 1983009808
        %v3044 = vunpack.c.0.s8 %v3043
        %v3045 = vlaneseq
        %v3046 = vshrl.u32 %v3045, 7
        %v3047 = vsub.s32 %v3044, %v3046
        %v3048 = vrot.slane %v3041, %v3047
        %v3049 = vcombine.low %v3021, %v3028
        %v3051 = vunpack.c.l.s4 1983009808
        %v3052 = vunpack.c.0.s8 %v3051
        %v3053 = vlaneseq
        %v3054 = vshrl.u32 %v3053, 7
        %v3055 = vsub.s32 %v3052, %v3054
        %v3056 = vrot.slane %v3049, %v3055
        %v3057 = vcombine.low %v3031, %v3032
        %v3059 = vunpack.c.l.s4 1983009808
        %v3060 = vunpack.c.0.s8 %v3059
        %v3061 = vlaneseq
        %v3062 = vshrl.u32 %v3061, 7
        %v3063 = vsub.s32 %v3060, %v3062
        %v3064 = vrot.slane %v3057, %v3063
        %v3065 = vcombine.low %v3040, %v3048
        %v3066 = vcombine.high %v3040, %v3048
        %v3068 = vunpack.c.l.s4 1934713408
        %v3069 = vunpack.c.0.s8 %v3068
        %v3070 = vlaneseq
        %v3071 = vshrl.u32 %v3070, 7
        %v3072 = vsub.s32 %v3069, %v3071
        %v3073 = vrot.slane %v3065, %v3072
        %v3075 = vunpack.c.l.s4 1934713408
        %v3076 = vunpack.c.0.s8 %v3075
        %v3077 = vlaneseq
        %v3078 = vshrl.u32 %v3077, 7
        %v3079 = vsub.s32 %v3076, %v3078
        %v3080 = vrot.slane %v3066, %v3079
        %v3081 = vcombine.low %v3056, %v3064
        %v3082 = vcombine.high %v3056, %v3064
        %v3084 = vunpack.c.l.s4 1934713408
        %v3085 = vunpack.c.0.s8 %v3084
        %v3086 = vlaneseq
        %v3087 = vshrl.u32 %v3086, 7
        %v3088 = vsub.s32 %v3085, %v3087
        %v3089 = vrot.slane %v3081, %v3088
        %v3091 = vunpack.c.l.s4 1934713408
        %v3092 = vunpack.c.0.s8 %v3091
        %v3093 = vlaneseq
        %v3094 = vshrl.u32 %v3093, 7
        %v3095 = vsub.s32 %v3092, %v3094
        %v3096 = vrot.slane %v3082, %v3095
        %v3097 = vcombine.low %v3073, %v3089
        %v3098 = vcombine.high %v3073, %v3089
        %v3099 = vcombine.low %v3080, %v3096
        %v3100 = vcombine.high %v3080, %v3096
        %v3102 = vsel %vm1576, %v2803, 0
        %v3105 = vsel %vm1576, %v2949, 0
        %3107 = vmatprep.subr.mxu0 0.0
        %3108 = vmatpush1.xpose.msra.mxu0 %v3105
        %3109 = vmatprep.subr.mxu0 0.0
        %3110 = vmatpush1.xpose.msra.mxu0 0.0
        %3111 = vmatprep.subr.mxu0 0.0
        %3112 = vmatpush1.xpose.msra.mxu0 0.0
        %3113 = vmatprep.subr.mxu0 0.0
        %3114 = vmatpush1.xpose.msra.mxu0 0.0
        %3115 = vmatprep.subr.mxu0 0.0
        %3116 = vmatpush1.xpose.msra.mxu0 0.0
        %3117 = vmatprep.subr.mxu0 0.0
        %3118 = vmatpush1.xpose.msra.mxu0 0.0
        %3119 = vmatprep.subr.mxu0 0.0
        %3120 = vmatpush1.xpose.msra.mxu0 0.0
        %3121 = vmatprep.subr.mxu0 0.0
        %3122 = vmatpush1.xpose.msra.mxu0 0.0
        %3123 = vmatprep.subr.mxu0 0.0
        %3124 = vmatpush1.xpose.msra.mxu0 0.0
        %3125 = vmatprep.subr.mxu0 0.0
        %3126 = vmatpush1.xpose.msra.mxu0 0.0
        %3127 = vmatprep.subr.mxu0 0.0
        %3128 = vmatpush1.xpose.msra.mxu0 0.0
        %3129 = vmatprep.subr.mxu0 0.0
        %3130 = vmatpush1.xpose.msra.mxu0 0.0
        %3131 = vmatprep.subr.mxu0 0.0
        %3132 = vmatpush1.xpose.msra.mxu0 0.0
        %3133 = vmatprep.subr.mxu0 0.0
        %3134 = vmatpush1.xpose.msra.mxu0 0.0
        %3135 = vmatprep.subr.mxu0 0.0
        %3136 = vmatpush1.xpose.msra.mxu0 0.0
        %3137 = vmatprep.subr.mxu0 0.0
        %3138 = vmatpush1.xpose.msra.mxu0 0.0
        %3139 = vmatprep.subr.mxu0 0.0
        %3140 = vmatpush1.xpose.msra.mxu0 0.0
        %3141 = vmatprep.subr.mxu0 0.0
        %3142 = vmatpush1.xpose.msra.mxu0 0.0
        %3143 = vmatprep.subr.mxu0 0.0
        %3144 = vmatpush1.xpose.msra.mxu0 0.0
        %3145 = vmatprep.subr.mxu0 0.0
        %3146 = vmatpush1.xpose.msra.mxu0 0.0
        %3147 = vmatprep.subr.mxu0 0.0
        %3148 = vmatpush1.xpose.msra.mxu0 0.0
        %3149 = vmatprep.subr.mxu0 0.0
        %3150 = vmatpush1.xpose.msra.mxu0 0.0
        %3151 = vmatprep.subr.mxu0 0.0
        %3152 = vmatpush1.xpose.msra.mxu0 0.0
        %3153 = vmatprep.subr.mxu0 0.0
        %3154 = vmatpush1.xpose.msra.mxu0 0.0
        %3155 = vmatprep.subr.mxu0 0.0
        %3156 = vmatpush1.xpose.msra.mxu0 0.0
        %3157 = vmatprep.subr.mxu0 0.0
        %3158 = vmatpush1.xpose.msra.mxu0 0.0
        %3159 = vmatprep.subr.mxu0 0.0
        %3160 = vmatpush1.xpose.msra.mxu0 0.0
        %3161 = vmatprep.subr.mxu0 0.0
        %3162 = vmatpush1.xpose.msra.mxu0 0.0
        %3163 = vmatprep.subr.mxu0 0.0
        %3164 = vmatpush1.xpose.msra.mxu0 0.0
        %3165 = vmatprep.subr.mxu0 0.0
        %3166 = vmatpush1.xpose.msra.mxu0 0.0
        %3167 = vmatprep.subr.mxu0 0.0
        %3168 = vmatpush1.xpose.msra.mxu0 0.0
        %3169 = vmatprep.subr.mxu0 0.0
        %3170 = vmatpush1.xpose.msra.mxu0 0.0
        %3171 = vmatprep.mubr.f32.mxu0 0.0
        %3172 = vmatmul.mubr.f32.gmra.mrb[0].mxu0 %v3102
        %v3173 = vpop.f32.mrb[0].mxu0
        %v3174 = vadd.f32 0.0, %v3173
        %v3175 = vpop.f32.mrb[0].mxu0
        %3176 = vdwg.mxu0
        %v3178 = vsel %vm1576, %v2804, 0
        %v3181 = vsel %vm1576, %v2950, 0
        %3183 = vmatprep.subr.mxu0 0.0
        %3184 = vmatpush1.xpose.msra.mxu0 %v3181
        %3185 = vmatprep.subr.mxu0 0.0
        %3186 = vmatpush1.xpose.msra.mxu0 0.0
        %3187 = vmatprep.subr.mxu0 0.0
        %3188 = vmatpush1.xpose.msra.mxu0 0.0
        %3189 = vmatprep.subr.mxu0 0.0
        %3190 = vmatpush1.xpose.msra.mxu0 0.0
        %3191 = vmatprep.subr.mxu0 0.0
        %3192 = vmatpush1.xpose.msra.mxu0 0.0
        %3193 = vmatprep.subr.mxu0 0.0
        %3194 = vmatpush1.xpose.msra.mxu0 0.0
        %3195 = vmatprep.subr.mxu0 0.0
        %3196 = vmatpush1.xpose.msra.mxu0 0.0
        %3197 = vmatprep.subr.mxu0 0.0
        %3198 = vmatpush1.xpose.msra.mxu0 0.0
        %3199 = vmatprep.subr.mxu0 0.0
        %3200 = vmatpush1.xpose.msra.mxu0 0.0
        %3201 = vmatprep.subr.mxu0 0.0
        %3202 = vmatpush1.xpose.msra.mxu0 0.0
        %3203 = vmatprep.subr.mxu0 0.0
        %3204 = vmatpush1.xpose.msra.mxu0 0.0
        %3205 = vmatprep.subr.mxu0 0.0
        %3206 = vmatpush1.xpose.msra.mxu0 0.0
        %3207 = vmatprep.subr.mxu0 0.0
        %3208 = vmatpush1.xpose.msra.mxu0 0.0
        %3209 = vmatprep.subr.mxu0 0.0
        %3210 = vmatpush1.xpose.msra.mxu0 0.0
        %3211 = vmatprep.subr.mxu0 0.0
        %3212 = vmatpush1.xpose.msra.mxu0 0.0
        %3213 = vmatprep.subr.mxu0 0.0
        %3214 = vmatpush1.xpose.msra.mxu0 0.0
        %3215 = vmatprep.subr.mxu0 0.0
        %3216 = vmatpush1.xpose.msra.mxu0 0.0
        %3217 = vmatprep.subr.mxu0 0.0
        %3218 = vmatpush1.xpose.msra.mxu0 0.0
        %3219 = vmatprep.subr.mxu0 0.0
        %3220 = vmatpush1.xpose.msra.mxu0 0.0
        %3221 = vmatprep.subr.mxu0 0.0
        %3222 = vmatpush1.xpose.msra.mxu0 0.0
        %3223 = vmatprep.subr.mxu0 0.0
        %3224 = vmatpush1.xpose.msra.mxu0 0.0
        %3225 = vmatprep.subr.mxu0 0.0
        %3226 = vmatpush1.xpose.msra.mxu0 0.0
        %3227 = vmatprep.subr.mxu0 0.0
        %3228 = vmatpush1.xpose.msra.mxu0 0.0
        %3229 = vmatprep.subr.mxu0 0.0
        %3230 = vmatpush1.xpose.msra.mxu0 0.0
        %3231 = vmatprep.subr.mxu0 0.0
        %3232 = vmatpush1.xpose.msra.mxu0 0.0
        %3233 = vmatprep.subr.mxu0 0.0
        %3234 = vmatpush1.xpose.msra.mxu0 0.0
        %3235 = vmatprep.subr.mxu0 0.0
        %3236 = vmatpush1.xpose.msra.mxu0 0.0
        %3237 = vmatprep.subr.mxu0 0.0
        %3238 = vmatpush1.xpose.msra.mxu0 0.0
        %3239 = vmatprep.subr.mxu0 0.0
        %3240 = vmatpush1.xpose.msra.mxu0 0.0
        %3241 = vmatprep.subr.mxu0 0.0
        %3242 = vmatpush1.xpose.msra.mxu0 0.0
        %3243 = vmatprep.subr.mxu0 0.0
        %3244 = vmatpush1.xpose.msra.mxu0 0.0
        %3245 = vmatprep.subr.mxu0 0.0
        %3246 = vmatpush1.xpose.msra.mxu0 0.0
        %3247 = vmatprep.mubr.f32.mxu0 0.0
        %3248 = vmatmul.mubr.f32.gmra.mrb[0].mxu0 %v3178
        %v3249 = vpop.f32.mrb[0].mxu0
        %v3250 = vadd.f32 0.0, %v3249
        %v3251 = vpop.f32.mrb[0].mxu0
        %3252 = vdwg.mxu0
        %v3254 = vsel %vm1576, %v2805, 0
        %v3257 = vsel %vm1576, %v2951, 0
        %3259 = vmatprep.subr.mxu0 0.0
        %3260 = vmatpush1.xpose.msra.mxu0 %v3257
        %3261 = vmatprep.subr.mxu0 0.0
        %3262 = vmatpush1.xpose.msra.mxu0 0.0
        %3263 = vmatprep.subr.mxu0 0.0
        %3264 = vmatpush1.xpose.msra.mxu0 0.0
        %3265 = vmatprep.subr.mxu0 0.0
        %3266 = vmatpush1.xpose.msra.mxu0 0.0
        %3267 = vmatprep.subr.mxu0 0.0
        %3268 = vmatpush1.xpose.msra.mxu0 0.0
        %3269 = vmatprep.subr.mxu0 0.0
        %3270 = vmatpush1.xpose.msra.mxu0 0.0
        %3271 = vmatprep.subr.mxu0 0.0
        %3272 = vmatpush1.xpose.msra.mxu0 0.0
        %3273 = vmatprep.subr.mxu0 0.0
        %3274 = vmatpush1.xpose.msra.mxu0 0.0
        %3275 = vmatprep.subr.mxu0 0.0
        %3276 = vmatpush1.xpose.msra.mxu0 0.0
        %3277 = vmatprep.subr.mxu0 0.0
        %3278 = vmatpush1.xpose.msra.mxu0 0.0
        %3279 = vmatprep.subr.mxu0 0.0
        %3280 = vmatpush1.xpose.msra.mxu0 0.0
        %3281 = vmatprep.subr.mxu0 0.0
        %3282 = vmatpush1.xpose.msra.mxu0 0.0
        %3283 = vmatprep.subr.mxu0 0.0
        %3284 = vmatpush1.xpose.msra.mxu0 0.0
        %3285 = vmatprep.subr.mxu0 0.0
        %3286 = vmatpush1.xpose.msra.mxu0 0.0
        %3287 = vmatprep.subr.mxu0 0.0
        %3288 = vmatpush1.xpose.msra.mxu0 0.0
        %3289 = vmatprep.subr.mxu0 0.0
        %3290 = vmatpush1.xpose.msra.mxu0 0.0
        %3291 = vmatprep.subr.mxu0 0.0
        %3292 = vmatpush1.xpose.msra.mxu0 0.0
        %3293 = vmatprep.subr.mxu0 0.0
        %3294 = vmatpush1.xpose.msra.mxu0 0.0
        %3295 = vmatprep.subr.mxu0 0.0
        %3296 = vmatpush1.xpose.msra.mxu0 0.0
        %3297 = vmatprep.subr.mxu0 0.0
        %3298 = vmatpush1.xpose.msra.mxu0 0.0
        %3299 = vmatprep.subr.mxu0 0.0
        %3300 = vmatpush1.xpose.msra.mxu0 0.0
        %3301 = vmatprep.subr.mxu0 0.0
        %3302 = vmatpush1.xpose.msra.mxu0 0.0
        %3303 = vmatprep.subr.mxu0 0.0
        %3304 = vmatpush1.xpose.msra.mxu0 0.0
        %3305 = vmatprep.subr.mxu0 0.0
        %3306 = vmatpush1.xpose.msra.mxu0 0.0
        %3307 = vmatprep.subr.mxu0 0.0
        %3308 = vmatpush1.xpose.msra.mxu0 0.0
        %3309 = vmatprep.subr.mxu0 0.0
        %3310 = vmatpush1.xpose.msra.mxu0 0.0
        %3311 = vmatprep.subr.mxu0 0.0
        %3312 = vmatpush1.xpose.msra.mxu0 0.0
        %3313 = vmatprep.subr.mxu0 0.0
        %3314 = vmatpush1.xpose.msra.mxu0 0.0
        %3315 = vmatprep.subr.mxu0 0.0
        %3316 = vmatpush1.xpose.msra.mxu0 0.0
        %3317 = vmatprep.subr.mxu0 0.0
        %3318 = vmatpush1.xpose.msra.mxu0 0.0
        %3319 = vmatprep.subr.mxu0 0.0
        %3320 = vmatpush1.xpose.msra.mxu0 0.0
        %3321 = vmatprep.subr.mxu0 0.0
        %3322 = vmatpush1.xpose.msra.mxu0 0.0
        %3323 = vmatprep.mubr.f32.mxu0 0.0
        %3324 = vmatmul.mubr.f32.gmra.mrb[0].mxu0 %v3254
        %v3325 = vpop.f32.mrb[0].mxu0
        %v3326 = vadd.f32 0.0, %v3325
        %v3327 = vpop.f32.mrb[0].mxu0
        %3328 = vdwg.mxu0
        %v3330 = vsel %vm1576, %v2806, 0
        %v3333 = vsel %vm1576, %v2952, 0
        %3335 = vmatprep.subr.mxu0 0.0
        %3336 = vmatpush1.xpose.msra.mxu0 %v3333
        %3337 = vmatprep.subr.mxu0 0.0
        %3338 = vmatpush1.xpose.msra.mxu0 0.0
        %3339 = vmatprep.subr.mxu0 0.0
        %3340 = vmatpush1.xpose.msra.mxu0 0.0
        %3341 = vmatprep.subr.mxu0 0.0
        %3342 = vmatpush1.xpose.msra.mxu0 0.0
        %3343 = vmatprep.subr.mxu0 0.0
        %3344 = vmatpush1.xpose.msra.mxu0 0.0
        %3345 = vmatprep.subr.mxu0 0.0
        %3346 = vmatpush1.xpose.msra.mxu0 0.0
        %3347 = vmatprep.subr.mxu0 0.0
        %3348 = vmatpush1.xpose.msra.mxu0 0.0
        %3349 = vmatprep.subr.mxu0 0.0
        %3350 = vmatpush1.xpose.msra.mxu0 0.0
        %3351 = vmatprep.subr.mxu0 0.0
        %3352 = vmatpush1.xpose.msra.mxu0 0.0
        %3353 = vmatprep.subr.mxu0 0.0
        %3354 = vmatpush1.xpose.msra.mxu0 0.0
        %3355 = vmatprep.subr.mxu0 0.0
        %3356 = vmatpush1.xpose.msra.mxu0 0.0
        %3357 = vmatprep.subr.mxu0 0.0
        %3358 = vmatpush1.xpose.msra.mxu0 0.0
        %3359 = vmatprep.subr.mxu0 0.0
        %3360 = vmatpush1.xpose.msra.mxu0 0.0
        %3361 = vmatprep.subr.mxu0 0.0
        %3362 = vmatpush1.xpose.msra.mxu0 0.0
        %3363 = vmatprep.subr.mxu0 0.0
        %3364 = vmatpush1.xpose.msra.mxu0 0.0
        %3365 = vmatprep.subr.mxu0 0.0
        %3366 = vmatpush1.xpose.msra.mxu0 0.0
        %3367 = vmatprep.subr.mxu0 0.0
        %3368 = vmatpush1.xpose.msra.mxu0 0.0
        %3369 = vmatprep.subr.mxu0 0.0
        %3370 = vmatpush1.xpose.msra.mxu0 0.0
        %3371 = vmatprep.subr.mxu0 0.0
        %3372 = vmatpush1.xpose.msra.mxu0 0.0
        %3373 = vmatprep.subr.mxu0 0.0
        %3374 = vmatpush1.xpose.msra.mxu0 0.0
        %3375 = vmatprep.subr.mxu0 0.0
        %3376 = vmatpush1.xpose.msra.mxu0 0.0
        %3377 = vmatprep.subr.mxu0 0.0
        %3378 = vmatpush1.xpose.msra.mxu0 0.0
        %3379 = vmatprep.subr.mxu0 0.0
        %3380 = vmatpush1.xpose.msra.mxu0 0.0
        %3381 = vmatprep.subr.mxu0 0.0
        %3382 = vmatpush1.xpose.msra.mxu0 0.0
        %3383 = vmatprep.subr.mxu0 0.0
        %3384 = vmatpush1.xpose.msra.mxu0 0.0
        %3385 = vmatprep.subr.mxu0 0.0
        %3386 = vmatpush1.xpose.msra.mxu0 0.0
        %3387 = vmatprep.subr.mxu0 0.0
        %3388 = vmatpush1.xpose.msra.mxu0 0.0
        %3389 = vmatprep.subr.mxu0 0.0
        %3390 = vmatpush1.xpose.msra.mxu0 0.0
        %3391 = vmatprep.subr.mxu0 0.0
        %3392 = vmatpush1.xpose.msra.mxu0 0.0
        %3393 = vmatprep.subr.mxu0 0.0
        %3394 = vmatpush1.xpose.msra.mxu0 0.0
        %3395 = vmatprep.subr.mxu0 0.0
        %3396 = vmatpush1.xpose.msra.mxu0 0.0
        %3397 = vmatprep.subr.mxu0 0.0
        %3398 = vmatpush1.xpose.msra.mxu0 0.0
        %3399 = vmatprep.mubr.f32.mxu0 0.0
        %3400 = vmatmul.mubr.f32.gmra.mrb[0].mxu0 %v3330
        %v3401 = vpop.f32.mrb[0].mxu0
        %v3402 = vadd.f32 0.0, %v3401
        %v3403 = vpop.f32.mrb[0].mxu0
        %3404 = vdwg.mxu0
        %vm3405 = vcmp.eq.s32.totalorder %v1040, 0
        %v3406 = vsel %vm3405, 1, 0
        %v3407 = vlaneseq
        %v3408 = vshrl.u32 %v3407, 7
        %v3409 = vsub.s32 0, %v3408
        %v3410 = vrot.slane %v3406, %v3409
        %vm3411 = vcmp.eq.s32.totalorder %v3410, 1
        %v3412 = vsel %vm3411, -1e+10, %v3174
        %v3413 = vsel %vm3411, -1e+10, %v3250
        %v3414 = vsel %vm3411, -1e+10, %v3326
        %v3415 = vsel %vm3411, -1e+10, %v3402
        %v3416 = vsel %vm1576, %v3412, -inf
        %3417 = vmax.xlane.f32.xlu0 %v3416
        %v3418 = vpop.xlane.xlu0 %3417
        %v3419 = vsel %vm1576, %v3413, -inf
        %3420 = vmax.xlane.f32.xlu0 %v3419
        %v3421 = vpop.xlane.xlu0 %3420
        %v3422 = vsel %vm1576, %v3414, -inf
        %3423 = vmax.xlane.f32.xlu0 %v3422
        %v3424 = vpop.xlane.xlu0 %3423
        %v3425 = vsel %vm1576, %v3415, -inf
        %3426 = vmax.xlane.f32.xlu0 %v3425
        %v3427 = vpop.xlane.xlu0 %3426
        %v3428 = vsub.f32 %v3412, %v3418
        %v3429 = vsub.f32 %v3413, %v3421
        %v3430 = vsub.f32 %v3414, %v3424
        %v3431 = vsub.f32 %v3415, %v3427
        %v3432 = vmul.f32 %v3428, 1.442695
        %v3433 = vpow.pop %v3432
        %v3434 = vmul.f32 %v3429, 1.442695
        %v3435 = vpow.pop %v3434
        %v3436 = vmul.f32 %v3430, 1.442695
        %v3437 = vpow.pop %v3436
        %v3438 = vmul.f32 %v3431, 1.442695
        %v3439 = vpow.pop %v3438
        %v3440 = vsel %vm1576, %v3433, 0.0
        %3441 = vadd.xlane.f32.xlu0 %v3440
        %v3442 = vpop.xlane.xlu0 %3441
        %v3443 = vsel %vm1576, %v3435, 0.0
        %3444 = vadd.xlane.f32.xlu0 %v3443
        %v3445 = vpop.xlane.xlu0 %3444
        %v3446 = vsel %vm1576, %v3437, 0.0
        %3447 = vadd.xlane.f32.xlu0 %v3446
        %v3448 = vpop.xlane.xlu0 %3447
        %v3449 = vsel %vm1576, %v3439, 0.0
        %3450 = vadd.xlane.f32.xlu0 %v3449
        %v3451 = vpop.xlane.xlu0 %3450
        %v3452 = vrcp.pop %v3442
        %v3453 = vrcp.pop %v3445
        %v3454 = vrcp.pop %v3448
        %v3455 = vrcp.pop %v3451
        %v3456 = vmul.f32 %v3433, %v3452
        %v3457 = vmul.f32 %v3435, %v3453
        %v3458 = vmul.f32 %v3437, %v3454
        %v3459 = vmul.f32 %v3439, %v3455
        %v3461 = vsel %vm1576, %v3456, 0
        %3463 = vmatprep.subr.mxu0 0.0
        %3464 = vmatpush1.msra.mxu0 %v3097
        %3465 = vmatprep.subr.mxu0 0.0
        %3466 = vmatpush1.msra.mxu0 0.0
        %3467 = vmatprep.subr.mxu0 0.0
        %3468 = vmatpush1.msra.mxu0 0.0
        %3469 = vmatprep.subr.mxu0 0.0
        %3470 = vmatpush1.msra.mxu0 0.0
        %3471 = vmatprep.subr.mxu0 0.0
        %3472 = vmatpush1.msra.mxu0 0.0
        %3473 = vmatprep.subr.mxu0 0.0
        %3474 = vmatpush1.msra.mxu0 0.0
        %3475 = vmatprep.subr.mxu0 0.0
        %3476 = vmatpush1.msra.mxu0 0.0
        %3477 = vmatprep.subr.mxu0 0.0
        %3478 = vmatpush1.msra.mxu0 0.0
        %3479 = vmatprep.subr.mxu0 0.0
        %3480 = vmatpush1.msra.mxu0 0.0
        %3481 = vmatprep.subr.mxu0 0.0
        %3482 = vmatpush1.msra.mxu0 0.0
        %3483 = vmatprep.subr.mxu0 0.0
        %3484 = vmatpush1.msra.mxu0 0.0
        %3485 = vmatprep.subr.mxu0 0.0
        %3486 = vmatpush1.msra.mxu0 0.0
        %3487 = vmatprep.subr.mxu0 0.0
        %3488 = vmatpush1.msra.mxu0 0.0
        %3489 = vmatprep.subr.mxu0 0.0
        %3490 = vmatpush1.msra.mxu0 0.0
        %3491 = vmatprep.subr.mxu0 0.0
        %3492 = vmatpush1.msra.mxu0 0.0
        %3493 = vmatprep.subr.mxu0 0.0
        %3494 = vmatpush1.msra.mxu0 0.0
        %3495 = vmatprep.subr.mxu0 0.0
        %3496 = vmatpush1.msra.mxu0 0.0
        %3497 = vmatprep.subr.mxu0 0.0
        %3498 = vmatpush1.msra.mxu0 0.0
        %3499 = vmatprep.subr.mxu0 0.0
        %3500 = vmatpush1.msra.mxu0 0.0
        %3501 = vmatprep.subr.mxu0 0.0
        %3502 = vmatpush1.msra.mxu0 0.0
        %3503 = vmatprep.subr.mxu0 0.0
        %3504 = vmatpush1.msra.mxu0 0.0
        %3505 = vmatprep.subr.mxu0 0.0
        %3506 = vmatpush1.msra.mxu0 0.0
        %3507 = vmatprep.subr.mxu0 0.0
        %3508 = vmatpush1.msra.mxu0 0.0
        %3509 = vmatprep.subr.mxu0 0.0
        %3510 = vmatpush1.msra.mxu0 0.0
        %3511 = vmatprep.subr.mxu0 0.0
        %3512 = vmatpush1.msra.mxu0 0.0
        %3513 = vmatprep.subr.mxu0 0.0
        %3514 = vmatpush1.msra.mxu0 0.0
        %3515 = vmatprep.subr.mxu0 0.0
        %3516 = vmatpush1.msra.mxu0 0.0
        %3517 = vmatprep.subr.mxu0 0.0
        %3518 = vmatpush1.msra.mxu0 0.0
        %3519 = vmatprep.subr.mxu0 0.0
        %3520 = vmatpush1.msra.mxu0 0.0
        %3521 = vmatprep.subr.mxu0 0.0
        %3522 = vmatpush1.msra.mxu0 0.0
        %3523 = vmatprep.subr.mxu0 0.0
        %3524 = vmatpush1.msra.mxu0 0.0
        %3525 = vmatprep.subr.mxu0 0.0
        %3526 = vmatpush1.msra.mxu0 0.0
        %3527 = vmatprep.mubr.f32.mxu0 0.0
        %3528 = vmatmul.mubr.f32.gmra.mrb[0].mxu0 %v3461
        %v3529 = vpop.f32.mrb[0].mxu0
        %v3530 = vadd.f32 0.0, %v3529
        %v3531 = vpop.f32.mrb[0].mxu0
        %3532 = vdwg.mxu0
        %v3534 = vsel %vm1576, %v3457, 0
        %3536 = vmatprep.subr.mxu0 0.0
        %3537 = vmatpush1.msra.mxu0 %v3098
        %3538 = vmatprep.subr.mxu0 0.0
        %3539 = vmatpush1.msra.mxu0 0.0
        %3540 = vmatprep.subr.mxu0 0.0
        %3541 = vmatpush1.msra.mxu0 0.0
        %3542 = vmatprep.subr.mxu0 0.0
        %3543 = vmatpush1.msra.mxu0 0.0
        %3544 = vmatprep.subr.mxu0 0.0
        %3545 = vmatpush1.msra.mxu0 0.0
        %3546 = vmatprep.subr.mxu0 0.0
        %3547 = vmatpush1.msra.mxu0 0.0
        %3548 = vmatprep.subr.mxu0 0.0
        %3549 = vmatpush1.msra.mxu0 0.0
        %3550 = vmatprep.subr.mxu0 0.0
        %3551 = vmatpush1.msra.mxu0 0.0
        %3552 = vmatprep.subr.mxu0 0.0
        %3553 = vmatpush1.msra.mxu0 0.0
        %3554 = vmatprep.subr.mxu0 0.0
        %3555 = vmatpush1.msra.mxu0 0.0
        %3556 = vmatprep.subr.mxu0 0.0
        %3557 = vmatpush1.msra.mxu0 0.0
        %3558 = vmatprep.subr.mxu0 0.0
        %3559 = vmatpush1.msra.mxu0 0.0
        %3560 = vmatprep.subr.mxu0 0.0
        %3561 = vmatpush1.msra.mxu0 0.0
        %3562 = vmatprep.subr.mxu0 0.0
        %3563 = vmatpush1.msra.mxu0 0.0
        %3564 = vmatprep.subr.mxu0 0.0
        %3565 = vmatpush1.msra.mxu0 0.0
        %3566 = vmatprep.subr.mxu0 0.0
        %3567 = vmatpush1.msra.mxu0 0.0
        %3568 = vmatprep.subr.mxu0 0.0
        %3569 = vmatpush1.msra.mxu0 0.0
        %3570 = vmatprep.subr.mxu0 0.0
        %3571 = vmatpush1.msra.mxu0 0.0
        %3572 = vmatprep.subr.mxu0 0.0
        %3573 = vmatpush1.msra.mxu0 0.0
        %3574 = vmatprep.subr.mxu0 0.0
        %3575 = vmatpush1.msra.mxu0 0.0
        %3576 = vmatprep.subr.mxu0 0.0
        %3577 = vmatpush1.msra.mxu0 0.0
        %3578 = vmatprep.subr.mxu0 0.0
        %3579 = vmatpush1.msra.mxu0 0.0
        %3580 = vmatprep.subr.mxu0 0.0
        %3581 = vmatpush1.msra.mxu0 0.0
        %3582 = vmatprep.subr.mxu0 0.0
        %3583 = vmatpush1.msra.mxu0 0.0
        %3584 = vmatprep.subr.mxu0 0.0
        %3585 = vmatpush1.msra.mxu0 0.0
        %3586 = vmatprep.subr.mxu0 0.0
        %3587 = vmatpush1.msra.mxu0 0.0
        %3588 = vmatprep.subr.mxu0 0.0
        %3589 = vmatpush1.msra.mxu0 0.0
        %3590 = vmatprep.subr.mxu0 0.0
        %3591 = vmatpush1.msra.mxu0 0.0
        %3592 = vmatprep.subr.mxu0 0.0
        %3593 = vmatpush1.msra.mxu0 0.0
        %3594 = vmatprep.subr.mxu0 0.0
        %3595 = vmatpush1.msra.mxu0 0.0
        %3596 = vmatprep.subr.mxu0 0.0
        %3597 = vmatpush1.msra.mxu0 0.0
        %3598 = vmatprep.subr.mxu0 0.0
        %3599 = vmatpush1.msra.mxu0 0.0
        %3600 = vmatprep.mubr.f32.mxu0 0.0
        %3601 = vmatmul.mubr.f32.gmra.mrb[0].mxu0 %v3534
        %v3602 = vpop.f32.mrb[0].mxu0
        %v3603 = vadd.f32 0.0, %v3602
        %v3604 = vpop.f32.mrb[0].mxu0
        %3605 = vdwg.mxu0
        %v3607 = vsel %vm1576, %v3458, 0
        %3609 = vmatprep.subr.mxu0 0.0
        %3610 = vmatpush1.msra.mxu0 %v3099
        %3611 = vmatprep.subr.mxu0 0.0
        %3612 = vmatpush1.msra.mxu0 0.0
        %3613 = vmatprep.subr.mxu0 0.0
        %3614 = vmatpush1.msra.mxu0 0.0
        %3615 = vmatprep.subr.mxu0 0.0
        %3616 = vmatpush1.msra.mxu0 0.0
        %3617 = vmatprep.subr.mxu0 0.0
        %3618 = vmatpush1.msra.mxu0 0.0
        %3619 = vmatprep.subr.mxu0 0.0
        %3620 = vmatpush1.msra.mxu0 0.0
        %3621 = vmatprep.subr.mxu0 0.0
        %3622 = vmatpush1.msra.mxu0 0.0
        %3623 = vmatprep.subr.mxu0 0.0
        %3624 = vmatpush1.msra.mxu0 0.0
        %3625 = vmatprep.subr.mxu0 0.0
        %3626 = vmatpush1.msra.mxu0 0.0
        %3627 = vmatprep.subr.mxu0 0.0
        %3628 = vmatpush1.msra.mxu0 0.0
        %3629 = vmatprep.subr.mxu0 0.0
        %3630 = vmatpush1.msra.mxu0 0.0
        %3631 = vmatprep.subr.mxu0 0.0
        %3632 = vmatpush1.msra.mxu0 0.0
        %3633 = vmatprep.subr.mxu0 0.0
        %3634 = vmatpush1.msra.mxu0 0.0
        %3635 = vmatprep.subr.mxu0 0.0
        %3636 = vmatpush1.msra.mxu0 0.0
        %3637 = vmatprep.subr.mxu0 0.0
        %3638 = vmatpush1.msra.mxu0 0.0
        %3639 = vmatprep.subr.mxu0 0.0
        %3640 = vmatpush1.msra.mxu0 0.0
        %3641 = vmatprep.subr.mxu0 0.0
        %3642 = vmatpush1.msra.mxu0 0.0
        %3643 = vmatprep.subr.mxu0 0.0
        %3644 = vmatpush1.msra.mxu0 0.0
        %3645 = vmatprep.subr.mxu0 0.0
        %3646 = vmatpush1.msra.mxu0 0.0
        %3647 = vmatprep.subr.mxu0 0.0
        %3648 = vmatpush1.msra.mxu0 0.0
        %3649 = vmatprep.subr.mxu0 0.0
        %3650 = vmatpush1.msra.mxu0 0.0
        %3651 = vmatprep.subr.mxu0 0.0
        %3652 = vmatpush1.msra.mxu0 0.0
        %3653 = vmatprep.subr.mxu0 0.0
        %3654 = vmatpush1.msra.mxu0 0.0
        %3655 = vmatprep.subr.mxu0 0.0
        %3656 = vmatpush1.msra.mxu0 0.0
        %3657 = vmatprep.subr.mxu0 0.0
        %3658 = vmatpush1.msra.mxu0 0.0
        %3659 = vmatprep.subr.mxu0 0.0
        %3660 = vmatpush1.msra.mxu0 0.0
        %3661 = vmatprep.subr.mxu0 0.0
        %3662 = vmatpush1.msra.mxu0 0.0
        %3663 = vmatprep.subr.mxu0 0.0
        %3664 = vmatpush1.msra.mxu0 0.0
        %3665 = vmatprep.subr.mxu0 0.0
        %3666 = vmatpush1.msra.mxu0 0.0
        %3667 = vmatprep.subr.mxu0 0.0
        %3668 = vmatpush1.msra.mxu0 0.0
        %3669 = vmatprep.subr.mxu0 0.0
        %3670 = vmatpush1.msra.mxu0 0.0
        %3671 = vmatprep.subr.mxu0 0.0
        %3672 = vmatpush1.msra.mxu0 0.0
        %3673 = vmatprep.mubr.f32.mxu0 0.0
        %3674 = vmatmul.mubr.f32.gmra.mrb[0].mxu0 %v3607
        %v3675 = vpop.f32.mrb[0].mxu0
        %v3676 = vadd.f32 0.0, %v3675
        %v3677 = vpop.f32.mrb[0].mxu0
        %3678 = vdwg.mxu0
        %v3680 = vsel %vm1576, %v3459, 0
        %3682 = vmatprep.subr.mxu0 0.0
        %3683 = vmatpush1.msra.mxu0 %v3100
        %3684 = vmatprep.subr.mxu0 0.0
        %3685 = vmatpush1.msra.mxu0 0.0
        %3686 = vmatprep.subr.mxu0 0.0
        %3687 = vmatpush1.msra.mxu0 0.0
        %3688 = vmatprep.subr.mxu0 0.0
        %3689 = vmatpush1.msra.mxu0 0.0
        %3690 = vmatprep.subr.mxu0 0.0
        %3691 = vmatpush1.msra.mxu0 0.0
        %3692 = vmatprep.subr.mxu0 0.0
        %3693 = vmatpush1.msra.mxu0 0.0
        %3694 = vmatprep.subr.mxu0 0.0
        %3695 = vmatpush1.msra.mxu0 0.0
        %3696 = vmatprep.subr.mxu0 0.0
        %3697 = vmatpush1.msra.mxu0 0.0
        %3698 = vmatprep.subr.mxu0 0.0
        %3699 = vmatpush1.msra.mxu0 0.0
        %3700 = vmatprep.subr.mxu0 0.0
        %3701 = vmatpush1.msra.mxu0 0.0
        %3702 = vmatprep.subr.mxu0 0.0
        %3703 = vmatpush1.msra.mxu0 0.0
        %3704 = vmatprep.subr.mxu0 0.0
        %3705 = vmatpush1.msra.mxu0 0.0
        %3706 = vmatprep.subr.mxu0 0.0
        %3707 = vmatpush1.msra.mxu0 0.0
        %3708 = vmatprep.subr.mxu0 0.0
        %3709 = vmatpush1.msra.mxu0 0.0
        %3710 = vmatprep.subr.mxu0 0.0
        %3711 = vmatpush1.msra.mxu0 0.0
        %3712 = vmatprep.subr.mxu0 0.0
        %3713 = vmatpush1.msra.mxu0 0.0
        %3714 = vmatprep.subr.mxu0 0.0
        %3715 = vmatpush1.msra.mxu0 0.0
        %3716 = vmatprep.subr.mxu0 0.0
        %3717 = vmatpush1.msra.mxu0 0.0
        %3718 = vmatprep.subr.mxu0 0.0
        %3719 = vmatpush1.msra.mxu0 0.0
        %3720 = vmatprep.subr.mxu0 0.0
        %3721 = vmatpush1.msra.mxu0 0.0
        %3722 = vmatprep.subr.mxu0 0.0
        %3723 = vmatpush1.msra.mxu0 0.0
        %3724 = vmatprep.subr.mxu0 0.0
        %3725 = vmatpush1.msra.mxu0 0.0
        %3726 = vmatprep.subr.mxu0 0.0
        %3727 = vmatpush1.msra.mxu0 0.0
        %3728 = vmatprep.subr.mxu0 0.0
        %3729 = vmatpush1.msra.mxu0 0.0
        %3730 = vmatprep.subr.mxu0 0.0
        %3731 = vmatpush1.msra.mxu0 0.0
        %3732 = vmatprep.subr.mxu0 0.0
        %3733 = vmatpush1.msra.mxu0 0.0
        %3734 = vmatprep.subr.mxu0 0.0
        %3735 = vmatpush1.msra.mxu0 0.0
        %3736 = vmatprep.subr.mxu0 0.0
        %3737 = vmatpush1.msra.mxu0 0.0
        %3738 = vmatprep.subr.mxu0 0.0
        %3739 = vmatpush1.msra.mxu0 0.0
        %3740 = vmatprep.subr.mxu0 0.0
        %3741 = vmatpush1.msra.mxu0 0.0
        %3742 = vmatprep.subr.mxu0 0.0
        %3743 = vmatpush1.msra.mxu0 0.0
        %3744 = vmatprep.subr.mxu0 0.0
        %3745 = vmatpush1.msra.mxu0 0.0
        %3746 = vmatprep.mubr.f32.mxu0 0.0
        %3747 = vmatmul.mubr.f32.gmra.mrb[0].mxu0 %v3680
        %v3748 = vpop.f32.mrb[0].mxu0
        %v3749 = vadd.f32 0.0, %v3748
        %v3750 = vpop.f32.mrb[0].mxu0
        %3751 = vdwg.mxu0
        %v3752 = vcombine.low %v3530, %v3676
        %v3753 = vcombine.high %v3530, %v3676
        %v3755 = vunpack.c.l.s4 1983009808
        %v3756 = vunpack.c.0.s8 %v3755
        %v3757 = vlaneseq
        %v3758 = vshrl.u32 %v3757, 7
        %v3759 = vsub.s32 %v3756, %v3758
        %v3760 = vrot.slane %v3752, %v3759
        %v3762 = vunpack.c.l.s4 1983009808
        %v3763 = vunpack.c.0.s8 %v3762
        %v3764 = vlaneseq
        %v3765 = vshrl.u32 %v3764, 7
        %v3766 = vsub.s32 %v3763, %v3765
        %v3767 = vrot.slane %v3753, %v3766
        %v3768 = vcombine.low %v3603, %v3749
        %v3769 = vcombine.high %v3603, %v3749
        %v3771 = vunpack.c.l.s4 1983009808
        %v3772 = vunpack.c.0.s8 %v3771
        %v3773 = vlaneseq
        %v3774 = vshrl.u32 %v3773, 7
        %v3775 = vsub.s32 %v3772, %v3774
        %v3776 = vrot.slane %v3768, %v3775
        %v3778 = vunpack.c.l.s4 1983009808
        %v3779 = vunpack.c.0.s8 %v3778
        %v3780 = vlaneseq
        %v3781 = vshrl.u32 %v3780, 7
        %v3782 = vsub.s32 %v3779, %v3781
        %v3783 = vrot.slane %v3769, %v3782
        %v3784 = vcombine.low %v3760, %v3776
        %v3785 = vcombine.high %v3760, %v3776
        %v3787 = vunpack.c.l.s4 1934713408
        %v3788 = vunpack.c.0.s8 %v3787
        %v3789 = vlaneseq
        %v3790 = vshrl.u32 %v3789, 7
        %v3791 = vsub.s32 %v3788, %v3790
        %v3792 = vrot.slane %v3784, %v3791
        %v3794 = vunpack.c.l.s4 1934713408
        %v3795 = vunpack.c.0.s8 %v3794
        %v3796 = vlaneseq
        %v3797 = vshrl.u32 %v3796, 7
        %v3798 = vsub.s32 %v3795, %v3797
        %v3799 = vrot.slane %v3785, %v3798
        %v3800 = vcombine.low %v3767, %v3783
        %v3801 = vcombine.high %v3767, %v3783
        %v3803 = vunpack.c.l.s4 1934713408
        %v3804 = vunpack.c.0.s8 %v3803
        %v3805 = vlaneseq
        %v3806 = vshrl.u32 %v3805, 7
        %v3807 = vsub.s32 %v3804, %v3806
        %v3808 = vrot.slane %v3800, %v3807
        %v3810 = vunpack.c.l.s4 1934713408
        %v3811 = vunpack.c.0.s8 %v3810
        %v3812 = vlaneseq
        %v3813 = vshrl.u32 %v3812, 7
        %v3814 = vsub.s32 %v3811, %v3813
        %v3815 = vrot.slane %v3801, %v3814
        %v3816 = vcombine.high %v3792, 0.0
        %v3817 = vcombine.high %v3799, 0.0
        %v3818 = vcombine.high %v3808, 0.0
        %v3819 = vcombine.high %v3815, 0.0
        %v3820 = vcombine.low %v3792, %v3799
        %v3822 = vunpack.c.l.s4 1983009808
        %v3823 = vunpack.c.0.s8 %v3822
        %v3824 = vlaneseq
        %v3825 = vshrl.u32 %v3824, 7
        %v3826 = vsub.s32 %v3823, %v3825
        %v3827 = vrot.slane %v3820, %v3826
        %v3828 = vcombine.low %v3816, %v3817
        %v3830 = vunpack.c.l.s4 1983009808
        %v3831 = vunpack.c.0.s8 %v3830
        %v3832 = vlaneseq
        %v3833 = vshrl.u32 %v3832, 7
        %v3834 = vsub.s32 %v3831, %v3833
        %v3835 = vrot.slane %v3828, %v3834
        %v3836 = vcombine.low %v3808, %v3815
        %v3838 = vunpack.c.l.s4 1983009808
        %v3839 = vunpack.c.0.s8 %v3838
        %v3840 = vlaneseq
        %v3841 = vshrl.u32 %v3840, 7
        %v3842 = vsub.s32 %v3839, %v3841
        %v3843 = vrot.slane %v3836, %v3842
        %v3844 = vcombine.low %v3818, %v3819
        %v3846 = vunpack.c.l.s4 1983009808
        %v3847 = vunpack.c.0.s8 %v3846
        %v3848 = vlaneseq
        %v3849 = vshrl.u32 %v3848, 7
        %v3850 = vsub.s32 %v3847, %v3849
        %v3851 = vrot.slane %v3844, %v3850
        %v3852 = vcombine.low %v3827, %v3835
        %v3853 = vcombine.high %v3827, %v3835
        %v3855 = vunpack.c.l.s4 1934713408
        %v3856 = vunpack.c.0.s8 %v3855
        %v3857 = vlaneseq
        %v3858 = vshrl.u32 %v3857, 7
        %v3859 = vsub.s32 %v3856, %v3858
        %v3860 = vrot.slane %v3852, %v3859
        %v3862 = vunpack.c.l.s4 1934713408
        %v3863 = vunpack.c.0.s8 %v3862
        %v3864 = vlaneseq
        %v3865 = vshrl.u32 %v3864, 7
        %v3866 = vsub.s32 %v3863, %v3865
        %v3867 = vrot.slane %v3853, %v3866
        %v3868 = vcombine.low %v3843, %v3851
        %v3869 = vcombine.high %v3843, %v3851
        %v3871 = vunpack.c.l.s4 1934713408
        %v3872 = vunpack.c.0.s8 %v3871
        %v3873 = vlaneseq
        %v3874 = vshrl.u32 %v3873, 7
        %v3875 = vsub.s32 %v3872, %v3874
        %v3876 = vrot.slane %v3868, %v3875
        %v3878 = vunpack.c.l.s4 1934713408
        %v3879 = vunpack.c.0.s8 %v3878
        %v3880 = vlaneseq
        %v3881 = vshrl.u32 %v3880, 7
        %v3882 = vsub.s32 %v3879, %v3881
        %v3883 = vrot.slane %v3869, %v3882
        %v3884 = vcombine.low %v3860, %v3876
        %v3885 = vcombine.high %v3860, %v3876
        %v3886 = vcombine.low %v3867, %v3883
        %v3887 = vcombine.high %v3867, %v3883
        %3889 = vrot.lane.b32.xlu0 %v3885, 8
        %v3890 = vpop.permute.xlu0 %3889
        %3893 = vrot.lane.b32.xlu0 %v3886, 16
        %v3894 = vpop.permute.xlu0 %3893
        %3897 = vrot.lane.b32.xlu0 %v3887, 24
        %v3898 = vpop.permute.xlu0 %3897
        %v3900 = vsel %vm1576, %v3884, %v3890
        %v3901 = vsel %vm2373, %v3900, %v3894
        %v3902 = vsel %vm2375, %v3901, %v3898
        %v3903 = vld [vmem:[#allocation16] sm:$0xff]
        %v3904 = vld [vmem:[#allocation16 + $0x8] sm:$0xff]
        %v3905 = vld [vmem:[#allocation16 + $0x10] sm:$0xff]
        %v3906 = vld [vmem:[#allocation16 + $0x18] sm:$0xff]
        %v3907 = vld [vmem:[#allocation17] sm:$0x1]
        %v3909 = vlaneseq
        %v3910 = vshrl.u32 %v3909, 7
        %v3911 = vsub.s32 0, %v3910
        %v3912 = vrot.slane %v3907, %v3911
        %v3915 = vsel %vm1052, %v3902, 0
        %3917 = vmatprep.subr.mxu0 0.0
        %3918 = vmatpush1.msra.mxu0 %v3903
        %3919 = vmatprep.subr.mxu0 0.0
        %3920 = vmatpush1.msra.mxu0 %v3904
        %3921 = vmatprep.subr.mxu0 0.0
        %3922 = vmatpush1.msra.mxu0 %v3905
        %3923 = vmatprep.subr.mxu0 0.0
        %3924 = vmatpush1.msra.mxu0 %v3906
        %3925 = vmatprep.subr.mxu0 0.0
        %3926 = vmatpush1.msra.mxu0 0.0
        %3927 = vmatprep.subr.mxu0 0.0
        %3928 = vmatpush1.msra.mxu0 0.0
        %3929 = vmatprep.subr.mxu0 0.0
        %3930 = vmatpush1.msra.mxu0 0.0
        %3931 = vmatprep.subr.mxu0 0.0
        %3932 = vmatpush1.msra.mxu0 0.0
        %3933 = vmatprep.subr.mxu0 0.0
        %3934 = vmatpush1.msra.mxu0 0.0
        %3935 = vmatprep.subr.mxu0 0.0
        %3936 = vmatpush1.msra.mxu0 0.0
        %3937 = vmatprep.subr.mxu0 0.0
        %3938 = vmatpush1.msra.mxu0 0.0
        %3939 = vmatprep.subr.mxu0 0.0
        %3940 = vmatpush1.msra.mxu0 0.0
        %3941 = vmatprep.subr.mxu0 0.0
        %3942 = vmatpush1.msra.mxu0 0.0
        %3943 = vmatprep.subr.mxu0 0.0
        %3944 = vmatpush1.msra.mxu0 0.0
        %3945 = vmatprep.subr.mxu0 0.0
        %3946 = vmatpush1.msra.mxu0 0.0
        %3947 = vmatprep.subr.mxu0 0.0
        %3948 = vmatpush1.msra.mxu0 0.0
        %3949 = vmatprep.subr.mxu0 0.0
        %3950 = vmatpush1.msra.mxu0 0.0
        %3951 = vmatprep.subr.mxu0 0.0
        %3952 = vmatpush1.msra.mxu0 0.0
        %3953 = vmatprep.subr.mxu0 0.0
        %3954 = vmatpush1.msra.mxu0 0.0
        %3955 = vmatprep.subr.mxu0 0.0
        %3956 = vmatpush1.msra.mxu0 0.0
        %3957 = vmatprep.subr.mxu0 0.0
        %3958 = vmatpush1.msra.mxu0 0.0
        %3959 = vmatprep.subr.mxu0 0.0
        %3960 = vmatpush1.msra.mxu0 0.0
        %3961 = vmatprep.subr.mxu0 0.0
        %3962 = vmatpush1.msra.mxu0 0.0
        %3963 = vmatprep.subr.mxu0 0.0
        %3964 = vmatpush1.msra.mxu0 0.0
        %3965 = vmatprep.subr.mxu0 0.0
        %3966 = vmatpush1.msra.mxu0 0.0
        %3967 = vmatprep.subr.mxu0 0.0
        %3968 = vmatpush1.msra.mxu0 0.0
        %3969 = vmatprep.subr.mxu0 0.0
        %3970 = vmatpush1.msra.mxu0 0.0
        %3971 = vmatprep.subr.mxu0 0.0
        %3972 = vmatpush1.msra.mxu0 0.0
        %3973 = vmatprep.subr.mxu0 0.0
        %3974 = vmatpush1.msra.mxu0 0.0
        %3975 = vmatprep.subr.mxu0 0.0
        %3976 = vmatpush1.msra.mxu0 0.0
        %3977 = vmatprep.subr.mxu0 0.0
        %3978 = vmatpush1.msra.mxu0 0.0
        %3979 = vmatprep.subr.mxu0 0.0
        %3980 = vmatpush1.msra.mxu0 0.0
        %3981 = vmatprep.mubr.f32.mxu0 0.0
        %3982 = vmatmul.mubr.f32.gmra.mrb[0].mxu0 %v3915
        %v3983 = vpop.f32.mrb[0].mxu0
        %v3984 = vadd.f32 %v3912, %v3983
        %v3985 = vpop.f32.mrb[0].mxu0
        %3986 = vdwg.mxu0
        %3987 = vst.msk [vmem:[%s1036] sm:$0xff] %vm1576, %v3456
        %3988 = vst.msk [vmem:[%s1036 + $0x8] sm:$0xff] %vm1576, %v3457
        %3989 = vst.msk [vmem:[%s1036 + $0x10] sm:$0xff] %vm1576, %v3458
        %3990 = vst.msk [vmem:[%s1036 + $0x18] sm:$0xff] %vm1576, %v3459
        %v3991 = vadd.f32 %v2491, %v3984
        %v3992 = vsel %vm1052, %v3991, 0.0
        %3993 = vadd.xlane.f32.xlu0 %v3992
        %v3994 = vpop.xlane.xlu0 %3993
        %v3995 = vmul.f32 %v3994, %v2465
        %v3996 = vsub.f32 %v3991, %v3995
        %v3997 = vmul.f32 %v3996, %v3996
        %v3998 = vsel %vm1052, %v3997, 0.0
        %3999 = vadd.xlane.f32.xlu0 %v3998
        %v4000 = vpop.xlane.xlu0 %3999
        %v4001 = vmul.f32 %v4000, %v2465
        %v4002 = vadd.f32 %v4001, 1e-05
        %v4003 = vrsqrt.pop %v4002
        %v4004 = vmul.f32 %v3996, %v4003
        %v4005 = vld [vmem:[#allocation22] sm:$0x1]
        %v4007 = vlaneseq
        %v4008 = vshrl.u32 %v4007, 7
        %v4009 = vsub.s32 0, %v4008
        %v4010 = vrot.slane %v4005, %v4009
        %v4012 = vmul.f32 %v4004, %v4010
        %v4013 = vld [vmem:[#allocation23] sm:$0x1]
        %v4015 = vlaneseq
        %v4016 = vshrl.u32 %v4015, 7
        %v4017 = vsub.s32 0, %v4016
        %v4018 = vrot.slane %v4013, %v4017
        %v4020 = vadd.f32 %v4012, %v4018
        %v4021 = vld [vmem:[#allocation25] sm:$0xff]
        %v4022 = vld [vmem:[#allocation25 + $0x8] sm:$0xff]
        %v4023 = vld [vmem:[#allocation25 + $0x10] sm:$0xff]
        %v4024 = vld [vmem:[#allocation25 + $0x18] sm:$0xff]
        %v4025 = vld [vmem:[%s21] sm:$0x1]
        %v4027 = vlaneseq
        %v4028 = vshrl.u32 %v4027, 7
        %v4029 = vsub.s32 0, %v4028
        %v4030 = vrot.slane %v4025, %v4029
        %v4033 = vsel %vm1052, %v4020, 0
        %4035 = vmatprep.subr.mxu0 0.0
        %4036 = vmatpush1.msra.mxu0 %v4021
        %4037 = vmatprep.subr.mxu0 0.0
        %4038 = vmatpush1.msra.mxu0 %v4022
        %4039 = vmatprep.subr.mxu0 0.0
        %4040 = vmatpush1.msra.mxu0 %v4023
        %4041 = vmatprep.subr.mxu0 0.0
        %4042 = vmatpush1.msra.mxu0 %v4024
        %4043 = vmatprep.subr.mxu0 0.0
        %4044 = vmatpush1.msra.mxu0 0.0
        %4045 = vmatprep.subr.mxu0 0.0
        %4046 = vmatpush1.msra.mxu0 0.0
        %4047 = vmatprep.subr.mxu0 0.0
        %4048 = vmatpush1.msra.mxu0 0.0
        %4049 = vmatprep.subr.mxu0 0.0
        %4050 = vmatpush1.msra.mxu0 0.0
        %4051 = vmatprep.subr.mxu0 0.0
        %4052 = vmatpush1.msra.mxu0 0.0
        %4053 = vmatprep.subr.mxu0 0.0
        %4054 = vmatpush1.msra.mxu0 0.0
        %4055 = vmatprep.subr.mxu0 0.0
        %4056 = vmatpush1.msra.mxu0 0.0
        %4057 = vmatprep.subr.mxu0 0.0
        %4058 = vmatpush1.msra.mxu0 0.0
        %4059 = vmatprep.subr.mxu0 0.0
        %4060 = vmatpush1.msra.mxu0 0.0
        %4061 = vmatprep.subr.mxu0 0.0
        %4062 = vmatpush1.msra.mxu0 0.0
        %4063 = vmatprep.subr.mxu0 0.0
        %4064 = vmatpush1.msra.mxu0 0.0
        %4065 = vmatprep.subr.mxu0 0.0
        %4066 = vmatpush1.msra.mxu0 0.0
        %4067 = vmatprep.subr.mxu0 0.0
        %4068 = vmatpush1.msra.mxu0 0.0
        %4069 = vmatprep.subr.mxu0 0.0
        %4070 = vmatpush1.msra.mxu0 0.0
        %4071 = vmatprep.subr.mxu0 0.0
        %4072 = vmatpush1.msra.mxu0 0.0
        %4073 = vmatprep.subr.mxu0 0.0
        %4074 = vmatpush1.msra.mxu0 0.0
        %4075 = vmatprep.subr.mxu0 0.0
        %4076 = vmatpush1.msra.mxu0 0.0
        %4077 = vmatprep.subr.mxu0 0.0
        %4078 = vmatpush1.msra.mxu0 0.0
        %4079 = vmatprep.subr.mxu0 0.0
        %4080 = vmatpush1.msra.mxu0 0.0
        %4081 = vmatprep.subr.mxu0 0.0
        %4082 = vmatpush1.msra.mxu0 0.0
        %4083 = vmatprep.subr.mxu0 0.0
        %4084 = vmatpush1.msra.mxu0 0.0
        %4085 = vmatprep.subr.mxu0 0.0
        %4086 = vmatpush1.msra.mxu0 0.0
        %4087 = vmatprep.subr.mxu0 0.0
        %4088 = vmatpush1.msra.mxu0 0.0
        %4089 = vmatprep.subr.mxu0 0.0
        %4090 = vmatpush1.msra.mxu0 0.0
        %4091 = vmatprep.subr.mxu0 0.0
        %4092 = vmatpush1.msra.mxu0 0.0
        %4093 = vmatprep.subr.mxu0 0.0
        %4094 = vmatpush1.msra.mxu0 0.0
        %4095 = vmatprep.subr.mxu0 0.0
        %4096 = vmatpush1.msra.mxu0 0.0
        %4097 = vmatprep.subr.mxu0 0.0
        %4098 = vmatpush1.msra.mxu0 0.0
        %4099 = vmatprep.mubr.f32.mxu0 0.0
        %4100 = vmatmul.mubr.f32.gmra.mrb[0].mxu0 %v4033
        %v4101 = vpop.f32.mrb[0].mxu0
        %v4102 = vadd.f32 %v4030, %v4101
        %v4103 = vpop.f32.mrb[0].mxu0
        %4104 = vdwg.mxu0
        %v4105 = vmax.f32 %v4102, 0.0
        %v4106 = vld [vmem:[%s22] sm:$0xff]
        %v4107 = vld [vmem:[%s22 + $0x8] sm:$0xff]
        %v4108 = vld [vmem:[%s22 + $0x10] sm:$0xff]
        %v4109 = vld [vmem:[%s22 + $0x18] sm:$0xff]
        %v4110 = vld [vmem:[%s22 + $0x20] sm:$0xff]
        %v4111 = vld [vmem:[%s22 + $0x28] sm:$0xff]
        %v4112 = vld [vmem:[%s22 + $0x30] sm:$0xff]
        %v4113 = vld [vmem:[%s22 + $0x38] sm:$0xff]
        %v4114 = vld [vmem:[%s23] sm:$0x1]
        %v4116 = vlaneseq
        %v4117 = vshrl.u32 %v4116, 7
        %v4118 = vsub.s32 0, %v4117
        %v4119 = vrot.slane %v4114, %v4118
        %vm4121 = vcmask 523264
        %v4123 = vsel %vm4121, %v4105, 0
        %4125 = vmatprep.subr.mxu0 0.0
        %4126 = vmatpush1.msra.mxu0 %v4106
        %4127 = vmatprep.subr.mxu0 0.0
        %4128 = vmatpush1.msra.mxu0 %v4107
        %4129 = vmatprep.subr.mxu0 0.0
        %4130 = vmatpush1.msra.mxu0 %v4108
        %4131 = vmatprep.subr.mxu0 0.0
        %4132 = vmatpush1.msra.mxu0 %v4109
        %4133 = vmatprep.subr.mxu0 0.0
        %4134 = vmatpush1.msra.mxu0 %v4110
        %4135 = vmatprep.subr.mxu0 0.0
        %4136 = vmatpush1.msra.mxu0 %v4111
        %4137 = vmatprep.subr.mxu0 0.0
        %4138 = vmatpush1.msra.mxu0 %v4112
        %4139 = vmatprep.subr.mxu0 0.0
        %4140 = vmatpush1.msra.mxu0 %v4113
        %4141 = vmatprep.subr.mxu0 0.0
        %4142 = vmatpush1.msra.mxu0 0.0
        %4143 = vmatprep.subr.mxu0 0.0
        %4144 = vmatpush1.msra.mxu0 0.0
        %4145 = vmatprep.subr.mxu0 0.0
        %4146 = vmatpush1.msra.mxu0 0.0
        %4147 = vmatprep.subr.mxu0 0.0
        %4148 = vmatpush1.msra.mxu0 0.0
        %4149 = vmatprep.subr.mxu0 0.0
        %4150 = vmatpush1.msra.mxu0 0.0
        %4151 = vmatprep.subr.mxu0 0.0
        %4152 = vmatpush1.msra.mxu0 0.0
        %4153 = vmatprep.subr.mxu0 0.0
        %4154 = vmatpush1.msra.mxu0 0.0
        %4155 = vmatprep.subr.mxu0 0.0
        %4156 = vmatpush1.msra.mxu0 0.0
        %4157 = vmatprep.subr.mxu0 0.0
        %4158 = vmatpush1.msra.mxu0 0.0
        %4159 = vmatprep.subr.mxu0 0.0
        %4160 = vmatpush1.msra.mxu0 0.0
        %4161 = vmatprep.subr.mxu0 0.0
        %4162 = vmatpush1.msra.mxu0 0.0
        %4163 = vmatprep.subr.mxu0 0.0
        %4164 = vmatpush1.msra.mxu0 0.0
        %4165 = vmatprep.subr.mxu0 0.0
        %4166 = vmatpush1.msra.mxu0 0.0
        %4167 = vmatprep.subr.mxu0 0.0
        %4168 = vmatpush1.msra.mxu0 0.0
        %4169 = vmatprep.subr.mxu0 0.0
        %4170 = vmatpush1.msra.mxu0 0.0
        %4171 = vmatprep.subr.mxu0 0.0
        %4172 = vmatpush1.msra.mxu0 0.0
        %4173 = vmatprep.subr.mxu0 0.0
        %4174 = vmatpush1.msra.mxu0 0.0
        %4175 = vmatprep.subr.mxu0 0.0
        %4176 = vmatpush1.msra.mxu0 0.0
        %4177 = vmatprep.subr.mxu0 0.0
        %4178 = vmatpush1.msra.mxu0 0.0
        %4179 = vmatprep.subr.mxu0 0.0
        %4180 = vmatpush1.msra.mxu0 0.0
        %4181 = vmatprep.subr.mxu0 0.0
        %4182 = vmatpush1.msra.mxu0 0.0
        %4183 = vmatprep.subr.mxu0 0.0
        %4184 = vmatpush1.msra.mxu0 0.0
        %4185 = vmatprep.subr.mxu0 0.0
        %4186 = vmatpush1.msra.mxu0 0.0
        %4187 = vmatprep.subr.mxu0 0.0
        %4188 = vmatpush1.msra.mxu0 0.0
        %4189 = vmatprep.mubr.f32.mxu0 0.0
        %4190 = vmatmul.mubr.f32.gmra.mrb[0].mxu0 %v4123
        %v4191 = vpop.f32.mrb[0].mxu0
        %v4192 = vadd.f32 %v4119, %v4191
        %v4193 = vpop.f32.mrb[0].mxu0
        %4194 = vdwg.mxu0
        %v4195 = vadd.f32 %v4020, %v4192
        %v4196 = vsel %vm1052, %v4195, 0.0
        %4197 = vadd.xlane.f32.xlu0 %v4196
        %v4198 = vpop.xlane.xlu0 %4197
        %v4199 = vmul.f32 %v4198, %v2465
        %v4200 = vsub.f32 %v4195, %v4199
        %v4201 = vmul.f32 %v4200, %v4200
        %v4202 = vsel %vm1052, %v4201, 0.0
        %4203 = vadd.xlane.f32.xlu0 %v4202
        %v4204 = vpop.xlane.xlu0 %4203
        %v4205 = vmul.f32 %v4204, %v2465
        %v4206 = vadd.f32 %v4205, 1e-05
        %v4207 = vrsqrt.pop %v4206
        %v4208 = vmul.f32 %v4200, %v4207
        %v4209 = vld [vmem:[%s18] sm:$0x1]
        %v4211 = vlaneseq
        %v4212 = vshrl.u32 %v4211, 7
        %v4213 = vsub.s32 0, %v4212
        %v4214 = vrot.slane %v4209, %v4213
        %v4216 = vmul.f32 %v4208, %v4214
        %v4217 = vld [vmem:[%s19] sm:$0x1]
        %v4219 = vlaneseq
        %v4220 = vshrl.u32 %v4219, 7
        %v4221 = vsub.s32 0, %v4220
        %v4222 = vrot.slane %v4217, %v4221
        %v4224 = vadd.f32 %v4216, %v4222
        %4225 = vst.msk [vmem:[%s1029] sm:$0xff] %vm1052, %v4224
        %s4226 = sand.u32 %s589, 1
        %s4227 = scalar_lea.sflag [#allocation4], %s4226
        %s4228 = sand.u32 %s589, 1
        %s4229 = smul.addr %s4228, 8
        %s4230 = scalar_lea.vmem [#allocation26], %s4229
        %s4231 = sand.u32 %s615, 1
        %s4232 = scalar_lea.sflag [#allocation28], %s4231
        %s4233 = sand.u32 %s615, 1
        %s4234 = smul.addr %s4233, 32
        %s4235 = scalar_lea.vmem [#allocation27], %s4234
        // Predicated region
        $region177: #{tpu_custom_call.1} parent=115 // pred_check
          %p4236 = pneg %p599
        $region178: #{tpu_custom_call.1} parent=115 // pred_check_branch
          %4238 = sbr.rel (%p4236) target = $region180
        $region179: #{tpu_custom_call.1} parent=115 // pred_region
          %s4240 = ssub.s32 128, 128
          %4241 = vsyncadd %s4227, %s4240
          %s4242 = smul.addr %s57, 128
          %s4243 = scalar_lea.hbm %s24, %s4242
          %s4245 = sshll.u32 %s4230, 4
          %s4246 = int_to_ptr.vmem [resolvable:$true] %s4245
          %4248 = dma.vmem_to_hbm [thread:$0]  %s4246, 128, %s4243, %s4227
        $region180: #{tpu_custom_call.1} parent=115 // pred_fallthru
          _
        // Predicated region
        $region181: #{tpu_custom_call.1} parent=115 // pred_check
          %p4249 = pneg %p625
        $region182: #{tpu_custom_call.1} parent=115 // pred_check_branch
          %4251 = sbr.rel (%p4249) target = $region184
        $region183: #{tpu_custom_call.1} parent=115 // pred_region
          %s4253 = ssub.s32 512, 512
          %4254 = vsyncadd %s4232, %s4253
          %s4255 = smul.addr %s57, 4
          %s4256 = smul.addr %s4255, 128
          %s4257 = scalar_lea.hbm %s25, %s4256
          %s4258 = sshll.u32 %s4235, 4
          %s4259 = int_to_ptr.vmem [resolvable:$true] %s4258
          %4264 = dma.vmem_to_hbm [thread:$0]  %s4259, 512, %s4257, %s4232, 128, 128, 8
        $region184: #{tpu_custom_call.1} parent=115 // pred_fallthru
          _
      $region116: #{tpu_custom_call.1} parent=5 // pred_fallthru
        _
      %p4265 = scmp.le.s32.totalorder 2, %s52
      // Predicated region
      $region185: #{tpu_custom_call.1} parent=5 // pred_check
        %p4266 = pneg %p4265
      $region186: #{tpu_custom_call.1} parent=5 // pred_check_branch
        %4268 = sbr.rel (%p4266) target = $region188
      $region187: #{tpu_custom_call.1} parent=5 // pred_region
        %s4269 = ssub.s32 %s52, 2
        // Predicated region
        $region189: #{tpu_custom_call.1} parent=187 // pred_check
          %p4270 = pneg %p605
        $region190: #{tpu_custom_call.1} parent=187 // pred_check_branch
          %4272 = sbr.rel (%p4270) target = $region192
        $region191: #{tpu_custom_call.1} parent=187 // pred_region
          %s4273 = sand.u32 %s590, 1
          %s4274 = scalar_lea.sflag [#allocation4], %s4273
          %s4275 = sand.u32 %s590, 1
          %s4276 = smul.addr %s4275, 8
          %s4277 = scalar_lea.vmem [#allocation26], %s4276
          %4278 = dma.done %s4274, 128
        $region192: #{tpu_custom_call.1} parent=187 // pred_fallthru
          _
        // Predicated region
        $region193: #{tpu_custom_call.1} parent=187 // pred_check
          %p4279 = pneg %p631
        $region194: #{tpu_custom_call.1} parent=187 // pred_check_branch
          %4281 = sbr.rel (%p4279) target = $region196
        $region195: #{tpu_custom_call.1} parent=187 // pred_region
          %s4282 = sand.u32 %s616, 1
          %s4283 = scalar_lea.sflag [#allocation28], %s4282
          %s4284 = sand.u32 %s616, 1
          %s4285 = smul.addr %s4284, 32
          %s4286 = scalar_lea.vmem [#allocation27], %s4285
          %4287 = dma.done %s4283, 512
        $region196: #{tpu_custom_call.1} parent=187 // pred_fallthru
          _
      $region188: #{tpu_custom_call.1} parent=5 // pred_fallthru
        _
    $region6: #{tpu_custom_call.1} parent=1 // loop_footer
      %s56 = sadd.s32 1, %s52
    $region7: #{tpu_custom_call.1} parent=1 // loop_footer_branch
      %51 = sbr.rel target = $region3
    $region8: #{tpu_custom_call.1} parent=1 // loop_exit
      _
    %4288 = vsyncpa [#allocation3], 1
    %s4289 = scalar_lea.sflag [#allocation3], 1
    %4290 = vsyncpa %s4289, 1
    %4291 = vsyncpa [#allocation6], 1
    %s4292 = scalar_lea.sflag [#allocation6], 1
    %4293 = vsyncpa %s4292, 1
    %4294 = vsyncpa [#allocation9], 1
    %s4295 = scalar_lea.sflag [#allocation9], 1
    %4296 = vsyncpa %s4295, 1
    %4297 = vsyncpa [#allocation12], 1
    %4298 = vsyncpa [#allocation15], 1
    %4299 = vsyncpa [#allocation18], 1
    %4300 = vsyncpa [#allocation21], 1
    %4301 = vsyncpa [#allocation24], 1
    %4302 = vsyncpa [#allocation4], 1
    %s4303 = scalar_lea.sflag [#allocation4], 1
    %4304 = vsyncpa %s4303, 1
    %4305 = vsyncpa [#allocation28], 1
    %s4306 = scalar_lea.sflag [#allocation28], 1
    %4307 = vsyncpa %s4306, 1

</llo_original>
